<compile_context>
chip_gen: v7x
topology: tpu7x:2x2x1
jax: 0.10.0
libtpu: 0.0.40
codegen_flags: <defaults>
</compile_context>

<pallas_src>
import functools
import math

import jax
import jax.numpy as jnp
from jax import lax
from jax.experimental import pallas as pl
from jax.experimental.pallas import tpu as pltpu

NEG_SLOPE = 0.01   # nn.LeakyReLU default negative_slope
BN_EPS = 1e-5      # nn.BatchNorm2d default eps

# f32 operands keep us within the 2e-3 tolerance of the f32 PyTorch reference;
# these matmuls are nowhere near MXU-bound, so bf16 operands are optional
# (accumulation is f32 either way).
MATMUL_DTYPE = jnp.float32


def _tap_offsets(kh, kw, dil, pad):
    """Static (tap_index, dy, dx): output (h, w) reads input (h+dy, w+dx)."""
    return tuple((i * kw + j, i * dil - pad, j * dil - pad)
                 for i in range(kh) for j in range(kw))


TAPS1 = _tap_offsets(3, 3, 1, 1)   # conv1: 3x3, dil=1, pad=1
TAPS2 = _tap_offsets(3, 3, 2, 2)   # conv2: 3x3, dil=2, pad=2
TAPS3 = _tap_offsets(2, 2, 2, 1)   # conv3: 2x2, dil=2, pad=1
ALL_TAPS = TAPS1 + TAPS2 + TAPS3   # 22 taps; conv4 is 1x1 (no taps / masks)


# ----------------------------------------------------------------------------
# The fused Pallas kernel (one grid step == one group of n_per images)
# ----------------------------------------------------------------------------
def _upblock_kernel(xa_ref, xb_ref, w1a_ref, w1b_ref, w2_ref, w3_ref, w4_ref,
                    epi_ref, mask_ref, o_ref, *, W, lanes, cout):
    """All activations are lane-dense (C, lanes) with lanes = n_per * H * W."""

    def epilogue(acc, k):
        # acc: (cout, lanes) f32.  epi_ref packs [bias, scale, shift] per conv k.
        bias = epi_ref[:, 3 * k + 0: 3 * k + 1]
        scale = epi_ref[:, 3 * k + 1: 3 * k + 2]
        shift = epi_ref[:, 3 * k + 2: 3 * k + 3]
        y = acc + bias                                   # conv bias
        y = jnp.where(y >= 0.0, y, NEG_SLOPE * y)        # LeakyReLU
        return y * scale + shift                         # BatchNorm2d (eval)

    def tap_reduce(big, taps, mask_base):
        # big: (n_taps*cout, lanes) f32 — ONE stacked matmul result for the conv.
        # Slice 8-row (cout) blocks per tap, shift along lanes (XLU), mask the
        # image borders, and accumulate.  acc is initialized from the first tap
        # (no zero-init + add).
        acc = None
        for t, dy, dx in taps:
            z = big[t * cout:(t + 1) * cout, :]
            s = dy * W + dx
            if s != 0:
                # Want out[:, n] = z[:, n + s]; wrapped / cross-image lanes are
                # zeroed by the per-image border mask below.
                z = pltpu.roll(z, shift=(-s) % lanes, axis=1)
            if dy != 0 or dx != 0:
                z = z * mask_ref[mask_base + t: mask_base + t + 1, :]
            acc = z if acc is None else acc + z
        return acc

    xa = xa_ref[0].astype(MATMUL_DTYPE)                  # (Cin_up,   lanes)
    xb = xb_ref[0].astype(MATMUL_DTYPE)                  # (Cin_skip, lanes)

    # conv1: tap-stacked, contraction split over (upA, skip) so the channel
    # concat never exists (concat-along-K == sum of two matmuls).
    big1 = (jnp.dot(w1a_ref[...].astype(MATMUL_DTYPE), xa,
                    preferred_element_type=jnp.float32)
            + jnp.dot(w1b_ref[...].astype(MATMUL_DTYPE), xb,
                      preferred_element_type=jnp.float32))
    e1 = epilogue(tap_reduce(big1, TAPS1, 0), 0)

    # conv2 / conv3: one stacked matmul each.
    big2 = jnp.dot(w2_ref[...].astype(MATMUL_DTYPE), e1.astype(MATMUL_DTYPE),
                   preferred_element_type=jnp.float32)
    e2 = epilogue(tap_reduce(big2, TAPS2, len(TAPS1)), 1)

    big3 = jnp.dot(w3_ref[...].astype(MATMUL_DTYPE), e2.astype(MATMUL_DTYPE),
                   preferred_element_type=jnp.float32)
    e3 = epilogue(tap_reduce(big3, TAPS3, len(TAPS1) + len(TAPS2)), 2)

    # conv4: 1x1 over concat(e1, e2, e3) as ONE matmul; the concat is along
    # sublanes at multiples of 8, i.e. pure vreg stacking.
    cat = jnp.concatenate([e1.astype(MATMUL_DTYPE),
                           e2.astype(MATMUL_DTYPE),
                           e3.astype(MATMUL_DTYPE)], axis=0)   # (3*cout, lanes)
    acc4 = jnp.dot(w4_ref[...].astype(MATMUL_DTYPE), cat,
                   preferred_element_type=jnp.float32)
    e4 = epilogue(acc4, 3)

    o_ref[0] = e4.astype(o_ref.dtype)                    # full-lane (cout, lanes) store


# ----------------------------------------------------------------------------
# Wrapper: layout / parameter packing (plain JAX, runs once per call)
# ----------------------------------------------------------------------------
def _stack_conv_w(w_oihw):
    # OIHW (Cout, Cin, kh, kw) -> (kh*kw*Cout, Cin): per-tap (Cout, Cin) blocks
    # stacked along output rows so each conv is a single matmul.
    cout, cin, kh, kw = w_oihw.shape
    return jnp.transpose(w_oihw, (2, 3, 0, 1)).reshape(kh * kw * cout, cin)


def _epi_pack(bias, bn):
    gamma, beta, mean, var = bn
    scale = gamma / jnp.sqrt(var + BN_EPS)
    shift = beta - mean * scale
    return jnp.stack([bias, scale, shift], axis=1)       # (Cout, 3)


def _border_masks(H, W):
    hh = jnp.arange(H)[:, None]
    ww = jnp.arange(W)[None, :]
    rows = []
    for (_, dy, dx) in ALL_TAPS:
        m = ((hh + dy >= 0) & (hh + dy < H) & (ww + dx >= 0) & (ww + dx < W))
        rows.append(m.reshape(H * W))
    return jnp.stack(rows, axis=0)                       # (22, H*W) bool


def pixel_shuffle_nchw(x, r):
    N, C, H, W = x.shape
    x = x.reshape(N, C // (r * r), r, r, H, W)
    x = jnp.transpose(x, (0, 1, 4, 2, 5, 3))
    return x.reshape(N, C // (r * r), H * r, W * r)


def upblock_forward(params, x_nchw, skip_nchw, *, num_grid_groups=2):
    # dropout1 / dropout2 / dropout3: identity (inference semantics).
    upA = pixel_shuffle_nchw(x_nchw, 2)                  # (N, Cin_up, H, W)
    N, Cin_up, H, W = upA.shape
    Cin_skip = skip_nchw.shape[1]
    HW = H * W
    Cout = params['conv1_w'].shape[0]

    # Batch-into-lanes fold: G grid groups (>=2 keeps both v7x TCs busy),
    # n_per images per group laid out contiguously along lanes.
    G = max(1, math.gcd(N, num_grid_groups))
    n_per = N // G
    lanes = n_per * HW

    def fold(a_nchw):                                    # (N,C,H,W) -> (G,C,lanes)
        C = a_nchw.shape[1]
        a = a_nchw.reshape(G, n_per, C, HW)
        a = jnp.transpose(a, (0, 2, 1, 3))
        return a.reshape(G, C, lanes)

    xa = fold(upA).astype(MATMUL_DTYPE)                  # (G, Cin_up,   lanes)
    xb = fold(skip_nchw).astype(MATMUL_DTYPE)            # (G, Cin_skip, lanes)

    w1 = _stack_conv_w(params['conv1_w']).astype(MATMUL_DTYPE)   # (9*Cout, Cin1)
    w1a = w1[:, :Cin_up]                                         # upA channels
    w1b = w1[:, Cin_up:]                                         # skip channels
    w2 = _stack_conv_w(params['conv2_w']).astype(MATMUL_DTYPE)   # (9*Cout, Cout)
    w3 = _stack_conv_w(params['conv3_w']).astype(MATMUL_DTYPE)   # (4*Cout, Cout)
    w4 = params['conv4_w'][:, :, 0, 0].astype(MATMUL_DTYPE)      # (Cout, 3*Cout)

    epi = jnp.concatenate(
        [_epi_pack(params['conv1_b'], params['bn1']),
         _epi_pack(params['conv2_b'], params['bn2']),
         _epi_pack(params['conv3_b'], params['bn3']),
         _epi_pack(params['conv4_b'], params['bn4'])],
        axis=1).astype(jnp.float32)                              # (Cout, 12)

    # Per-image masks tiled across the n_per images of a group; 0/1 exact in bf16.
    masks = jnp.tile(_border_masks(H, W), (1, n_per)).astype(jnp.bfloat16)  # (22, lanes)

    kern = functools.partial(_upblock_kernel, W=W, lanes=lanes, cout=Cout)
    out_fold = pl.pallas_call(
        kern,
        out_shape=jax.ShapeDtypeStruct((G, Cout, lanes), jnp.float32),
        grid=(G,),
        in_specs=[
            pl.BlockSpec((1, Cin_up, lanes), lambda g: (g, 0, 0)),
            pl.BlockSpec((1, Cin_skip, lanes), lambda g: (g, 0, 0)),
            pl.BlockSpec(w1a.shape, lambda g: (0, 0)),
            pl.BlockSpec(w1b.shape, lambda g: (0, 0)),
            pl.BlockSpec(w2.shape, lambda g: (0, 0)),
            pl.BlockSpec(w3.shape, lambda g: (0, 0)),
            pl.BlockSpec(w4.shape, lambda g: (0, 0)),
            pl.BlockSpec(epi.shape, lambda g: (0, 0)),
            pl.BlockSpec(masks.shape, lambda g: (0, 0)),
        ],
        out_specs=pl.BlockSpec((1, Cout, lanes), lambda g: (g, 0, 0)),
        compiler_params=pltpu.CompilerParams(
            dimension_semantics=("parallel",)),
    )(xa, xb, w1a, w1b, w2, w3, w4, epi, masks)

    # (G, Cout, n_per*HW) -> (N, Cout, H, W); free reshape when n_per == 1.
    out = out_fold.reshape(G, Cout, n_per, H, W)
    out = jnp.transpose(out, (0, 2, 1, 3, 4))
    return out.reshape(N, Cout, H, W)


# ----------------------------------------------------------------------------
# Parameters
# ----------------------------------------------------------------------------
def init_params(key, in_filters, out_filters):
    cin1 = in_filters // 4 + 2 * out_filters
    ks = jax.random.split(key, 12)

    def w(k, shape, scale=0.1):
        return jax.random.normal(k, shape, jnp.float32) * scale

    def bn(k):
        k1, k2, k3, k4 = jax.random.split(k, 4)
        gamma = 0.8 + 0.4 * jax.random.uniform(k1, (out_filters,), jnp.float32)
        beta = 0.1 * jax.random.normal(k2, (out_filters,), jnp.float32)
        mean = 0.1 * jax.random.normal(k3, (out_filters,), jnp.float32)
        var = 0.5 + jax.random.uniform(k4, (out_filters,), jnp.float32)
        return (gamma, beta, mean, var)

    return {
        'conv1_w': w(ks[0], (out_filters, cin1, 3, 3)),
        'conv1_b': w(ks[1], (out_filters,)),
        'conv2_w': w(ks[2], (out_filters, out_filters, 3, 3)),
        'conv2_b': w(ks[3], (out_filters,)),
        'conv3_w': w(ks[4], (out_filters, out_filters, 2, 2)),
        'conv3_b': w(ks[5], (out_filters,)),
        'conv4_w': w(ks[6], (out_filters, 3 * out_filters, 1, 1)),
        'conv4_b': w(ks[7], (out_filters,)),
        'bn1': bn(ks[8]),
        'bn2': bn(ks[9]),
        'bn3': bn(ks[10]),
        'bn4': bn(ks[11]),
    }


# ----------------------------------------------------------------------------
# Pure-JAX reference (lax.conv, NCHW) for a numerical cross-check
# ----------------------------------------------------------------------------
def _ref_conv_bn_act(x_nchw, w_oihw, b, bn, dil, pad):
    gamma, beta, mean, var = bn
    out = lax.conv_general_dilated(
        x_nchw, w_oihw, window_strides=(1, 1),
        padding=((pad, pad), (pad, pad)), rhs_dilation=(dil, dil),
        dimension_numbers=('NCHW', 'OIHW', 'NCHW'))
    out = out + b[None, :, None, None]
    out = jnp.where(out >= 0, out, NEG_SLOPE * out)
    scale = gamma / jnp.sqrt(var + BN_EPS)
    shift = beta - mean * scale
    return out * scale[None, :, None, None] + shift[None, :, None, None]


def upblock_reference(params, x_nchw, skip_nchw):
    upA = pixel_shuffle_nchw(x_nchw, 2)
    upB = jnp.concatenate([upA, skip_nchw], axis=1)
    e1 = _ref_conv_bn_act(upB, params['conv1_w'], params['conv1_b'], params['bn1'], 1, 1)
    e2 = _ref_conv_bn_act(e1, params['conv2_w'], params['conv2_b'], params['bn2'], 2, 2)
    e3 = _ref_conv_bn_act(e2, params['conv3_w'], params['conv3_b'], params['bn3'], 2, 1)
    cat = jnp.concatenate([e1, e2, e3], axis=1)
    return _ref_conv_bn_act(cat, params['conv4_w'], params['conv4_b'], params['bn4'], 1, 0)


if __name__ == "__main__":
    key = jax.random.PRNGKey(0)
    in_filters, out_filters = 16, 8
    N, H, W = 2, 16, 16

    kx, ksk, kp = jax.random.split(key, 3)
    x = jax.random.normal(kx, (N, in_filters, H, W), jnp.float32)
    skip = jax.random.normal(ksk, (N, 2 * out_filters, 2 * H, 2 * W), jnp.float32)
    params = init_params(kp, in_filters, out_filters)

    # N=2: one image per grid step (maps one image per TensorCore on v7x).
    out = jax.block_until_ready(upblock_forward(params, x, skip))
    assert out.shape == (N, out_filters, 2 * H, 2 * W), out.shape
    ref = upblock_reference(params, x, skip)
    err = float(jnp.max(jnp.abs(out - ref)))
    assert jnp.allclose(out, ref, rtol=2e-3, atol=2e-3), f"max abs err {err}"

    # N=4: exercises the batch-into-lanes fold (2 images per grid step).
    kx2, ksk2 = jax.random.split(jax.random.PRNGKey(1), 2)
    x2 = jax.random.normal(kx2, (4, in_filters, H, W), jnp.float32)
    skip2 = jax.random.normal(ksk2, (4, 2 * out_filters, 2 * H, 2 * W), jnp.float32)
    out2 = jax.block_until_ready(upblock_forward(params, x2, skip2))
    ref2 = upblock_reference(params, x2, skip2)
    err2 = float(jnp.max(jnp.abs(out2 - ref2)))
    assert jnp.allclose(out2, ref2, rtol=2e-3, atol=2e-3), f"max abs err {err2}"

    print("KERNEL_OK")
</pallas_src>

<mosaic_0001>
module attributes {stable_mosaic.version = 11 : i64} {
  func.func @_upblock_kernel(%arg0: i32, %arg1: memref<1x4x1024xf32, #tpu.memory_space<vmem>>, %arg2: memref<1x16x1024xf32, #tpu.memory_space<vmem>>, %arg3: memref<72x4xf32, #tpu.memory_space<vmem>>, %arg4: memref<72x16xf32, #tpu.memory_space<vmem>>, %arg5: memref<72x8xf32, #tpu.memory_space<vmem>>, %arg6: memref<32x8xf32, #tpu.memory_space<vmem>>, %arg7: memref<8x24xf32, #tpu.memory_space<vmem>>, %arg8: memref<8x12xf32, #tpu.memory_space<vmem>>, %arg9: memref<22x1024xbf16, #tpu.memory_space<vmem>>, %arg10: memref<1x8x1024xf32, #tpu.memory_space<vmem>>) attributes {dimension_semantics = [#tpu.dimension_semantics<parallel>], iteration_bounds = array<i64: 2>, scalar_prefetch = 0 : i64, scratch_operands = 0 : i64, tpu.core_type = #tpu.core_type<tc>, window_params = [{transform_indices = @transform_0, window_bounds = array<i64: 1, 4, 1024>}, {transform_indices = @transform_1, window_bounds = array<i64: 1, 16, 1024>}, {pipeline_mode = #tpu.pipeline_mode<synchronous>, transform_indices = @transform_2, window_bounds = array<i64: 72, 4>}, {pipeline_mode = #tpu.pipeline_mode<synchronous>, transform_indices = @transform_3, window_bounds = array<i64: 72, 16>}, {pipeline_mode = #tpu.pipeline_mode<synchronous>, transform_indices = @transform_4, window_bounds = array<i64: 72, 8>}, {pipeline_mode = #tpu.pipeline_mode<synchronous>, transform_indices = @transform_5, window_bounds = array<i64: 32, 8>}, {pipeline_mode = #tpu.pipeline_mode<synchronous>, transform_indices = @transform_6, window_bounds = array<i64: 8, 24>}, {pipeline_mode = #tpu.pipeline_mode<synchronous>, transform_indices = @transform_7, window_bounds = array<i64: 8, 12>}, {pipeline_mode = #tpu.pipeline_mode<synchronous>, transform_indices = @transform_8, window_bounds = array<i64: 22, 1024>}, {transform_indices = @transform_9, window_bounds = array<i64: 1, 8, 1024>}]} {
    %c0 = arith.constant 0 : index
    %c0_0 = arith.constant 0 : index
    %c0_1 = arith.constant 0 : index
    %0 = vector.load %arg1[%c0, %c0_0, %c0_1] : memref<1x4x1024xf32, #tpu.memory_space<vmem>>, vector<1x4x1024xf32>
    %1 = vector.shape_cast %0 : vector<1x4x1024xf32> to vector<4x1024xf32>
    %c0_2 = arith.constant 0 : index
    %c0_3 = arith.constant 0 : index
    %c0_4 = arith.constant 0 : index
    %2 = vector.load %arg2[%c0_2, %c0_3, %c0_4] : memref<1x16x1024xf32, #tpu.memory_space<vmem>>, vector<1x16x1024xf32>
    %3 = vector.shape_cast %2 : vector<1x16x1024xf32> to vector<16x1024xf32>
    %c0_5 = arith.constant 0 : index
    %c0_6 = arith.constant 0 : index
    %4 = vector.load %arg3[%c0_5, %c0_6] : memref<72x4xf32, #tpu.memory_space<vmem>>, vector<72x4xf32>
    %cst = arith.constant dense<0.000000e+00> : vector<72x1024xf32>
    %5 = tpu.matmul %4, %1, %cst {dimension_numbers = #tpu.dot_dimension_numbers<[1], [0], [0], [1], [0, 0, 1, 1], [], []>} : vector<72x4xf32>, vector<4x1024xf32>, vector<72x1024xf32> -> vector<72x1024xf32>
    %c0_7 = arith.constant 0 : index
    %c0_8 = arith.constant 0 : index
    %6 = vector.load %arg4[%c0_7, %c0_8] : memref<72x16xf32, #tpu.memory_space<vmem>>, vector<72x16xf32>
    %cst_9 = arith.constant dense<0.000000e+00> : vector<72x1024xf32>
    %7 = tpu.matmul %6, %3, %cst_9 {dimension_numbers = #tpu.dot_dimension_numbers<[1], [0], [0], [1], [0, 0, 1, 1], [], []>} : vector<72x16xf32>, vector<16x1024xf32>, vector<72x1024xf32> -> vector<72x1024xf32>
    %8 = arith.addf %5, %7 : vector<72x1024xf32>
    %9 = vector.extract_strided_slice %8 {offsets = [0, 0], sizes = [8, 1024], strides = [1, 1]} : vector<72x1024xf32> to vector<8x1024xf32>
    %c33_i32 = arith.constant 33 : i32
    %10 = tpu.dynamic_rotate %9 by %c33_i32 dim 1 : vector<8x1024xf32>, i32 -> vector<8x1024xf32>
    %c0_10 = arith.constant 0 : index
    %c0_11 = arith.constant 0 : index
    %11 = vector.load %arg9[%c0_10, %c0_11] : memref<22x1024xbf16, #tpu.memory_space<vmem>>, vector<1x1024xbf16>
    %12 = arith.extf %11 : vector<1x1024xbf16> to vector<1x1024xf32>
    %13 = vector.broadcast %12 : vector<1x1024xf32> to vector<8x1024xf32>
    %14 = arith.mulf %10, %13 : vector<8x1024xf32>
    %15 = vector.extract_strided_slice %8 {offsets = [8, 0], sizes = [8, 1024], strides = [1, 1]} : vector<72x1024xf32> to vector<8x1024xf32>
    %c32_i32 = arith.constant 32 : i32
    %16 = tpu.dynamic_rotate %15 by %c32_i32 dim 1 : vector<8x1024xf32>, i32 -> vector<8x1024xf32>
    %c1 = arith.constant 1 : index
    %c0_12 = arith.constant 0 : index
    %17 = vector.load %arg9[%c1, %c0_12] : memref<22x1024xbf16, #tpu.memory_space<vmem>>, vector<1x1024xbf16>
    %18 = arith.extf %17 : vector<1x1024xbf16> to vector<1x1024xf32>
    %19 = vector.broadcast %18 : vector<1x1024xf32> to vector<8x1024xf32>
    %20 = arith.mulf %16, %19 : vector<8x1024xf32>
    %21 = arith.addf %14, %20 : vector<8x1024xf32>
    %22 = vector.extract_strided_slice %8 {offsets = [16, 0], sizes = [8, 1024], strides = [1, 1]} : vector<72x1024xf32> to vector<8x1024xf32>
    %c31_i32 = arith.constant 31 : i32
    %23 = tpu.dynamic_rotate %22 by %c31_i32 dim 1 : vector<8x1024xf32>, i32 -> vector<8x1024xf32>
    %c2 = arith.constant 2 : index
    %c0_13 = arith.constant 0 : index
    %24 = vector.load %arg9[%c2, %c0_13] : memref<22x1024xbf16, #tpu.memory_space<vmem>>, vector<1x1024xbf16>
    %25 = arith.extf %24 : vector<1x1024xbf16> to vector<1x1024xf32>
    %26 = vector.broadcast %25 : vector<1x1024xf32> to vector<8x1024xf32>
    %27 = arith.mulf %23, %26 : vector<8x1024xf32>
    %28 = arith.addf %21, %27 : vector<8x1024xf32>
    %29 = vector.extract_strided_slice %8 {offsets = [24, 0], sizes = [8, 1024], strides = [1, 1]} : vector<72x1024xf32> to vector<8x1024xf32>
    %c1_i32 = arith.constant 1 : i32
    %30 = tpu.dynamic_rotate %29 by %c1_i32 dim 1 : vector<8x1024xf32>, i32 -> vector<8x1024xf32>
    %c3 = arith.constant 3 : index
    %c0_14 = arith.constant 0 : index
    %31 = vector.load %arg9[%c3, %c0_14] : memref<22x1024xbf16, #tpu.memory_space<vmem>>, vector<1x1024xbf16>
    %32 = arith.extf %31 : vector<1x1024xbf16> to vector<1x1024xf32>
    %33 = vector.broadcast %32 : vector<1x1024xf32> to vector<8x1024xf32>
    %34 = arith.mulf %30, %33 : vector<8x1024xf32>
    %35 = arith.addf %28, %34 : vector<8x1024xf32>
    %36 = vector.extract_strided_slice %8 {offsets = [32, 0], sizes = [8, 1024], strides = [1, 1]} : vector<72x1024xf32> to vector<8x1024xf32>
    %37 = arith.addf %35, %36 : vector<8x1024xf32>
    %38 = vector.extract_strided_slice %8 {offsets = [40, 0], sizes = [8, 1024], strides = [1, 1]} : vector<72x1024xf32> to vector<8x1024xf32>
    %c1023_i32 = arith.constant 1023 : i32
    %39 = tpu.dynamic_rotate %38 by %c1023_i32 dim 1 : vector<8x1024xf32>, i32 -> vector<8x1024xf32>
    %c5 = arith.constant 5 : index
    %c0_15 = arith.constant 0 : index
    %40 = vector.load %arg9[%c5, %c0_15] : memref<22x1024xbf16, #tpu.memory_space<vmem>>, vector<1x1024xbf16>
    %41 = arith.extf %40 : vector<1x1024xbf16> to vector<1x1024xf32>
    %42 = vector.broadcast %41 : vector<1x1024xf32> to vector<8x1024xf32>
    %43 = arith.mulf %39, %42 : vector<8x1024xf32>
    %44 = arith.addf %37, %43 : vector<8x1024xf32>
    %45 = vector.extract_strided_slice %8 {offsets = [48, 0], sizes = [8, 1024], strides = [1, 1]} : vector<72x1024xf32> to vector<8x1024xf32>
    %c993_i32 = arith.constant 993 : i32
    %46 = tpu.dynamic_rotate %45 by %c993_i32 dim 1 : vector<8x1024xf32>, i32 -> vector<8x1024xf32>
    %c6 = arith.constant 6 : index
    %c0_16 = arith.constant 0 : index
    %47 = vector.load %arg9[%c6, %c0_16] : memref<22x1024xbf16, #tpu.memory_space<vmem>>, vector<1x1024xbf16>
    %48 = arith.extf %47 : vector<1x1024xbf16> to vector<1x1024xf32>
    %49 = vector.broadcast %48 : vector<1x1024xf32> to vector<8x1024xf32>
    %50 = arith.mulf %46, %49 : vector<8x1024xf32>
    %51 = arith.addf %44, %50 : vector<8x1024xf32>
    %52 = vector.extract_strided_slice %8 {offsets = [56, 0], sizes = [8, 1024], strides = [1, 1]} : vector<72x1024xf32> to vector<8x1024xf32>
    %c992_i32 = arith.constant 992 : i32
    %53 = tpu.dynamic_rotate %52 by %c992_i32 dim 1 : vector<8x1024xf32>, i32 -> vector<8x1024xf32>
    %c7 = arith.constant 7 : index
    %c0_17 = arith.constant 0 : index
    %54 = vector.load %arg9[%c7, %c0_17] : memref<22x1024xbf16, #tpu.memory_space<vmem>>, vector<1x1024xbf16>
    %55 = arith.extf %54 : vector<1x1024xbf16> to vector<1x1024xf32>
    %56 = vector.broadcast %55 : vector<1x1024xf32> to vector<8x1024xf32>
    %57 = arith.mulf %53, %56 : vector<8x1024xf32>
    %58 = arith.addf %51, %57 : vector<8x1024xf32>
    %59 = vector.extract_strided_slice %8 {offsets = [64, 0], sizes = [8, 1024], strides = [1, 1]} : vector<72x1024xf32> to vector<8x1024xf32>
    %c991_i32 = arith.constant 991 : i32
    %60 = tpu.dynamic_rotate %59 by %c991_i32 dim 1 : vector<8x1024xf32>, i32 -> vector<8x1024xf32>
    %c8 = arith.constant 8 : index
    %c0_18 = arith.constant 0 : index
    %61 = vector.load %arg9[%c8, %c0_18] : memref<22x1024xbf16, #tpu.memory_space<vmem>>, vector<1x1024xbf16>
    %62 = arith.extf %61 : vector<1x1024xbf16> to vector<1x1024xf32>
    %63 = vector.broadcast %62 : vector<1x1024xf32> to vector<8x1024xf32>
    %64 = arith.mulf %60, %63 : vector<8x1024xf32>
    %65 = arith.addf %58, %64 : vector<8x1024xf32>
    %c0_19 = arith.constant 0 : index
    %c0_20 = arith.constant 0 : index
    %66 = vector.load %arg8[%c0_19, %c0_20] : memref<8x12xf32, #tpu.memory_space<vmem>>, vector<8x1xf32>
    %c0_21 = arith.constant 0 : index
    %c1_22 = arith.constant 1 : index
    %67 = vector.load %arg8[%c0_21, %c1_22] : memref<8x12xf32, #tpu.memory_space<vmem>>, vector<8x1xf32>
    %c0_23 = arith.constant 0 : index
    %c2_24 = arith.constant 2 : index
    %68 = vector.load %arg8[%c0_23, %c2_24] : memref<8x12xf32, #tpu.memory_space<vmem>>, vector<8x1xf32>
    %69 = vector.broadcast %66 : vector<8x1xf32> to vector<8x1024xf32>
    %70 = arith.addf %65, %69 : vector<8x1024xf32>
    %cst_25 = arith.constant 0.000000e+00 : f32
    %71 = vector.broadcast %cst_25 : f32 to vector<8x1024xf32>
    %72 = arith.cmpf oge, %70, %71 : vector<8x1024xf32>
    %cst_26 = arith.constant 0.00999999977 : f32
    %73 = vector.broadcast %cst_26 : f32 to vector<8x1024xf32>
    %74 = arith.mulf %73, %70 : vector<8x1024xf32>
    %75 = arith.select %72, %70, %74 : vector<8x1024xi1>, vector<8x1024xf32>
    %76 = vector.broadcast %67 : vector<8x1xf32> to vector<8x1024xf32>
    %77 = arith.mulf %75, %76 : vector<8x1024xf32>
    %78 = vector.broadcast %68 : vector<8x1xf32> to vector<8x1024xf32>
    %79 = arith.addf %77, %78 : vector<8x1024xf32>
    %c0_27 = arith.constant 0 : index
    %c0_28 = arith.constant 0 : index
    %80 = vector.load %arg5[%c0_27, %c0_28] : memref<72x8xf32, #tpu.memory_space<vmem>>, vector<72x8xf32>
    %cst_29 = arith.constant dense<0.000000e+00> : vector<72x1024xf32>
    %81 = tpu.matmul %80, %79, %cst_29 {dimension_numbers = #tpu.dot_dimension_numbers<[1], [0], [0], [1], [0, 0, 1, 1], [], []>} : vector<72x8xf32>, vector<8x1024xf32>, vector<72x1024xf32> -> vector<72x1024xf32>
    %82 = vector.extract_strided_slice %81 {offsets = [0, 0], sizes = [8, 1024], strides = [1, 1]} : vector<72x1024xf32> to vector<8x1024xf32>
    %c66_i32 = arith.constant 66 : i32
    %83 = tpu.dynamic_rotate %82 by %c66_i32 dim 1 : vector<8x1024xf32>, i32 -> vector<8x1024xf32>
    %c9 = arith.constant 9 : index
    %c0_30 = arith.constant 0 : index
    %84 = vector.load %arg9[%c9, %c0_30] : memref<22x1024xbf16, #tpu.memory_space<vmem>>, vector<1x1024xbf16>
    %85 = arith.extf %84 : vector<1x1024xbf16> to vector<1x1024xf32>
    %86 = vector.broadcast %85 : vector<1x1024xf32> to vector<8x1024xf32>
    %87 = arith.mulf %83, %86 : vector<8x1024xf32>
    %88 = vector.extract_strided_slice %81 {offsets = [8, 0], sizes = [8, 1024], strides = [1, 1]} : vector<72x1024xf32> to vector<8x1024xf32>
    %c64_i32 = arith.constant 64 : i32
    %89 = tpu.dynamic_rotate %88 by %c64_i32 dim 1 : vector<8x1024xf32>, i32 -> vector<8x1024xf32>
    %c10 = arith.constant 10 : index
    %c0_31 = arith.constant 0 : index
    %90 = vector.load %arg9[%c10, %c0_31] : memref<22x1024xbf16, #tpu.memory_space<vmem>>, vector<1x1024xbf16>
    %91 = arith.extf %90 : vector<1x1024xbf16> to vector<1x1024xf32>
    %92 = vector.broadcast %91 : vector<1x1024xf32> to vector<8x1024xf32>
    %93 = arith.mulf %89, %92 : vector<8x1024xf32>
    %94 = arith.addf %87, %93 : vector<8x1024xf32>
    %95 = vector.extract_strided_slice %81 {offsets = [16, 0], sizes = [8, 1024], strides = [1, 1]} : vector<72x1024xf32> to vector<8x1024xf32>
    %c62_i32 = arith.constant 62 : i32
    %96 = tpu.dynamic_rotate %95 by %c62_i32 dim 1 : vector<8x1024xf32>, i32 -> vector<8x1024xf32>
    %c11 = arith.constant 11 : index
    %c0_32 = arith.constant 0 : index
    %97 = vector.load %arg9[%c11, %c0_32] : memref<22x1024xbf16, #tpu.memory_space<vmem>>, vector<1x1024xbf16>
    %98 = arith.extf %97 : vector<1x1024xbf16> to vector<1x1024xf32>
    %99 = vector.broadcast %98 : vector<1x1024xf32> to vector<8x1024xf32>
    %100 = arith.mulf %96, %99 : vector<8x1024xf32>
    %101 = arith.addf %94, %100 : vector<8x1024xf32>
    %102 = vector.extract_strided_slice %81 {offsets = [24, 0], sizes = [8, 1024], strides = [1, 1]} : vector<72x1024xf32> to vector<8x1024xf32>
    %c2_i32 = arith.constant 2 : i32
    %103 = tpu.dynamic_rotate %102 by %c2_i32 dim 1 : vector<8x1024xf32>, i32 -> vector<8x1024xf32>
    %c12 = arith.constant 12 : index
    %c0_33 = arith.constant 0 : index
    %104 = vector.load %arg9[%c12, %c0_33] : memref<22x1024xbf16, #tpu.memory_space<vmem>>, vector<1x1024xbf16>
    %105 = arith.extf %104 : vector<1x1024xbf16> to vector<1x1024xf32>
    %106 = vector.broadcast %105 : vector<1x1024xf32> to vector<8x1024xf32>
    %107 = arith.mulf %103, %106 : vector<8x1024xf32>
    %108 = arith.addf %101, %107 : vector<8x1024xf32>
    %109 = vector.extract_strided_slice %81 {offsets = [32, 0], sizes = [8, 1024], strides = [1, 1]} : vector<72x1024xf32> to vector<8x1024xf32>
    %110 = arith.addf %108, %109 : vector<8x1024xf32>
    %111 = vector.extract_strided_slice %81 {offsets = [40, 0], sizes = [8, 1024], strides = [1, 1]} : vector<72x1024xf32> to vector<8x1024xf32>
    %c1022_i32 = arith.constant 1022 : i32
    %112 = tpu.dynamic_rotate %111 by %c1022_i32 dim 1 : vector<8x1024xf32>, i32 -> vector<8x1024xf32>
    %c14 = arith.constant 14 : index
    %c0_34 = arith.constant 0 : index
    %113 = vector.load %arg9[%c14, %c0_34] : memref<22x1024xbf16, #tpu.memory_space<vmem>>, vector<1x1024xbf16>
    %114 = arith.extf %113 : vector<1x1024xbf16> to vector<1x1024xf32>
    %115 = vector.broadcast %114 : vector<1x1024xf32> to vector<8x1024xf32>
    %116 = arith.mulf %112, %115 : vector<8x1024xf32>
    %117 = arith.addf %110, %116 : vector<8x1024xf32>
    %118 = vector.extract_strided_slice %81 {offsets = [48, 0], sizes = [8, 1024], strides = [1, 1]} : vector<72x1024xf32> to vector<8x1024xf32>
    %c962_i32 = arith.constant 962 : i32
    %119 = tpu.dynamic_rotate %118 by %c962_i32 dim 1 : vector<8x1024xf32>, i32 -> vector<8x1024xf32>
    %c15 = arith.constant 15 : index
    %c0_35 = arith.constant 0 : index
    %120 = vector.load %arg9[%c15, %c0_35] : memref<22x1024xbf16, #tpu.memory_space<vmem>>, vector<1x1024xbf16>
    %121 = arith.extf %120 : vector<1x1024xbf16> to vector<1x1024xf32>
    %122 = vector.broadcast %121 : vector<1x1024xf32> to vector<8x1024xf32>
    %123 = arith.mulf %119, %122 : vector<8x1024xf32>
    %124 = arith.addf %117, %123 : vector<8x1024xf32>
    %125 = vector.extract_strided_slice %81 {offsets = [56, 0], sizes = [8, 1024], strides = [1, 1]} : vector<72x1024xf32> to vector<8x1024xf32>
    %c960_i32 = arith.constant 960 : i32
    %126 = tpu.dynamic_rotate %125 by %c960_i32 dim 1 : vector<8x1024xf32>, i32 -> vector<8x1024xf32>
    %c16 = arith.constant 16 : index
    %c0_36 = arith.constant 0 : index
    %127 = vector.load %arg9[%c16, %c0_36] : memref<22x1024xbf16, #tpu.memory_space<vmem>>, vector<1x1024xbf16>
    %128 = arith.extf %127 : vector<1x1024xbf16> to vector<1x1024xf32>
    %129 = vector.broadcast %128 : vector<1x1024xf32> to vector<8x1024xf32>
    %130 = arith.mulf %126, %129 : vector<8x1024xf32>
    %131 = arith.addf %124, %130 : vector<8x1024xf32>
    %132 = vector.extract_strided_slice %81 {offsets = [64, 0], sizes = [8, 1024], strides = [1, 1]} : vector<72x1024xf32> to vector<8x1024xf32>
    %c958_i32 = arith.constant 958 : i32
    %133 = tpu.dynamic_rotate %132 by %c958_i32 dim 1 : vector<8x1024xf32>, i32 -> vector<8x1024xf32>
    %c17 = arith.constant 17 : index
    %c0_37 = arith.constant 0 : index
    %134 = vector.load %arg9[%c17, %c0_37] : memref<22x1024xbf16, #tpu.memory_space<vmem>>, vector<1x1024xbf16>
    %135 = arith.extf %134 : vector<1x1024xbf16> to vector<1x1024xf32>
    %136 = vector.broadcast %135 : vector<1x1024xf32> to vector<8x1024xf32>
    %137 = arith.mulf %133, %136 : vector<8x1024xf32>
    %138 = arith.addf %131, %137 : vector<8x1024xf32>
    %c0_38 = arith.constant 0 : index
    %c3_39 = arith.constant 3 : index
    %139 = vector.load %arg8[%c0_38, %c3_39] : memref<8x12xf32, #tpu.memory_space<vmem>>, vector<8x1xf32>
    %c0_40 = arith.constant 0 : index
    %c4 = arith.constant 4 : index
    %140 = vector.load %arg8[%c0_40, %c4] : memref<8x12xf32, #tpu.memory_space<vmem>>, vector<8x1xf32>
    %c0_41 = arith.constant 0 : index
    %c5_42 = arith.constant 5 : index
    %141 = vector.load %arg8[%c0_41, %c5_42] : memref<8x12xf32, #tpu.memory_space<vmem>>, vector<8x1xf32>
    %142 = vector.broadcast %139 : vector<8x1xf32> to vector<8x1024xf32>
    %143 = arith.addf %138, %142 : vector<8x1024xf32>
    %cst_43 = arith.constant 0.000000e+00 : f32
    %144 = vector.broadcast %cst_43 : f32 to vector<8x1024xf32>
    %145 = arith.cmpf oge, %143, %144 : vector<8x1024xf32>
    %cst_44 = arith.constant 0.00999999977 : f32
    %146 = vector.broadcast %cst_44 : f32 to vector<8x1024xf32>
    %147 = arith.mulf %146, %143 : vector<8x1024xf32>
    %148 = arith.select %145, %143, %147 : vector<8x1024xi1>, vector<8x1024xf32>
    %149 = vector.broadcast %140 : vector<8x1xf32> to vector<8x1024xf32>
    %150 = arith.mulf %148, %149 : vector<8x1024xf32>
    %151 = vector.broadcast %141 : vector<8x1xf32> to vector<8x1024xf32>
    %152 = arith.addf %150, %151 : vector<8x1024xf32>
    %c0_45 = arith.constant 0 : index
    %c0_46 = arith.constant 0 : index
    %153 = vector.load %arg6[%c0_45, %c0_46] : memref<32x8xf32, #tpu.memory_space<vmem>>, vector<32x8xf32>
    %cst_47 = arith.constant dense<0.000000e+00> : vector<32x1024xf32>
    %154 = tpu.matmul %153, %152, %cst_47 {dimension_numbers = #tpu.dot_dimension_numbers<[1], [0], [0], [1], [0, 0, 1, 1], [], []>} : vector<32x8xf32>, vector<8x1024xf32>, vector<32x1024xf32> -> vector<32x1024xf32>
    %155 = vector.extract_strided_slice %154 {offsets = [0, 0], sizes = [8, 1024], strides = [1, 1]} : vector<32x1024xf32> to vector<8x1024xf32>
    %c33_i32_48 = arith.constant 33 : i32
    %156 = tpu.dynamic_rotate %155 by %c33_i32_48 dim 1 : vector<8x1024xf32>, i32 -> vector<8x1024xf32>
    %c18 = arith.constant 18 : index
    %c0_49 = arith.constant 0 : index
    %157 = vector.load %arg9[%c18, %c0_49] : memref<22x1024xbf16, #tpu.memory_space<vmem>>, vector<1x1024xbf16>
    %158 = arith.extf %157 : vector<1x1024xbf16> to vector<1x1024xf32>
    %159 = vector.broadcast %158 : vector<1x1024xf32> to vector<8x1024xf32>
    %160 = arith.mulf %156, %159 : vector<8x1024xf32>
    %161 = vector.extract_strided_slice %154 {offsets = [8, 0], sizes = [8, 1024], strides = [1, 1]} : vector<32x1024xf32> to vector<8x1024xf32>
    %c31_i32_50 = arith.constant 31 : i32
    %162 = tpu.dynamic_rotate %161 by %c31_i32_50 dim 1 : vector<8x1024xf32>, i32 -> vector<8x1024xf32>
    %c19 = arith.constant 19 : index
    %c0_51 = arith.constant 0 : index
    %163 = vector.load %arg9[%c19, %c0_51] : memref<22x1024xbf16, #tpu.memory_space<vmem>>, vector<1x1024xbf16>
    %164 = arith.extf %163 : vector<1x1024xbf16> to vector<1x1024xf32>
    %165 = vector.broadcast %164 : vector<1x1024xf32> to vector<8x1024xf32>
    %166 = arith.mulf %162, %165 : vector<8x1024xf32>
    %167 = arith.addf %160, %166 : vector<8x1024xf32>
    %168 = vector.extract_strided_slice %154 {offsets = [16, 0], sizes = [8, 1024], strides = [1, 1]} : vector<32x1024xf32> to vector<8x1024xf32>
    %c993_i32_52 = arith.constant 993 : i32
    %169 = tpu.dynamic_rotate %168 by %c993_i32_52 dim 1 : vector<8x1024xf32>, i32 -> vector<8x1024xf32>
    %c20 = arith.constant 20 : index
    %c0_53 = arith.constant 0 : index
    %170 = vector.load %arg9[%c20, %c0_53] : memref<22x1024xbf16, #tpu.memory_space<vmem>>, vector<1x1024xbf16>
    %171 = arith.extf %170 : vector<1x1024xbf16> to vector<1x1024xf32>
    %172 = vector.broadcast %171 : vector<1x1024xf32> to vector<8x1024xf32>
    %173 = arith.mulf %169, %172 : vector<8x1024xf32>
    %174 = arith.addf %167, %173 : vector<8x1024xf32>
    %175 = vector.extract_strided_slice %154 {offsets = [24, 0], sizes = [8, 1024], strides = [1, 1]} : vector<32x1024xf32> to vector<8x1024xf32>
    %c991_i32_54 = arith.constant 991 : i32
    %176 = tpu.dynamic_rotate %175 by %c991_i32_54 dim 1 : vector<8x1024xf32>, i32 -> vector<8x1024xf32>
    %c21 = arith.constant 21 : index
    %c0_55 = arith.constant 0 : index
    %177 = vector.load %arg9[%c21, %c0_55] : memref<22x1024xbf16, #tpu.memory_space<vmem>>, vector<1x1024xbf16>
    %178 = arith.extf %177 : vector<1x1024xbf16> to vector<1x1024xf32>
    %179 = vector.broadcast %178 : vector<1x1024xf32> to vector<8x1024xf32>
    %180 = arith.mulf %176, %179 : vector<8x1024xf32>
    %181 = arith.addf %174, %180 : vector<8x1024xf32>
    %c0_56 = arith.constant 0 : index
    %c6_57 = arith.constant 6 : index
    %182 = vector.load %arg8[%c0_56, %c6_57] : memref<8x12xf32, #tpu.memory_space<vmem>>, vector<8x1xf32>
    %c0_58 = arith.constant 0 : index
    %c7_59 = arith.constant 7 : index
    %183 = vector.load %arg8[%c0_58, %c7_59] : memref<8x12xf32, #tpu.memory_space<vmem>>, vector<8x1xf32>
    %c0_60 = arith.constant 0 : index
    %c8_61 = arith.constant 8 : index
    %184 = vector.load %arg8[%c0_60, %c8_61] : memref<8x12xf32, #tpu.memory_space<vmem>>, vector<8x1xf32>
    %185 = vector.broadcast %182 : vector<8x1xf32> to vector<8x1024xf32>
    %186 = arith.addf %181, %185 : vector<8x1024xf32>
    %cst_62 = arith.constant 0.000000e+00 : f32
    %187 = vector.broadcast %cst_62 : f32 to vector<8x1024xf32>
    %188 = arith.cmpf oge, %186, %187 : vector<8x1024xf32>
    %cst_63 = arith.constant 0.00999999977 : f32
    %189 = vector.broadcast %cst_63 : f32 to vector<8x1024xf32>
    %190 = arith.mulf %189, %186 : vector<8x1024xf32>
    %191 = arith.select %188, %186, %190 : vector<8x1024xi1>, vector<8x1024xf32>
    %192 = vector.broadcast %183 : vector<8x1xf32> to vector<8x1024xf32>
    %193 = arith.mulf %191, %192 : vector<8x1024xf32>
    %194 = vector.broadcast %184 : vector<8x1xf32> to vector<8x1024xf32>
    %195 = arith.addf %193, %194 : vector<8x1024xf32>
    %196 = tpu.concatenate %79, %152, %195 in 0 : vector<8x1024xf32>, vector<8x1024xf32>, vector<8x1024xf32> -> vector<24x1024xf32>
    %c0_64 = arith.constant 0 : index
    %c0_65 = arith.constant 0 : index
    %197 = vector.load %arg7[%c0_64, %c0_65] : memref<8x24xf32, #tpu.memory_space<vmem>>, vector<8x24xf32>
    %cst_66 = arith.constant dense<0.000000e+00> : vector<8x1024xf32>
    %198 = tpu.matmul %197, %196, %cst_66 {dimension_numbers = #tpu.dot_dimension_numbers<[1], [0], [0], [1], [0, 0, 1, 1], [], []>} : vector<8x24xf32>, vector<24x1024xf32>, vector<8x1024xf32> -> vector<8x1024xf32>
    %c0_67 = arith.constant 0 : index
    %c9_68 = arith.constant 9 : index
    %199 = vector.load %arg8[%c0_67, %c9_68] : memref<8x12xf32, #tpu.memory_space<vmem>>, vector<8x1xf32>
    %c0_69 = arith.constant 0 : index
    %c10_70 = arith.constant 10 : index
    %200 = vector.load %arg8[%c0_69, %c10_70] : memref<8x12xf32, #tpu.memory_space<vmem>>, vector<8x1xf32>
    %c0_71 = arith.constant 0 : index
    %c11_72 = arith.constant 11 : index
    %201 = vector.load %arg8[%c0_71, %c11_72] : memref<8x12xf32, #tpu.memory_space<vmem>>, vector<8x1xf32>
    %202 = vector.broadcast %199 : vector<8x1xf32> to vector<8x1024xf32>
    %203 = arith.addf %198, %202 : vector<8x1024xf32>
    %cst_73 = arith.constant 0.000000e+00 : f32
    %204 = vector.broadcast %cst_73 : f32 to vector<8x1024xf32>
    %205 = arith.cmpf oge, %203, %204 : vector<8x1024xf32>
    %cst_74 = arith.constant 0.00999999977 : f32
    %206 = vector.broadcast %cst_74 : f32 to vector<8x1024xf32>
    %207 = arith.mulf %206, %203 : vector<8x1024xf32>
    %208 = arith.select %205, %203, %207 : vector<8x1024xi1>, vector<8x1024xf32>
    %209 = vector.broadcast %200 : vector<8x1xf32> to vector<8x1024xf32>
    %210 = arith.mulf %208, %209 : vector<8x1024xf32>
    %211 = vector.broadcast %201 : vector<8x1xf32> to vector<8x1024xf32>
    %212 = arith.addf %210, %211 : vector<8x1024xf32>
    %c0_75 = arith.constant 0 : index
    %c0_76 = arith.constant 0 : index
    %c0_77 = arith.constant 0 : index
    %213 = vector.load %arg10[%c0_75, %c0_76, %c0_77] : memref<1x8x1024xf32, #tpu.memory_space<vmem>>, vector<1x8x1024xf32>
    %214 = vector.shape_cast %213 : vector<1x8x1024xf32> to vector<8x1024xf32>
    %215 = vector.shape_cast %212 : vector<8x1024xf32> to vector<1x8x1024xf32>
    tpu.vector_store %arg10[%c0_75, %c0_76, %c0_77], %215 {strides = array<i32>} : memref<1x8x1024xf32, #tpu.memory_space<vmem>>, vector<1x8x1024xf32>,
    return
  }
  func.func @transform_0(%arg0: i32) -> (i32, i32, i32) {
    %c0_i32 = arith.constant 0 : i32
    %c0_i32_0 = arith.constant 0 : i32
    %c0_i32_1 = arith.constant 0 : i32
    return %arg0, %c0_i32, %c0_i32_0 : i32, i32, i32
  }
  func.func @transform_1(%arg0: i32) -> (i32, i32, i32) {
    %c0_i32 = arith.constant 0 : i32
    %c0_i32_0 = arith.constant 0 : i32
    %c0_i32_1 = arith.constant 0 : i32
    return %arg0, %c0_i32, %c0_i32_0 : i32, i32, i32
  }
  func.func @transform_2(%arg0: i32) -> (i32, i32) {
    %c0_i32 = arith.constant 0 : i32
    %c0_i32_0 = arith.constant 0 : i32
    %c0_i32_1 = arith.constant 0 : i32
    return %c0_i32, %c0_i32_0 : i32, i32
  }
  func.func @transform_3(%arg0: i32) -> (i32, i32) {
    %c0_i32 = arith.constant 0 : i32
    %c0_i32_0 = arith.constant 0 : i32
    %c0_i32_1 = arith.constant 0 : i32
    return %c0_i32, %c0_i32_0 : i32, i32
  }
  func.func @transform_4(%arg0: i32) -> (i32, i32) {
    %c0_i32 = arith.constant 0 : i32
    %c0_i32_0 = arith.constant 0 : i32
    %c0_i32_1 = arith.constant 0 : i32
    return %c0_i32, %c0_i32_0 : i32, i32
  }
  func.func @transform_5(%arg0: i32) -> (i32, i32) {
    %c0_i32 = arith.constant 0 : i32
    %c0_i32_0 = arith.constant 0 : i32
    %c0_i32_1 = arith.constant 0 : i32
    return %c0_i32, %c0_i32_0 : i32, i32
  }
  func.func @transform_6(%arg0: i32) -> (i32, i32) {
    %c0_i32 = arith.constant 0 : i32
    %c0_i32_0 = arith.constant 0 : i32
    %c0_i32_1 = arith.constant 0 : i32
    return %c0_i32, %c0_i32_0 : i32, i32
  }
  func.func @transform_7(%arg0: i32) -> (i32, i32) {
    %c0_i32 = arith.constant 0 : i32
    %c0_i32_0 = arith.constant 0 : i32
    %c0_i32_1 = arith.constant 0 : i32
    return %c0_i32, %c0_i32_0 : i32, i32
  }
  func.func @transform_8(%arg0: i32) -> (i32, i32) {
    %c0_i32 = arith.constant 0 : i32
    %c0_i32_0 = arith.constant 0 : i32
    %c0_i32_1 = arith.constant 0 : i32
    return %c0_i32, %c0_i32_0 : i32, i32
  }
  func.func @transform_9(%arg0: i32) -> (i32, i32, i32) {
    %c0_i32 = arith.constant 0 : i32
    %c0_i32_0 = arith.constant 0 : i32
    %c0_i32_1 = arith.constant 0 : i32
    return %arg0, %c0_i32, %c0_i32_0 : i32, i32, i32
  }
}

</mosaic_0001>

<llo_original>
// kernel: tpu_custom_call.1
$region0: #{tpu_custom_call.1}
  #allocation0 [shape = 'u32[]', space=smem, size = 0x4, offset = 0x4, fixed_abs, tag = 'smem constant byte address 0x4 - core index']
  #allocation1 [shape = 'u32[144,128]{1,0:T(1,128)}', space=vmem, size = 0x12000, scoped, tag = 'internal scratch']
  %s0 = inlined_call_operand.hbm [shape: f32[2,4,1024], index: 0, kind: input, shape index: {}]
  %s1 = inlined_call_operand.vmem [shape: f32[2,16,1024], index: 1, kind: input, shape index: {}]
  %s2 = inlined_call_operand.vmem [shape: f32[72,4], index: 2, kind: input, shape index: {}]
  %s3 = inlined_call_operand.vmem [shape: f32[72,16], index: 3, kind: input, shape index: {}]
  %s4 = inlined_call_operand.vmem [shape: f32[72,8], index: 4, kind: input, shape index: {}]
  %s5 = inlined_call_operand.vmem [shape: f32[32,8], index: 5, kind: input, shape index: {}]
  %s6 = inlined_call_operand.vmem [shape: f32[8,24], index: 6, kind: input, shape index: {}]
  %s7 = inlined_call_operand.vmem [shape: f32[8,12], index: 7, kind: input, shape index: {}]
  %s8 = inlined_call_operand.hbm [shape: bf16[22,1024], index: 8, kind: input, shape index: {}]
  %s9 = inlined_call_operand.hbm [shape: f32[2,8,1024], index: 9, kind: output, shape index: {}]
  %s10 = sld [smem:[#allocation0]]
  $region77: #{tpu_custom_call.1} parent=0
    _
  %s12 = ssub.s32 1, %s10
  %s13 = scalar_select 0, %s12, %s10
  $region1: #{tpu_custom_call.1} parent=0
    #allocation2 [shape = 'u8[32768]{0}', space=vmem, size = 0x8000, scoped, tag = 'input window, operand 0']
    #allocation3 [shape = 's32[2]{0}', space=sflag, size = 0x8, scoped, tag = 'scoped memory for tpu_custom_call.1']
    #allocation4 [shape = 's32[2]{0}', space=sflag, size = 0x8, scoped, tag = 'scoped memory for tpu_custom_call.1']
    #allocation5 [shape = 'u8[49152]{0}', space=vmem, size = 0xc000, scoped, tag = 'input window, operand 8, single buffered']
    #allocation6 [shape = 's32[1]{0}', space=sflag, size = 0x4, scoped, tag = 'scoped memory for tpu_custom_call.1']
    #allocation7 [shape = 'u8[65536]{0}', space=vmem, size = 0x10000, scoped, tag = 'output window, operand 0']
    %14 = vsyncpa [#allocation3], 0
    %s15 = scalar_lea.sflag [#allocation3], 1
    %16 = vsyncpa %s15, 0
    %17 = vsyncpa [#allocation6], 0
    %18 = vsyncpa [#allocation4], 0
    %s19 = scalar_lea.sflag [#allocation4], 1
    %20 = vsyncpa %s19, 0
    loop: start=0, step=1, limit=4
    $region2: #{tpu_custom_call.1} parent=1 // loop_pre_header
      _
    $region3: #{tpu_custom_call.1} parent=1 // loop_header
      %s22 = sphi 0, %s26
      %p23 = scmp.ge.s32.totalorder %s22, 4
      %s32 = sphi 0, %s34
      %s35 = sphi 0, %s32
      %s36 = sphi 0, %s35
      %s52 = sphi 0, %s36
      %s58 = sphi 0, %s60
      %s61 = sphi 0, %s58
      %s62 = sphi 0, %s61
      %s78 = sphi 0, %s62
      %s82 = sphi 0, %s82
      %s84 = sphi 0, %s82
      %s85 = sphi 0, %s84
      %s99 = sphi 0, %s85
      %s103 = sphi 0, %s103
      %s105 = sphi 0, %s103
      %s106 = sphi 0, %s105
      %s120 = sphi 0, %s106
      %s124 = sphi 0, %s124
      %s126 = sphi 0, %s124
      %s127 = sphi 0, %s126
      %s141 = sphi 0, %s127
      %s145 = sphi 0, %s145
      %s147 = sphi 0, %s145
      %s148 = sphi 0, %s147
      %s162 = sphi 0, %s148
      %s166 = sphi 0, %s166
      %s168 = sphi 0, %s166
      %s169 = sphi 0, %s168
      %s183 = sphi 0, %s169
      %s187 = sphi 0, %s187
      %s189 = sphi 0, %s187
      %s190 = sphi 0, %s189
      %s204 = sphi 0, %s190
      %s208 = sphi 0, %s208
      %s210 = sphi 0, %s208
      %s211 = sphi 0, %s210
      %s225 = sphi 0, %s211
      %s231 = sphi 0, %s233
      %s234 = sphi 0, %s231
      %s235 = sphi 0, %s234
      %s251 = sphi 0, %s235
    $region4: #{tpu_custom_call.1} parent=1 // loop_header_branch
      %25 = sbr.rel (%p23) target = $region8
    $region5: #{tpu_custom_call.1} parent=1 // loop_body
      %s27 = ssub.s32 %s22, 1
      %s28 = ssub.s32 %s22, 2
      %s29 = sadd.s32 %s22, 1
      %s30 = ssub.s32 %s22, %s29
      %p31 = scmp.eq.s32.totalorder %s30, 0
      %s33 = sadd.s32 %s32, 1
      %s34 = scalar_select %p31, %s32, %s33
      %p37 = pneg %p31
      %p38 = scmp.eq.s32.totalorder %s22, 1
      %p39 = por %p37, %p38
      %p40 = scmp.ne.s32.totalorder %s32, %s35
      %p41 = scmp.eq.s32.totalorder %s22, 0
      %p42 = por %p40, %p41
      %p43 = scmp.ne.s32.totalorder %s32, %s35
      %p44 = scmp.eq.s32.totalorder %s27, 1
      %p45 = por %p43, %p44
      %p46 = scmp.ne.s32.totalorder %s35, %s36
      %p47 = scmp.eq.s32.totalorder %s27, 0
      %p48 = por %p46, %p47
      %p49 = scmp.ne.s32.totalorder %s35, %s36
      %p50 = scmp.eq.s32.totalorder %s28, 1
      %p51 = por %p49, %p50
      %p53 = scmp.ne.s32.totalorder %s36, %s52
      %p54 = scmp.eq.s32.totalorder %s28, 0
      %p55 = por %p53, %p54
      %s56 = ssub.s32 %s22, %s29
      %p57 = scmp.eq.s32.totalorder %s56, 0
      %s59 = sadd.s32 %s58, 1
      %s60 = scalar_select %p57, %s58, %s59
      %p63 = pneg %p57
      %p64 = scmp.eq.s32.totalorder %s22, 1
      %p65 = por %p63, %p64
      %p66 = scmp.ne.s32.totalorder %s58, %s61
      %p67 = scmp.eq.s32.totalorder %s22, 0
      %p68 = por %p66, %p67
      %p69 = scmp.ne.s32.totalorder %s58, %s61
      %p70 = scmp.eq.s32.totalorder %s27, 1
      %p71 = por %p69, %p70
      %p72 = scmp.ne.s32.totalorder %s61, %s62
      %p73 = scmp.eq.s32.totalorder %s27, 0
      %p74 = por %p72, %p73
      %p75 = scmp.ne.s32.totalorder %s61, %s62
      %p76 = scmp.eq.s32.totalorder %s28, 1
      %p77 = por %p75, %p76
      %p79 = scmp.ne.s32.totalorder %s62, %s78
      %p80 = scmp.eq.s32.totalorder %s28, 0
      %p81 = por %p79, %p80
      %s83 = sadd.s32 %s82, 1
      %p86 = scmp.eq.s32.totalorder %s22, 1
      %p87 = scmp.ne.s32.totalorder %s82, %s84
      %p88 = scmp.eq.s32.totalorder %s22, 0
      %p89 = por %p87, %p88
      %p90 = scmp.ne.s32.totalorder %s82, %s84
      %p91 = scmp.eq.s32.totalorder %s27, 1
      %p92 = por %p90, %p91
      %p93 = scmp.ne.s32.totalorder %s84, %s85
      %p94 = scmp.eq.s32.totalorder %s27, 0
      %p95 = por %p93, %p94
      %p96 = scmp.ne.s32.totalorder %s84, %s85
      %p97 = scmp.eq.s32.totalorder %s28, 1
      %p98 = por %p96, %p97
      %p100 = scmp.ne.s32.totalorder %s85, %s99
      %p101 = scmp.eq.s32.totalorder %s28, 0
      %p102 = por %p100, %p101
      %s104 = sadd.s32 %s103, 1
      %p107 = scmp.eq.s32.totalorder %s22, 1
      %p108 = scmp.ne.s32.totalorder %s103, %s105
      %p109 = scmp.eq.s32.totalorder %s22, 0
      %p110 = por %p108, %p109
      %p111 = scmp.ne.s32.totalorder %s103, %s105
      %p112 = scmp.eq.s32.totalorder %s27, 1
      %p113 = por %p111, %p112
      %p114 = scmp.ne.s32.totalorder %s105, %s106
      %p115 = scmp.eq.s32.totalorder %s27, 0
      %p116 = por %p114, %p115
      %p117 = scmp.ne.s32.totalorder %s105, %s106
      %p118 = scmp.eq.s32.totalorder %s28, 1
      %p119 = por %p117, %p118
      %p121 = scmp.ne.s32.totalorder %s106, %s120
      %p122 = scmp.eq.s32.totalorder %s28, 0
      %p123 = por %p121, %p122
      %s125 = sadd.s32 %s124, 1
      %p128 = scmp.eq.s32.totalorder %s22, 1
      %p129 = scmp.ne.s32.totalorder %s124, %s126
      %p130 = scmp.eq.s32.totalorder %s22, 0
      %p131 = por %p129, %p130
      %p132 = scmp.ne.s32.totalorder %s124, %s126
      %p133 = scmp.eq.s32.totalorder %s27, 1
      %p134 = por %p132, %p133
      %p135 = scmp.ne.s32.totalorder %s126, %s127
      %p136 = scmp.eq.s32.totalorder %s27, 0
      %p137 = por %p135, %p136
      %p138 = scmp.ne.s32.totalorder %s126, %s127
      %p139 = scmp.eq.s32.totalorder %s28, 1
      %p140 = por %p138, %p139
      %p142 = scmp.ne.s32.totalorder %s127, %s141
      %p143 = scmp.eq.s32.totalorder %s28, 0
      %p144 = por %p142, %p143
      %s146 = sadd.s32 %s145, 1
      %p149 = scmp.eq.s32.totalorder %s22, 1
      %p150 = scmp.ne.s32.totalorder %s145, %s147
      %p151 = scmp.eq.s32.totalorder %s22, 0
      %p152 = por %p150, %p151
      %p153 = scmp.ne.s32.totalorder %s145, %s147
      %p154 = scmp.eq.s32.totalorder %s27, 1
      %p155 = por %p153, %p154
      %p156 = scmp.ne.s32.totalorder %s147, %s148
      %p157 = scmp.eq.s32.totalorder %s27, 0
      %p158 = por %p156, %p157
      %p159 = scmp.ne.s32.totalorder %s147, %s148
      %p160 = scmp.eq.s32.totalorder %s28, 1
      %p161 = por %p159, %p160
      %p163 = scmp.ne.s32.totalorder %s148, %s162
      %p164 = scmp.eq.s32.totalorder %s28, 0
      %p165 = por %p163, %p164
      %s167 = sadd.s32 %s166, 1
      %p170 = scmp.eq.s32.totalorder %s22, 1
      %p171 = scmp.ne.s32.totalorder %s166, %s168
      %p172 = scmp.eq.s32.totalorder %s22, 0
      %p173 = por %p171, %p172
      %p174 = scmp.ne.s32.totalorder %s166, %s168
      %p175 = scmp.eq.s32.totalorder %s27, 1
      %p176 = por %p174, %p175
      %p177 = scmp.ne.s32.totalorder %s168, %s169
      %p178 = scmp.eq.s32.totalorder %s27, 0
      %p179 = por %p177, %p178
      %p180 = scmp.ne.s32.totalorder %s168, %s169
      %p181 = scmp.eq.s32.totalorder %s28, 1
      %p182 = por %p180, %p181
      %p184 = scmp.ne.s32.totalorder %s169, %s183
      %p185 = scmp.eq.s32.totalorder %s28, 0
      %p186 = por %p184, %p185
      %s188 = sadd.s32 %s187, 1
      %p191 = scmp.eq.s32.totalorder %s22, 1
      %p192 = scmp.ne.s32.totalorder %s187, %s189
      %p193 = scmp.eq.s32.totalorder %s22, 0
      %p194 = por %p192, %p193
      %p195 = scmp.ne.s32.totalorder %s187, %s189
      %p196 = scmp.eq.s32.totalorder %s27, 1
      %p197 = por %p195, %p196
      %p198 = scmp.ne.s32.totalorder %s189, %s190
      %p199 = scmp.eq.s32.totalorder %s27, 0
      %p200 = por %p198, %p199
      %p201 = scmp.ne.s32.totalorder %s189, %s190
      %p202 = scmp.eq.s32.totalorder %s28, 1
      %p203 = por %p201, %p202
      %p205 = scmp.ne.s32.totalorder %s190, %s204
      %p206 = scmp.eq.s32.totalorder %s28, 0
      %p207 = por %p205, %p206
      %s209 = sadd.s32 %s208, 1
      %p212 = scmp.eq.s32.totalorder %s22, 1
      %p213 = scmp.ne.s32.totalorder %s208, %s210
      %p214 = scmp.eq.s32.totalorder %s22, 0
      %p215 = por %p213, %p214
      %p216 = scmp.ne.s32.totalorder %s208, %s210
      %p217 = scmp.eq.s32.totalorder %s27, 1
      %p218 = por %p216, %p217
      %p219 = scmp.ne.s32.totalorder %s210, %s211
      %p220 = scmp.eq.s32.totalorder %s27, 0
      %p221 = por %p219, %p220
      %p222 = scmp.ne.s32.totalorder %s210, %s211
      %p223 = scmp.eq.s32.totalorder %s28, 1
      %p224 = por %p222, %p223
      %p226 = scmp.ne.s32.totalorder %s211, %s225
      %p227 = scmp.eq.s32.totalorder %s28, 0
      %p228 = por %p226, %p227
      %s229 = ssub.s32 %s22, %s29
      %p230 = scmp.eq.s32.totalorder %s229, 0
      %s232 = sadd.s32 %s231, 1
      %s233 = scalar_select %p230, %s231, %s232
      %p236 = pneg %p230
      %p237 = scmp.eq.s32.totalorder %s22, 1
      %p238 = por %p236, %p237
      %p239 = scmp.ne.s32.totalorder %s231, %s234
      %p240 = scmp.eq.s32.totalorder %s22, 0
      %p241 = por %p239, %p240
      %p242 = scmp.ne.s32.totalorder %s231, %s234
      %p243 = scmp.eq.s32.totalorder %s27, 1
      %p244 = por %p242, %p243
      %p245 = scmp.ne.s32.totalorder %s234, %s235
      %p246 = scmp.eq.s32.totalorder %s27, 0
      %p247 = por %p245, %p246
      %p248 = scmp.ne.s32.totalorder %s234, %s235
      %p249 = scmp.eq.s32.totalorder %s28, 1
      %p250 = por %p248, %p249
      %p252 = scmp.ne.s32.totalorder %s235, %s251
      %p253 = scmp.eq.s32.totalorder %s28, 0
      %p254 = por %p252, %p253
      %p255 = scmp.le.s32.totalorder 1, %s22
      %p256 = scmp.lt.s32.totalorder %s22, 3
      %p257 = pnand %p255, %p256
      %p258 = pneg %p257
      // Predicated region
      $region9: #{tpu_custom_call.1} parent=5 // pred_check
        _
      $region10: #{tpu_custom_call.1} parent=5 // pred_check_branch
        %260 = sbr.rel (%p257) target = $region12
      $region11: #{tpu_custom_call.1} parent=5 // pred_region
        %s261 = ssub.s32 %s22, 1
        // Predicated region
        $region13: #{tpu_custom_call.1} parent=11 // pred_check
          %p262 = pneg %p95
        $region14: #{tpu_custom_call.1} parent=11 // pred_check_branch
          %264 = sbr.rel (%p262) target = $region16
        $region15: #{tpu_custom_call.1} parent=11 // pred_region
          _
        $region16: #{tpu_custom_call.1} parent=11 // pred_fallthru
          _
        // Predicated region
        $region17: #{tpu_custom_call.1} parent=11 // pred_check
          %p265 = pneg %p116
        $region18: #{tpu_custom_call.1} parent=11 // pred_check_branch
          %267 = sbr.rel (%p265) target = $region20
        $region19: #{tpu_custom_call.1} parent=11 // pred_region
          _
        $region20: #{tpu_custom_call.1} parent=11 // pred_fallthru
          _
        // Predicated region
        $region21: #{tpu_custom_call.1} parent=11 // pred_check
          %p268 = pneg %p137
        $region22: #{tpu_custom_call.1} parent=11 // pred_check_branch
          %270 = sbr.rel (%p268) target = $region24
        $region23: #{tpu_custom_call.1} parent=11 // pred_region
          _
        $region24: #{tpu_custom_call.1} parent=11 // pred_fallthru
          _
        // Predicated region
        $region25: #{tpu_custom_call.1} parent=11 // pred_check
          %p271 = pneg %p158
        $region26: #{tpu_custom_call.1} parent=11 // pred_check_branch
          %273 = sbr.rel (%p271) target = $region28
        $region27: #{tpu_custom_call.1} parent=11 // pred_region
          _
        $region28: #{tpu_custom_call.1} parent=11 // pred_fallthru
          _
        // Predicated region
        $region29: #{tpu_custom_call.1} parent=11 // pred_check
          %p274 = pneg %p179
        $region30: #{tpu_custom_call.1} parent=11 // pred_check_branch
          %276 = sbr.rel (%p274) target = $region32
        $region31: #{tpu_custom_call.1} parent=11 // pred_region
          _
        $region32: #{tpu_custom_call.1} parent=11 // pred_fallthru
          _
        // Predicated region
        $region33: #{tpu_custom_call.1} parent=11 // pred_check
          %p277 = pneg %p200
        $region34: #{tpu_custom_call.1} parent=11 // pred_check_branch
          %279 = sbr.rel (%p277) target = $region36
        $region35: #{tpu_custom_call.1} parent=11 // pred_region
          _
        $region36: #{tpu_custom_call.1} parent=11 // pred_fallthru
          _
        // Predicated region
        $region37: #{tpu_custom_call.1} parent=11 // pred_check
          %p280 = pneg %p221
        $region38: #{tpu_custom_call.1} parent=11 // pred_check_branch
          %282 = sbr.rel (%p280) target = $region40
        $region39: #{tpu_custom_call.1} parent=11 // pred_region
          %s284 = ssub.s32 1536, 1536
          %285 = vsyncadd [#allocation6], %s284
          %s286 = sshll.u32 [#allocation5], 4
          %s287 = int_to_ptr.vmem [resolvable:$true] %s286
          %292 = dma.hbm_to_vmem [thread:$0]  %s8, 1536, %s287, [#allocation6], 512, 512, 32
        $region40: #{tpu_custom_call.1} parent=11 // pred_fallthru
          _
      $region12: #{tpu_custom_call.1} parent=5 // pred_fallthru
        _
      %p293 = scmp.lt.s32.totalorder %s22, 2
      // Predicated region
      $region41: #{tpu_custom_call.1} parent=5 // pred_check
        %p294 = pneg %p293
      $region42: #{tpu_custom_call.1} parent=5 // pred_check_branch
        %296 = sbr.rel (%p294) target = $region44
      $region43: #{tpu_custom_call.1} parent=5 // pred_region
        // Predicated region
        $region45: #{tpu_custom_call.1} parent=43 // pred_check
          %p297 = pneg %p42
        $region46: #{tpu_custom_call.1} parent=43 // pred_check_branch
          %299 = sbr.rel (%p297) target = $region48
        $region47: #{tpu_custom_call.1} parent=43 // pred_region
          %s300 = sand.u32 %s32, 1
          %s301 = scalar_lea.sflag [#allocation3], %s300
          %s302 = sand.u32 %s32, 1
          %s303 = smul.addr %s302, 32
          %s304 = scalar_lea.vmem [#allocation2], %s303
          %s306 = ssub.s32 512, 512
          %307 = vsyncadd %s301, %s306
          %s308 = smul.addr %s22, 8
          %s309 = smul.addr %s308, 64
          %s310 = scalar_lea.hbm %s0, %s309
          %s312 = sshll.u32 %s304, 4
          %s313 = int_to_ptr.vmem [resolvable:$true] %s312
          %315 = dma.hbm_to_vmem [thread:$0]  %s310, 512, %s313, %s301
        $region48: #{tpu_custom_call.1} parent=43 // pred_fallthru
          _
        // Predicated region
        $region49: #{tpu_custom_call.1} parent=43 // pred_check
          %p316 = pneg %p68
        $region50: #{tpu_custom_call.1} parent=43 // pred_check_branch
          %318 = sbr.rel (%p316) target = $region52
        $region51: #{tpu_custom_call.1} parent=43 // pred_region
          %p319 = scmp.lt.s32.totalorder %s22, 1
          %s320 = scalar_select %p319, %s22, 1
          %s321 = smul.addr %s320, 16
          %s322 = smul.addr %s321, 8
          %s323 = scalar_lea.vmem %s1, %s322
        $region52: #{tpu_custom_call.1} parent=43 // pred_fallthru
          _
      $region44: #{tpu_custom_call.1} parent=5 // pred_fallthru
        _
      %p324 = scmp.le.s32.totalorder 1, %s22
      %p325 = scmp.lt.s32.totalorder %s22, 3
      %p326 = pnand %p324, %p325
      %p327 = pneg %p326
      // Predicated region
      $region53: #{tpu_custom_call.1} parent=5 // pred_check
        _
      $region54: #{tpu_custom_call.1} parent=5 // pred_check_branch
        %329 = sbr.rel (%p326) target = $region56
      $region55: #{tpu_custom_call.1} parent=5 // pred_region
        %s330 = ssub.s32 %s22, 1
        %s331 = sand.u32 %s35, 1
        %s332 = scalar_lea.sflag [#allocation3], %s331
        %s333 = sand.u32 %s35, 1
        %s334 = smul.addr %s333, 32
        %s335 = scalar_lea.vmem [#allocation2], %s334
        // Predicated region
        $region57: #{tpu_custom_call.1} parent=55 // pred_check
          %p336 = pneg %p48
        $region58: #{tpu_custom_call.1} parent=55 // pred_check_branch
          %338 = sbr.rel (%p336) target = $region60
        $region59: #{tpu_custom_call.1} parent=55 // pred_region
          %339 = dma.done %s332, 512
        $region60: #{tpu_custom_call.1} parent=55 // pred_fallthru
          _
        // Predicated region
        $region61: #{tpu_custom_call.1} parent=55 // pred_check
          %p340 = pneg %p221
        $region62: #{tpu_custom_call.1} parent=55 // pred_check_branch
          %342 = sbr.rel (%p340) target = $region64
        $region63: #{tpu_custom_call.1} parent=55 // pred_region
          %343 = dma.done [#allocation6], 1536
        $region64: #{tpu_custom_call.1} parent=55 // pred_fallthru
          _
        %s344 = sand.u32 %s35, 1
        %s345 = scalar_lea.sflag [#allocation3], %s344
        %s346 = sand.u32 %s35, 1
        %s347 = smul.addr %s346, 32
        %s348 = scalar_lea.vmem [#allocation2], %s347
        %p349 = pneg %p48
        %p350 = pneg %p45
        %p351 = scmp.lt.s32.totalorder %s27, 1
        %s352 = scalar_select %p351, %s27, 1
        %s353 = smul.addr %s352, 16
        %s354 = smul.addr %s353, 8
        %s355 = scalar_lea.vmem %s1, %s354
        %p356 = pneg %p74
        %p357 = pneg %p71
        %p358 = pneg %p95
        %p359 = pneg %p92
        %p360 = pneg %p116
        %p361 = pneg %p113
        %p362 = pneg %p137
        %p363 = pneg %p134
        %p364 = pneg %p158
        %p365 = pneg %p155
        %p366 = pneg %p179
        %p367 = pneg %p176
        %p368 = pneg %p200
        %p369 = pneg %p197
        %p370 = pneg %p221
        %p371 = pneg %p218
        %p372 = pneg %p247
        %p373 = pneg %p244
        %s374 = sand.u32 %s234, 1
        %s375 = scalar_lea.sflag [#allocation4], %s374
        %s376 = sand.u32 %s234, 1
        %s377 = smul.addr %s376, 64
        %s378 = scalar_lea.vmem [#allocation7], %s377
        %p379 = scmp.lt.s32.totalorder %s27, 1
        %s380 = scalar_select %p379, %s27, 1
        %s381 = smul.addr %s380, 16
        %s382 = smul.addr %s381, 8
        %s383 = scalar_lea.vmem %s1, %s382
        %v384 = vld [vmem:[%s335] sm:$0xff]
        %v385 = vld [vmem:[%s335 + $0x8] sm:$0xff]
        %v386 = vld [vmem:[%s335 + $0x10] sm:$0xff]
        %v387 = vld [vmem:[%s335 + $0x18] sm:$0xff]
        %v388 = vld [vmem:[%s383] sm:$0xff]
        %v389 = vld [vmem:[%s383 + $0x8] sm:$0xff]
        %v390 = vld [vmem:[%s383 + $0x10] sm:$0xff]
        %v391 = vld [vmem:[%s383 + $0x18] sm:$0xff]
        %v392 = vld [vmem:[%s383 + $0x20] sm:$0xff]
        %v393 = vld [vmem:[%s383 + $0x28] sm:$0xff]
        %v394 = vld [vmem:[%s383 + $0x30] sm:$0xff]
        %v395 = vld [vmem:[%s383 + $0x38] sm:$0xff]
        %v396 = vld [vmem:[%s383 + $0x40] sm:$0xff]
        %v397 = vld [vmem:[%s383 + $0x48] sm:$0xff]
        %v398 = vld [vmem:[%s383 + $0x50] sm:$0xff]
        %v399 = vld [vmem:[%s383 + $0x58] sm:$0xff]
        %v400 = vld [vmem:[%s383 + $0x60] sm:$0xff]
        %v401 = vld [vmem:[%s383 + $0x68] sm:$0xff]
        %v402 = vld [vmem:[%s383 + $0x70] sm:$0xff]
        %v403 = vld [vmem:[%s383 + $0x78] sm:$0xff]
        %v404 = vld [vmem:[%s2] sm:$0xff]
        %v405 = vld [vmem:[%s2 + $0x8] sm:$0xff]
        %v406 = vld [vmem:[%s2 + $0x10] sm:$0xff]
        %v407 = vld [vmem:[%s2 + $0x18] sm:$0xff]
        %v408 = vld [vmem:[%s2 + $0x20] sm:$0xff]
        %v409 = vld [vmem:[%s2 + $0x28] sm:$0xff]
        %v410 = vld [vmem:[%s2 + $0x30] sm:$0xff]
        %v411 = vld [vmem:[%s2 + $0x38] sm:$0xff]
        %v412 = vld [vmem:[%s2 + $0x40] sm:$0xff]
        %v413 = vld [vmem:[%s3] sm:$0xff]
        %v414 = vld [vmem:[%s3 + $0x8] sm:$0xff]
        %v415 = vld [vmem:[%s3 + $0x10] sm:$0xff]
        %v416 = vld [vmem:[%s3 + $0x18] sm:$0xff]
        %v417 = vld [vmem:[%s3 + $0x20] sm:$0xff]
        %v418 = vld [vmem:[%s3 + $0x28] sm:$0xff]
        %v419 = vld [vmem:[%s3 + $0x30] sm:$0xff]
        %v420 = vld [vmem:[%s3 + $0x38] sm:$0xff]
        %v421 = vld [vmem:[%s3 + $0x40] sm:$0xff]
        %vm422 = vcmask 130048
        %v424 = vsel %vm422, %v413, 0
        %v427 = vsel %vm422, %v414, 0
        %v430 = vsel %vm422, %v415, 0
        %v433 = vsel %vm422, %v416, 0
        %v436 = vsel %vm422, %v417, 0
        %v439 = vsel %vm422, %v418, 0
        %v442 = vsel %vm422, %v419, 0
        %v445 = vsel %vm422, %v420, 0
        %v448 = vsel %vm422, %v421, 0
        %450 = vmatprep.subr.mxu0 %v389
        %451 = vmatpush1.msra.mxu0 %v388
        %452 = vmatprep.subr.mxu0 %v397
        %453 = vmatpush1.msra.mxu0 %v396
        %454 = vmatprep.subr.mxu0 0.0
        %455 = vmatpush1.msra.mxu0 0.0
        %456 = vmatprep.subr.mxu0 0.0
        %457 = vmatpush1.msra.mxu0 0.0
        %458 = vmatprep.subr.mxu0 0.0
        %459 = vmatpush1.msra.mxu0 0.0
        %460 = vmatprep.subr.mxu0 0.0
        %461 = vmatpush1.msra.mxu0 0.0
        %462 = vmatprep.subr.mxu0 0.0
        %463 = vmatpush1.msra.mxu0 0.0
        %464 = vmatprep.subr.mxu0 0.0
        %465 = vmatpush1.msra.mxu0 0.0
        %466 = vmatprep.subr.mxu0 0.0
        %467 = vmatpush1.msra.mxu0 0.0
        %468 = vmatprep.subr.mxu0 0.0
        %469 = vmatpush1.msra.mxu0 0.0
        %470 = vmatprep.subr.mxu0 0.0
        %471 = vmatpush1.msra.mxu0 0.0
        %472 = vmatprep.subr.mxu0 0.0
        %473 = vmatpush1.msra.mxu0 0.0
        %474 = vmatprep.subr.mxu0 0.0
        %475 = vmatpush1.msra.mxu0 0.0
        %476 = vmatprep.subr.mxu0 0.0
        %477 = vmatpush1.msra.mxu0 0.0
        %478 = vmatprep.subr.mxu0 0.0
        %479 = vmatpush1.msra.mxu0 0.0
        %480 = vmatprep.subr.mxu0 0.0
        %481 = vmatpush1.msra.mxu0 0.0
        %482 = vmatprep.subr.mxu0 0.0
        %483 = vmatpush1.msra.mxu0 0.0
        %484 = vmatprep.subr.mxu0 0.0
        %485 = vmatpush1.msra.mxu0 0.0
        %486 = vmatprep.subr.mxu0 0.0
        %487 = vmatpush1.msra.mxu0 0.0
        %488 = vmatprep.subr.mxu0 0.0
        %489 = vmatpush1.msra.mxu0 0.0
        %490 = vmatprep.subr.mxu0 0.0
        %491 = vmatpush1.msra.mxu0 0.0
        %492 = vmatprep.subr.mxu0 0.0
        %493 = vmatpush1.msra.mxu0 0.0
        %494 = vmatprep.subr.mxu0 0.0
        %495 = vmatpush1.msra.mxu0 0.0
        %496 = vmatprep.subr.mxu0 0.0
        %497 = vmatpush1.msra.mxu0 0.0
        %498 = vmatprep.subr.mxu0 0.0
        %499 = vmatpush1.msra.mxu0 0.0
        %500 = vmatprep.subr.mxu0 0.0
        %501 = vmatpush1.msra.mxu0 0.0
        %502 = vmatprep.subr.mxu0 0.0
        %503 = vmatpush1.msra.mxu0 0.0
        %504 = vmatprep.subr.mxu0 0.0
        %505 = vmatpush1.msra.mxu0 0.0
        %506 = vmatprep.subr.mxu0 0.0
        %507 = vmatpush1.msra.mxu0 0.0
        %508 = vmatprep.subr.mxu0 0.0
        %509 = vmatpush1.msra.mxu0 0.0
        %510 = vmatprep.subr.mxu0 0.0
        %511 = vmatpush1.msra.mxu0 0.0
        %512 = vmatprep.subr.mxu0 0.0
        %513 = vmatpush1.msra.mxu0 0.0
        %514 = vmatprep.mubr.f32.mxu0 0.0
        %515 = vmatmul.mubr.f32.gmra.mrb[0].mxu0 %v424
        %v516 = vpop.f32.mrb[0].mxu0
        %v517 = vadd.f32 0.0, %v516
        %v518 = vpop.f32.mrb[0].mxu0
        %v519 = vadd.f32 0.0, %v518
        %520 = vmatprep.mubr.f32.mxu0 0.0
        %521 = vmatmul.mubr.f32.gmra.mrb[0].mxu0 %v427
        %v522 = vpop.f32.mrb[0].mxu0
        %v523 = vadd.f32 0.0, %v522
        %v524 = vpop.f32.mrb[0].mxu0
        %v525 = vadd.f32 0.0, %v524
        %526 = vmatprep.mubr.f32.mxu0 0.0
        %527 = vmatmul.mubr.f32.gmra.mrb[0].mxu0 %v430
        %v528 = vpop.f32.mrb[0].mxu0
        %v529 = vadd.f32 0.0, %v528
        %v530 = vpop.f32.mrb[0].mxu0
        %v531 = vadd.f32 0.0, %v530
        %532 = vmatprep.mubr.f32.mxu0 0.0
        %533 = vmatmul.mubr.f32.gmra.mrb[0].mxu0 %v433
        %v534 = vpop.f32.mrb[0].mxu0
        %v535 = vadd.f32 0.0, %v534
        %v536 = vpop.f32.mrb[0].mxu0
        %v537 = vadd.f32 0.0, %v536
        %538 = vmatprep.mubr.f32.mxu0 0.0
        %539 = vmatmul.mubr.f32.gmra.mrb[0].mxu0 %v436
        %v540 = vpop.f32.mrb[0].mxu0
        %v541 = vadd.f32 0.0, %v540
        %v542 = vpop.f32.mrb[0].mxu0
        %v543 = vadd.f32 0.0, %v542
        %544 = vmatprep.mubr.f32.mxu0 0.0
        %545 = vmatmul.mubr.f32.gmra.mrb[0].mxu0 %v439
        %v546 = vpop.f32.mrb[0].mxu0
        %v547 = vadd.f32 0.0, %v546
        %v548 = vpop.f32.mrb[0].mxu0
        %v549 = vadd.f32 0.0, %v548
        %550 = vmatprep.mubr.f32.mxu0 0.0
        %551 = vmatmul.mubr.f32.gmra.mrb[0].mxu0 %v442
        %v552 = vpop.f32.mrb[0].mxu0
        %v553 = vadd.f32 0.0, %v552
        %v554 = vpop.f32.mrb[0].mxu0
        %v555 = vadd.f32 0.0, %v554
        %556 = vmatprep.mubr.f32.mxu0 0.0
        %557 = vmatmul.mubr.f32.gmra.mrb[0].mxu0 %v445
        %v558 = vpop.f32.mrb[0].mxu0
        %v559 = vadd.f32 0.0, %v558
        %v560 = vpop.f32.mrb[0].mxu0
        %v561 = vadd.f32 0.0, %v560
        %562 = vmatprep.mubr.f32.mxu0 0.0
        %563 = vmatmul.mubr.f32.gmra.mrb[0].mxu0 %v448
        %v564 = vpop.f32.mrb[0].mxu0
        %v565 = vadd.f32 0.0, %v564
        %v566 = vpop.f32.mrb[0].mxu0
        %v567 = vadd.f32 0.0, %v566
        %568 = vdwg.mxu0
        %569 = vmatprep.subr.mxu0 %v391
        %570 = vmatpush1.msra.mxu0 %v390
        %571 = vmatprep.subr.mxu0 %v399
        %572 = vmatpush1.msra.mxu0 %v398
        %573 = vmatprep.subr.mxu0 0.0
        %574 = vmatpush1.msra.mxu0 0.0
        %575 = vmatprep.subr.mxu0 0.0
        %576 = vmatpush1.msra.mxu0 0.0
        %577 = vmatprep.subr.mxu0 0.0
        %578 = vmatpush1.msra.mxu0 0.0
        %579 = vmatprep.subr.mxu0 0.0
        %580 = vmatpush1.msra.mxu0 0.0
        %581 = vmatprep.subr.mxu0 0.0
        %582 = vmatpush1.msra.mxu0 0.0
        %583 = vmatprep.subr.mxu0 0.0
        %584 = vmatpush1.msra.mxu0 0.0
        %585 = vmatprep.subr.mxu0 0.0
        %586 = vmatpush1.msra.mxu0 0.0
        %587 = vmatprep.subr.mxu0 0.0
        %588 = vmatpush1.msra.mxu0 0.0
        %589 = vmatprep.subr.mxu0 0.0
        %590 = vmatpush1.msra.mxu0 0.0
        %591 = vmatprep.subr.mxu0 0.0
        %592 = vmatpush1.msra.mxu0 0.0
        %593 = vmatprep.subr.mxu0 0.0
        %594 = vmatpush1.msra.mxu0 0.0
        %595 = vmatprep.subr.mxu0 0.0
        %596 = vmatpush1.msra.mxu0 0.0
        %597 = vmatprep.subr.mxu0 0.0
        %598 = vmatpush1.msra.mxu0 0.0
        %599 = vmatprep.subr.mxu0 0.0
        %600 = vmatpush1.msra.mxu0 0.0
        %601 = vmatprep.subr.mxu0 0.0
        %602 = vmatpush1.msra.mxu0 0.0
        %603 = vmatprep.subr.mxu0 0.0
        %604 = vmatpush1.msra.mxu0 0.0
        %605 = vmatprep.subr.mxu0 0.0
        %606 = vmatpush1.msra.mxu0 0.0
        %607 = vmatprep.subr.mxu0 0.0
        %608 = vmatpush1.msra.mxu0 0.0
        %609 = vmatprep.subr.mxu0 0.0
        %610 = vmatpush1.msra.mxu0 0.0
        %611 = vmatprep.subr.mxu0 0.0
        %612 = vmatpush1.msra.mxu0 0.0
        %613 = vmatprep.subr.mxu0 0.0
        %614 = vmatpush1.msra.mxu0 0.0
        %615 = vmatprep.subr.mxu0 0.0
        %616 = vmatpush1.msra.mxu0 0.0
        %617 = vmatprep.subr.mxu0 0.0
        %618 = vmatpush1.msra.mxu0 0.0
        %619 = vmatprep.subr.mxu0 0.0
        %620 = vmatpush1.msra.mxu0 0.0
        %621 = vmatprep.subr.mxu0 0.0
        %622 = vmatpush1.msra.mxu0 0.0
        %623 = vmatprep.subr.mxu0 0.0
        %624 = vmatpush1.msra.mxu0 0.0
        %625 = vmatprep.subr.mxu0 0.0
        %626 = vmatpush1.msra.mxu0 0.0
        %627 = vmatprep.subr.mxu0 0.0
        %628 = vmatpush1.msra.mxu0 0.0
        %629 = vmatprep.subr.mxu0 0.0
        %630 = vmatpush1.msra.mxu0 0.0
        %631 = vmatprep.subr.mxu0 0.0
        %632 = vmatpush1.msra.mxu0 0.0
        %633 = vmatprep.mubr.f32.mxu0 0.0
        %634 = vmatmul.mubr.f32.gmra.mrb[0].mxu0 %v424
        %v635 = vpop.f32.mrb[0].mxu0
        %v636 = vadd.f32 0.0, %v635
        %v637 = vpop.f32.mrb[0].mxu0
        %v638 = vadd.f32 0.0, %v637
        %639 = vmatprep.mubr.f32.mxu0 0.0
        %640 = vmatmul.mubr.f32.gmra.mrb[0].mxu0 %v427
        %v641 = vpop.f32.mrb[0].mxu0
        %v642 = vadd.f32 0.0, %v641
        %v643 = vpop.f32.mrb[0].mxu0
        %v644 = vadd.f32 0.0, %v643
        %645 = vmatprep.mubr.f32.mxu0 0.0
        %646 = vmatmul.mubr.f32.gmra.mrb[0].mxu0 %v430
        %v647 = vpop.f32.mrb[0].mxu0
        %v648 = vadd.f32 0.0, %v647
        %v649 = vpop.f32.mrb[0].mxu0
        %v650 = vadd.f32 0.0, %v649
        %651 = vmatprep.mubr.f32.mxu0 0.0
        %652 = vmatmul.mubr.f32.gmra.mrb[0].mxu0 %v433
        %v653 = vpop.f32.mrb[0].mxu0
        %v654 = vadd.f32 0.0, %v653
        %v655 = vpop.f32.mrb[0].mxu0
        %v656 = vadd.f32 0.0, %v655
        %657 = vmatprep.mubr.f32.mxu0 0.0
        %658 = vmatmul.mubr.f32.gmra.mrb[0].mxu0 %v436
        %v659 = vpop.f32.mrb[0].mxu0
        %v660 = vadd.f32 0.0, %v659
        %v661 = vpop.f32.mrb[0].mxu0
        %v662 = vadd.f32 0.0, %v661
        %663 = vmatprep.mubr.f32.mxu0 0.0
        %664 = vmatmul.mubr.f32.gmra.mrb[0].mxu0 %v439
        %v665 = vpop.f32.mrb[0].mxu0
        %v666 = vadd.f32 0.0, %v665
        %v667 = vpop.f32.mrb[0].mxu0
        %v668 = vadd.f32 0.0, %v667
        %669 = vmatprep.mubr.f32.mxu0 0.0
        %670 = vmatmul.mubr.f32.gmra.mrb[0].mxu0 %v442
        %v671 = vpop.f32.mrb[0].mxu0
        %v672 = vadd.f32 0.0, %v671
        %v673 = vpop.f32.mrb[0].mxu0
        %v674 = vadd.f32 0.0, %v673
        %675 = vmatprep.mubr.f32.mxu0 0.0
        %676 = vmatmul.mubr.f32.gmra.mrb[0].mxu0 %v445
        %v677 = vpop.f32.mrb[0].mxu0
        %v678 = vadd.f32 0.0, %v677
        %v679 = vpop.f32.mrb[0].mxu0
        %v680 = vadd.f32 0.0, %v679
        %681 = vmatprep.mubr.f32.mxu0 0.0
        %682 = vmatmul.mubr.f32.gmra.mrb[0].mxu0 %v448
        %v683 = vpop.f32.mrb[0].mxu0
        %v684 = vadd.f32 0.0, %v683
        %v685 = vpop.f32.mrb[0].mxu0
        %v686 = vadd.f32 0.0, %v685
        %687 = vdwg.mxu0
        %688 = vmatprep.subr.mxu0 %v393
        %689 = vmatpush1.msra.mxu0 %v392
        %690 = vmatprep.subr.mxu0 %v401
        %691 = vmatpush1.msra.mxu0 %v400
        %692 = vmatprep.subr.mxu0 0.0
        %693 = vmatpush1.msra.mxu0 0.0
        %694 = vmatprep.subr.mxu0 0.0
        %695 = vmatpush1.msra.mxu0 0.0
        %696 = vmatprep.subr.mxu0 0.0
        %697 = vmatpush1.msra.mxu0 0.0
        %698 = vmatprep.subr.mxu0 0.0
        %699 = vmatpush1.msra.mxu0 0.0
        %700 = vmatprep.subr.mxu0 0.0
        %701 = vmatpush1.msra.mxu0 0.0
        %702 = vmatprep.subr.mxu0 0.0
        %703 = vmatpush1.msra.mxu0 0.0
        %704 = vmatprep.subr.mxu0 0.0
        %705 = vmatpush1.msra.mxu0 0.0
        %706 = vmatprep.subr.mxu0 0.0
        %707 = vmatpush1.msra.mxu0 0.0
        %708 = vmatprep.subr.mxu0 0.0
        %709 = vmatpush1.msra.mxu0 0.0
        %710 = vmatprep.subr.mxu0 0.0
        %711 = vmatpush1.msra.mxu0 0.0
        %712 = vmatprep.subr.mxu0 0.0
        %713 = vmatpush1.msra.mxu0 0.0
        %714 = vmatprep.subr.mxu0 0.0
        %715 = vmatpush1.msra.mxu0 0.0
        %716 = vmatprep.subr.mxu0 0.0
        %717 = vmatpush1.msra.mxu0 0.0
        %718 = vmatprep.subr.mxu0 0.0
        %719 = vmatpush1.msra.mxu0 0.0
        %720 = vmatprep.subr.mxu0 0.0
        %721 = vmatpush1.msra.mxu0 0.0
        %722 = vmatprep.subr.mxu0 0.0
        %723 = vmatpush1.msra.mxu0 0.0
        %724 = vmatprep.subr.mxu0 0.0
        %725 = vmatpush1.msra.mxu0 0.0
        %726 = vmatprep.subr.mxu0 0.0
        %727 = vmatpush1.msra.mxu0 0.0
        %728 = vmatprep.subr.mxu0 0.0
        %729 = vmatpush1.msra.mxu0 0.0
        %730 = vmatprep.subr.mxu0 0.0
        %731 = vmatpush1.msra.mxu0 0.0
        %732 = vmatprep.subr.mxu0 0.0
        %733 = vmatpush1.msra.mxu0 0.0
        %734 = vmatprep.subr.mxu0 0.0
        %735 = vmatpush1.msra.mxu0 0.0
        %736 = vmatprep.subr.mxu0 0.0
        %737 = vmatpush1.msra.mxu0 0.0
        %738 = vmatprep.subr.mxu0 0.0
        %739 = vmatpush1.msra.mxu0 0.0
        %740 = vmatprep.subr.mxu0 0.0
        %741 = vmatpush1.msra.mxu0 0.0
        %742 = vmatprep.subr.mxu0 0.0
        %743 = vmatpush1.msra.mxu0 0.0
        %744 = vmatprep.subr.mxu0 0.0
        %745 = vmatpush1.msra.mxu0 0.0
        %746 = vmatprep.subr.mxu0 0.0
        %747 = vmatpush1.msra.mxu0 0.0
        %748 = vmatprep.subr.mxu0 0.0
        %749 = vmatpush1.msra.mxu0 0.0
        %750 = vmatprep.subr.mxu0 0.0
        %751 = vmatpush1.msra.mxu0 0.0
        %752 = vmatprep.mubr.f32.mxu0 0.0
        %753 = vmatmul.mubr.f32.gmra.mrb[0].mxu0 %v424
        %v754 = vpop.f32.mrb[0].mxu0
        %v755 = vadd.f32 0.0, %v754
        %v756 = vpop.f32.mrb[0].mxu0
        %v757 = vadd.f32 0.0, %v756
        %758 = vmatprep.mubr.f32.mxu0 0.0
        %759 = vmatmul.mubr.f32.gmra.mrb[0].mxu0 %v427
        %v760 = vpop.f32.mrb[0].mxu0
        %v761 = vadd.f32 0.0, %v760
        %v762 = vpop.f32.mrb[0].mxu0
        %v763 = vadd.f32 0.0, %v762
        %764 = vmatprep.mubr.f32.mxu0 0.0
        %765 = vmatmul.mubr.f32.gmra.mrb[0].mxu0 %v430
        %v766 = vpop.f32.mrb[0].mxu0
        %v767 = vadd.f32 0.0, %v766
        %v768 = vpop.f32.mrb[0].mxu0
        %v769 = vadd.f32 0.0, %v768
        %770 = vmatprep.mubr.f32.mxu0 0.0
        %771 = vmatmul.mubr.f32.gmra.mrb[0].mxu0 %v433
        %v772 = vpop.f32.mrb[0].mxu0
        %v773 = vadd.f32 0.0, %v772
        %v774 = vpop.f32.mrb[0].mxu0
        %v775 = vadd.f32 0.0, %v774
        %776 = vmatprep.mubr.f32.mxu0 0.0
        %777 = vmatmul.mubr.f32.gmra.mrb[0].mxu0 %v436
        %v778 = vpop.f32.mrb[0].mxu0
        %v779 = vadd.f32 0.0, %v778
        %v780 = vpop.f32.mrb[0].mxu0
        %v781 = vadd.f32 0.0, %v780
        %782 = vmatprep.mubr.f32.mxu0 0.0
        %783 = vmatmul.mubr.f32.gmra.mrb[0].mxu0 %v439
        %v784 = vpop.f32.mrb[0].mxu0
        %v785 = vadd.f32 0.0, %v784
        %v786 = vpop.f32.mrb[0].mxu0
        %v787 = vadd.f32 0.0, %v786
        %788 = vmatprep.mubr.f32.mxu0 0.0
        %789 = vmatmul.mubr.f32.gmra.mrb[0].mxu0 %v442
        %v790 = vpop.f32.mrb[0].mxu0
        %v791 = vadd.f32 0.0, %v790
        %v792 = vpop.f32.mrb[0].mxu0
        %v793 = vadd.f32 0.0, %v792
        %794 = vmatprep.mubr.f32.mxu0 0.0
        %795 = vmatmul.mubr.f32.gmra.mrb[0].mxu0 %v445
        %v796 = vpop.f32.mrb[0].mxu0
        %v797 = vadd.f32 0.0, %v796
        %v798 = vpop.f32.mrb[0].mxu0
        %v799 = vadd.f32 0.0, %v798
        %800 = vmatprep.mubr.f32.mxu0 0.0
        %801 = vmatmul.mubr.f32.gmra.mrb[0].mxu0 %v448
        %v802 = vpop.f32.mrb[0].mxu0
        %v803 = vadd.f32 0.0, %v802
        %v804 = vpop.f32.mrb[0].mxu0
        %v805 = vadd.f32 0.0, %v804
        %806 = vdwg.mxu0
        %807 = vmatprep.subr.mxu0 %v395
        %808 = vmatpush1.msra.mxu0 %v394
        %809 = vmatprep.subr.mxu0 %v403
        %810 = vmatpush1.msra.mxu0 %v402
        %811 = vmatprep.subr.mxu0 0.0
        %812 = vmatpush1.msra.mxu0 0.0
        %813 = vmatprep.subr.mxu0 0.0
        %814 = vmatpush1.msra.mxu0 0.0
        %815 = vmatprep.subr.mxu0 0.0
        %816 = vmatpush1.msra.mxu0 0.0
        %817 = vmatprep.subr.mxu0 0.0
        %818 = vmatpush1.msra.mxu0 0.0
        %819 = vmatprep.subr.mxu0 0.0
        %820 = vmatpush1.msra.mxu0 0.0
        %821 = vmatprep.subr.mxu0 0.0
        %822 = vmatpush1.msra.mxu0 0.0
        %823 = vmatprep.subr.mxu0 0.0
        %824 = vmatpush1.msra.mxu0 0.0
        %825 = vmatprep.subr.mxu0 0.0
        %826 = vmatpush1.msra.mxu0 0.0
        %827 = vmatprep.subr.mxu0 0.0
        %828 = vmatpush1.msra.mxu0 0.0
        %829 = vmatprep.subr.mxu0 0.0
        %830 = vmatpush1.msra.mxu0 0.0
        %831 = vmatprep.subr.mxu0 0.0
        %832 = vmatpush1.msra.mxu0 0.0
        %833 = vmatprep.subr.mxu0 0.0
        %834 = vmatpush1.msra.mxu0 0.0
        %835 = vmatprep.subr.mxu0 0.0
        %836 = vmatpush1.msra.mxu0 0.0
        %837 = vmatprep.subr.mxu0 0.0
        %838 = vmatpush1.msra.mxu0 0.0
        %839 = vmatprep.subr.mxu0 0.0
        %840 = vmatpush1.msra.mxu0 0.0
        %841 = vmatprep.subr.mxu0 0.0
        %842 = vmatpush1.msra.mxu0 0.0
        %843 = vmatprep.subr.mxu0 0.0
        %844 = vmatpush1.msra.mxu0 0.0
        %845 = vmatprep.subr.mxu0 0.0
        %846 = vmatpush1.msra.mxu0 0.0
        %847 = vmatprep.subr.mxu0 0.0
        %848 = vmatpush1.msra.mxu0 0.0
        %849 = vmatprep.subr.mxu0 0.0
        %850 = vmatpush1.msra.mxu0 0.0
        %851 = vmatprep.subr.mxu0 0.0
        %852 = vmatpush1.msra.mxu0 0.0
        %853 = vmatprep.subr.mxu0 0.0
        %854 = vmatpush1.msra.mxu0 0.0
        %855 = vmatprep.subr.mxu0 0.0
        %856 = vmatpush1.msra.mxu0 0.0
        %857 = vmatprep.subr.mxu0 0.0
        %858 = vmatpush1.msra.mxu0 0.0
        %859 = vmatprep.subr.mxu0 0.0
        %860 = vmatpush1.msra.mxu0 0.0
        %861 = vmatprep.subr.mxu0 0.0
        %862 = vmatpush1.msra.mxu0 0.0
        %863 = vmatprep.subr.mxu0 0.0
        %864 = vmatpush1.msra.mxu0 0.0
        %865 = vmatprep.subr.mxu0 0.0
        %866 = vmatpush1.msra.mxu0 0.0
        %867 = vmatprep.subr.mxu0 0.0
        %868 = vmatpush1.msra.mxu0 0.0
        %869 = vmatprep.subr.mxu0 0.0
        %870 = vmatpush1.msra.mxu0 0.0
        %871 = vmatprep.mubr.f32.mxu0 0.0
        %872 = vmatmul.mubr.f32.gmra.mrb[0].mxu0 %v424
        %v873 = vpop.f32.mrb[0].mxu0
        %v874 = vadd.f32 0.0, %v873
        %v875 = vpop.f32.mrb[0].mxu0
        %v876 = vadd.f32 0.0, %v875
        %877 = vmatprep.mubr.f32.mxu0 0.0
        %878 = vmatmul.mubr.f32.gmra.mrb[0].mxu0 %v427
        %v879 = vpop.f32.mrb[0].mxu0
        %v880 = vadd.f32 0.0, %v879
        %v881 = vpop.f32.mrb[0].mxu0
        %v882 = vadd.f32 0.0, %v881
        %883 = vmatprep.mubr.f32.mxu0 0.0
        %884 = vmatmul.mubr.f32.gmra.mrb[0].mxu0 %v430
        %v885 = vpop.f32.mrb[0].mxu0
        %v886 = vadd.f32 0.0, %v885
        %v887 = vpop.f32.mrb[0].mxu0
        %v888 = vadd.f32 0.0, %v887
        %889 = vmatprep.mubr.f32.mxu0 0.0
        %890 = vmatmul.mubr.f32.gmra.mrb[0].mxu0 %v433
        %v891 = vpop.f32.mrb[0].mxu0
        %v892 = vadd.f32 0.0, %v891
        %v893 = vpop.f32.mrb[0].mxu0
        %v894 = vadd.f32 0.0, %v893
        %895 = vmatprep.mubr.f32.mxu0 0.0
        %896 = vmatmul.mubr.f32.gmra.mrb[0].mxu0 %v436
        %v897 = vpop.f32.mrb[0].mxu0
        %v898 = vadd.f32 0.0, %v897
        %v899 = vpop.f32.mrb[0].mxu0
        %v900 = vadd.f32 0.0, %v899
        %901 = vmatprep.mubr.f32.mxu0 0.0
        %902 = vmatmul.mubr.f32.gmra.mrb[0].mxu0 %v439
        %v903 = vpop.f32.mrb[0].mxu0
        %v904 = vadd.f32 0.0, %v903
        %v905 = vpop.f32.mrb[0].mxu0
        %v906 = vadd.f32 0.0, %v905
        %907 = vmatprep.mubr.f32.mxu0 0.0
        %908 = vmatmul.mubr.f32.gmra.mrb[0].mxu0 %v442
        %v909 = vpop.f32.mrb[0].mxu0
        %v910 = vadd.f32 0.0, %v909
        %v911 = vpop.f32.mrb[0].mxu0
        %v912 = vadd.f32 0.0, %v911
        %913 = vmatprep.mubr.f32.mxu0 0.0
        %914 = vmatmul.mubr.f32.gmra.mrb[0].mxu0 %v445
        %v915 = vpop.f32.mrb[0].mxu0
        %v916 = vadd.f32 0.0, %v915
        %v917 = vpop.f32.mrb[0].mxu0
        %v918 = vadd.f32 0.0, %v917
        %919 = vmatprep.mubr.f32.mxu0 0.0
        %920 = vmatmul.mubr.f32.gmra.mrb[0].mxu0 %v448
        %v921 = vpop.f32.mrb[0].mxu0
        %v922 = vadd.f32 0.0, %v921
        %v923 = vpop.f32.mrb[0].mxu0
        %v924 = vadd.f32 0.0, %v923
        %925 = vdwg.mxu0
        %v930 = vcombine.high %v384, %v384
        %v931 = vcombine.high %v385, %v385
        %v932 = vcombine.high %v386, %v386
        %v933 = vcombine.high %v387, %v387
        %vm934 = vcmask 31744
        %v936 = vsel %vm934, %v404, 0
        %v939 = vsel %vm934, %v405, 0
        %v942 = vsel %vm934, %v406, 0
        %v945 = vsel %vm934, %v407, 0
        %v948 = vsel %vm934, %v408, 0
        %v951 = vsel %vm934, %v409, 0
        %v954 = vsel %vm934, %v410, 0
        %v957 = vsel %vm934, %v411, 0
        %v960 = vsel %vm934, %v412, 0
        %vm962 = vcmask 1043456
        %v963 = vsel %vm962, %v384, 0
        %v965 = vsel %vm962, %v930, 0
        %v967 = vsel %vm962, %v385, 0
        %v969 = vsel %vm962, %v931, 0
        %v971 = vsel %vm962, %v386, 0
        %v973 = vsel %vm962, %v932, 0
        %v975 = vsel %vm962, %v387, 0
        %v977 = vsel %vm962, %v933, 0
        %979 = vmatprep.subr.mxu0 %v965
        %980 = vmatpush1.msra.mxu0 %v963
        %981 = vmatprep.subr.mxu0 0.0
        %982 = vmatpush1.msra.mxu0 0.0
        %983 = vmatprep.subr.mxu0 0.0
        %984 = vmatpush1.msra.mxu0 0.0
        %985 = vmatprep.subr.mxu0 0.0
        %986 = vmatpush1.msra.mxu0 0.0
        %987 = vmatprep.subr.mxu0 0.0
        %988 = vmatpush1.msra.mxu0 0.0
        %989 = vmatprep.subr.mxu0 0.0
        %990 = vmatpush1.msra.mxu0 0.0
        %991 = vmatprep.subr.mxu0 0.0
        %992 = vmatpush1.msra.mxu0 0.0
        %993 = vmatprep.subr.mxu0 0.0
        %994 = vmatpush1.msra.mxu0 0.0
        %995 = vmatprep.subr.mxu0 0.0
        %996 = vmatpush1.msra.mxu0 0.0
        %997 = vmatprep.subr.mxu0 0.0
        %998 = vmatpush1.msra.mxu0 0.0
        %999 = vmatprep.subr.mxu0 0.0
        %1000 = vmatpush1.msra.mxu0 0.0
        %1001 = vmatprep.subr.mxu0 0.0
        %1002 = vmatpush1.msra.mxu0 0.0
        %1003 = vmatprep.subr.mxu0 0.0
        %1004 = vmatpush1.msra.mxu0 0.0
        %1005 = vmatprep.subr.mxu0 0.0
        %1006 = vmatpush1.msra.mxu0 0.0
        %1007 = vmatprep.subr.mxu0 0.0
        %1008 = vmatpush1.msra.mxu0 0.0
        %1009 = vmatprep.subr.mxu0 0.0
        %1010 = vmatpush1.msra.mxu0 0.0
        %1011 = vmatprep.subr.mxu0 0.0
        %1012 = vmatpush1.msra.mxu0 0.0
        %1013 = vmatprep.subr.mxu0 0.0
        %1014 = vmatpush1.msra.mxu0 0.0
        %1015 = vmatprep.subr.mxu0 0.0
        %1016 = vmatpush1.msra.mxu0 0.0
        %1017 = vmatprep.subr.mxu0 0.0
        %1018 = vmatpush1.msra.mxu0 0.0
        %1019 = vmatprep.subr.mxu0 0.0
        %1020 = vmatpush1.msra.mxu0 0.0
        %1021 = vmatprep.subr.mxu0 0.0
        %1022 = vmatpush1.msra.mxu0 0.0
        %1023 = vmatprep.subr.mxu0 0.0
        %1024 = vmatpush1.msra.mxu0 0.0
        %1025 = vmatprep.subr.mxu0 0.0
        %1026 = vmatpush1.msra.mxu0 0.0
        %1027 = vmatprep.subr.mxu0 0.0
        %1028 = vmatpush1.msra.mxu0 0.0
        %1029 = vmatprep.subr.mxu0 0.0
        %1030 = vmatpush1.msra.mxu0 0.0
        %1031 = vmatprep.subr.mxu0 0.0
        %1032 = vmatpush1.msra.mxu0 0.0
        %1033 = vmatprep.subr.mxu0 0.0
        %1034 = vmatpush1.msra.mxu0 0.0
        %1035 = vmatprep.subr.mxu0 0.0
        %1036 = vmatpush1.msra.mxu0 0.0
        %1037 = vmatprep.subr.mxu0 0.0
        %1038 = vmatpush1.msra.mxu0 0.0
        %1039 = vmatprep.subr.mxu0 0.0
        %1040 = vmatpush1.msra.mxu0 0.0
        %1041 = vmatprep.subr.mxu0 0.0
        %1042 = vmatpush1.msra.mxu0 0.0
        %1043 = vmatprep.mubr.f32.mxu0 0.0
        %1044 = vmatmul.mubr.f32.gmra.mrb[0].mxu0 %v936
        %v1045 = vpop.f32.mrb[0].mxu0
        %v1046 = vadd.f32 %v517, %v1045
        %v1047 = vpop.f32.mrb[0].mxu0
        %v1048 = vadd.f32 %v519, %v1047
        %1049 = vmatprep.mubr.f32.mxu0 0.0
        %1050 = vmatmul.mubr.f32.gmra.mrb[0].mxu0 %v939
        %v1051 = vpop.f32.mrb[0].mxu0
        %v1052 = vadd.f32 %v523, %v1051
        %v1053 = vpop.f32.mrb[0].mxu0
        %v1054 = vadd.f32 %v525, %v1053
        %1055 = vmatprep.mubr.f32.mxu0 0.0
        %1056 = vmatmul.mubr.f32.gmra.mrb[0].mxu0 %v942
        %v1057 = vpop.f32.mrb[0].mxu0
        %v1058 = vadd.f32 %v529, %v1057
        %v1059 = vpop.f32.mrb[0].mxu0
        %v1060 = vadd.f32 %v531, %v1059
        %1061 = vmatprep.mubr.f32.mxu0 0.0
        %1062 = vmatmul.mubr.f32.gmra.mrb[0].mxu0 %v945
        %v1063 = vpop.f32.mrb[0].mxu0
        %v1064 = vadd.f32 %v535, %v1063
        %v1065 = vpop.f32.mrb[0].mxu0
        %v1066 = vadd.f32 %v537, %v1065
        %1067 = vmatprep.mubr.f32.mxu0 0.0
        %1068 = vmatmul.mubr.f32.gmra.mrb[0].mxu0 %v948
        %v1069 = vpop.f32.mrb[0].mxu0
        %v1070 = vadd.f32 %v541, %v1069
        %v1071 = vpop.f32.mrb[0].mxu0
        %v1072 = vadd.f32 %v543, %v1071
        %1073 = vmatprep.mubr.f32.mxu0 0.0
        %1074 = vmatmul.mubr.f32.gmra.mrb[0].mxu0 %v951
        %v1075 = vpop.f32.mrb[0].mxu0
        %v1076 = vadd.f32 %v547, %v1075
        %v1077 = vpop.f32.mrb[0].mxu0
        %v1078 = vadd.f32 %v549, %v1077
        %1079 = vmatprep.mubr.f32.mxu0 0.0
        %1080 = vmatmul.mubr.f32.gmra.mrb[0].mxu0 %v954
        %v1081 = vpop.f32.mrb[0].mxu0
        %v1082 = vadd.f32 %v553, %v1081
        %v1083 = vpop.f32.mrb[0].mxu0
        %v1084 = vadd.f32 %v555, %v1083
        %1085 = vmatprep.mubr.f32.mxu0 0.0
        %1086 = vmatmul.mubr.f32.gmra.mrb[0].mxu0 %v957
        %v1087 = vpop.f32.mrb[0].mxu0
        %v1088 = vadd.f32 %v559, %v1087
        %v1089 = vpop.f32.mrb[0].mxu0
        %v1090 = vadd.f32 %v561, %v1089
        %1091 = vmatprep.mubr.f32.mxu0 0.0
        %1092 = vmatmul.mubr.f32.gmra.mrb[0].mxu0 %v960
        %v1093 = vpop.f32.mrb[0].mxu0
        %v1094 = vadd.f32 %v565, %v1093
        %v1095 = vpop.f32.mrb[0].mxu0
        %v1096 = vadd.f32 %v567, %v1095
        %1097 = vdwg.mxu0
        %1098 = vmatprep.subr.mxu0 %v969
        %1099 = vmatpush1.msra.mxu0 %v967
        %1100 = vmatprep.subr.mxu0 0.0
        %1101 = vmatpush1.msra.mxu0 0.0
        %1102 = vmatprep.subr.mxu0 0.0
        %1103 = vmatpush1.msra.mxu0 0.0
        %1104 = vmatprep.subr.mxu0 0.0
        %1105 = vmatpush1.msra.mxu0 0.0
        %1106 = vmatprep.subr.mxu0 0.0
        %1107 = vmatpush1.msra.mxu0 0.0
        %1108 = vmatprep.subr.mxu0 0.0
        %1109 = vmatpush1.msra.mxu0 0.0
        %1110 = vmatprep.subr.mxu0 0.0
        %1111 = vmatpush1.msra.mxu0 0.0
        %1112 = vmatprep.subr.mxu0 0.0
        %1113 = vmatpush1.msra.mxu0 0.0
        %1114 = vmatprep.subr.mxu0 0.0
        %1115 = vmatpush1.msra.mxu0 0.0
        %1116 = vmatprep.subr.mxu0 0.0
        %1117 = vmatpush1.msra.mxu0 0.0
        %1118 = vmatprep.subr.mxu0 0.0
        %1119 = vmatpush1.msra.mxu0 0.0
        %1120 = vmatprep.subr.mxu0 0.0
        %1121 = vmatpush1.msra.mxu0 0.0
        %1122 = vmatprep.subr.mxu0 0.0
        %1123 = vmatpush1.msra.mxu0 0.0
        %1124 = vmatprep.subr.mxu0 0.0
        %1125 = vmatpush1.msra.mxu0 0.0
        %1126 = vmatprep.subr.mxu0 0.0
        %1127 = vmatpush1.msra.mxu0 0.0
        %1128 = vmatprep.subr.mxu0 0.0
        %1129 = vmatpush1.msra.mxu0 0.0
        %1130 = vmatprep.subr.mxu0 0.0
        %1131 = vmatpush1.msra.mxu0 0.0
        %1132 = vmatprep.subr.mxu0 0.0
        %1133 = vmatpush1.msra.mxu0 0.0
        %1134 = vmatprep.subr.mxu0 0.0
        %1135 = vmatpush1.msra.mxu0 0.0
        %1136 = vmatprep.subr.mxu0 0.0
        %1137 = vmatpush1.msra.mxu0 0.0
        %1138 = vmatprep.subr.mxu0 0.0
        %1139 = vmatpush1.msra.mxu0 0.0
        %1140 = vmatprep.subr.mxu0 0.0
        %1141 = vmatpush1.msra.mxu0 0.0
        %1142 = vmatprep.subr.mxu0 0.0
        %1143 = vmatpush1.msra.mxu0 0.0
        %1144 = vmatprep.subr.mxu0 0.0
        %1145 = vmatpush1.msra.mxu0 0.0
        %1146 = vmatprep.subr.mxu0 0.0
        %1147 = vmatpush1.msra.mxu0 0.0
        %1148 = vmatprep.subr.mxu0 0.0
        %1149 = vmatpush1.msra.mxu0 0.0
        %1150 = vmatprep.subr.mxu0 0.0
        %1151 = vmatpush1.msra.mxu0 0.0
        %1152 = vmatprep.subr.mxu0 0.0
        %1153 = vmatpush1.msra.mxu0 0.0
        %1154 = vmatprep.subr.mxu0 0.0
        %1155 = vmatpush1.msra.mxu0 0.0
        %1156 = vmatprep.subr.mxu0 0.0
        %1157 = vmatpush1.msra.mxu0 0.0
        %1158 = vmatprep.subr.mxu0 0.0
        %1159 = vmatpush1.msra.mxu0 0.0
        %1160 = vmatprep.subr.mxu0 0.0
        %1161 = vmatpush1.msra.mxu0 0.0
        %1162 = vmatprep.mubr.f32.mxu0 0.0
        %1163 = vmatmul.mubr.f32.gmra.mrb[0].mxu0 %v936
        %v1164 = vpop.f32.mrb[0].mxu0
        %v1165 = vadd.f32 %v636, %v1164
        %v1166 = vpop.f32.mrb[0].mxu0
        %v1167 = vadd.f32 %v638, %v1166
        %1168 = vmatprep.mubr.f32.mxu0 0.0
        %1169 = vmatmul.mubr.f32.gmra.mrb[0].mxu0 %v939
        %v1170 = vpop.f32.mrb[0].mxu0
        %v1171 = vadd.f32 %v642, %v1170
        %v1172 = vpop.f32.mrb[0].mxu0
        %v1173 = vadd.f32 %v644, %v1172
        %1174 = vmatprep.mubr.f32.mxu0 0.0
        %1175 = vmatmul.mubr.f32.gmra.mrb[0].mxu0 %v942
        %v1176 = vpop.f32.mrb[0].mxu0
        %v1177 = vadd.f32 %v648, %v1176
        %v1178 = vpop.f32.mrb[0].mxu0
        %v1179 = vadd.f32 %v650, %v1178
        %1180 = vmatprep.mubr.f32.mxu0 0.0
        %1181 = vmatmul.mubr.f32.gmra.mrb[0].mxu0 %v945
        %v1182 = vpop.f32.mrb[0].mxu0
        %v1183 = vadd.f32 %v654, %v1182
        %v1184 = vpop.f32.mrb[0].mxu0
        %v1185 = vadd.f32 %v656, %v1184
        %1186 = vmatprep.mubr.f32.mxu0 0.0
        %1187 = vmatmul.mubr.f32.gmra.mrb[0].mxu0 %v948
        %v1188 = vpop.f32.mrb[0].mxu0
        %v1189 = vadd.f32 %v660, %v1188
        %v1190 = vpop.f32.mrb[0].mxu0
        %v1191 = vadd.f32 %v662, %v1190
        %1192 = vmatprep.mubr.f32.mxu0 0.0
        %1193 = vmatmul.mubr.f32.gmra.mrb[0].mxu0 %v951
        %v1194 = vpop.f32.mrb[0].mxu0
        %v1195 = vadd.f32 %v666, %v1194
        %v1196 = vpop.f32.mrb[0].mxu0
        %v1197 = vadd.f32 %v668, %v1196
        %1198 = vmatprep.mubr.f32.mxu0 0.0
        %1199 = vmatmul.mubr.f32.gmra.mrb[0].mxu0 %v954
        %v1200 = vpop.f32.mrb[0].mxu0
        %v1201 = vadd.f32 %v672, %v1200
        %v1202 = vpop.f32.mrb[0].mxu0
        %v1203 = vadd.f32 %v674, %v1202
        %1204 = vmatprep.mubr.f32.mxu0 0.0
        %1205 = vmatmul.mubr.f32.gmra.mrb[0].mxu0 %v957
        %v1206 = vpop.f32.mrb[0].mxu0
        %v1207 = vadd.f32 %v678, %v1206
        %v1208 = vpop.f32.mrb[0].mxu0
        %v1209 = vadd.f32 %v680, %v1208
        %1210 = vmatprep.mubr.f32.mxu0 0.0
        %1211 = vmatmul.mubr.f32.gmra.mrb[0].mxu0 %v960
        %v1212 = vpop.f32.mrb[0].mxu0
        %v1213 = vadd.f32 %v684, %v1212
        %v1214 = vpop.f32.mrb[0].mxu0
        %v1215 = vadd.f32 %v686, %v1214
        %1216 = vdwg.mxu0
        %1217 = vmatprep.subr.mxu0 %v973
        %1218 = vmatpush1.msra.mxu0 %v971
        %1219 = vmatprep.subr.mxu0 0.0
        %1220 = vmatpush1.msra.mxu0 0.0
        %1221 = vmatprep.subr.mxu0 0.0
        %1222 = vmatpush1.msra.mxu0 0.0
        %1223 = vmatprep.subr.mxu0 0.0
        %1224 = vmatpush1.msra.mxu0 0.0
        %1225 = vmatprep.subr.mxu0 0.0
        %1226 = vmatpush1.msra.mxu0 0.0
        %1227 = vmatprep.subr.mxu0 0.0
        %1228 = vmatpush1.msra.mxu0 0.0
        %1229 = vmatprep.subr.mxu0 0.0
        %1230 = vmatpush1.msra.mxu0 0.0
        %1231 = vmatprep.subr.mxu0 0.0
        %1232 = vmatpush1.msra.mxu0 0.0
        %1233 = vmatprep.subr.mxu0 0.0
        %1234 = vmatpush1.msra.mxu0 0.0
        %1235 = vmatprep.subr.mxu0 0.0
        %1236 = vmatpush1.msra.mxu0 0.0
        %1237 = vmatprep.subr.mxu0 0.0
        %1238 = vmatpush1.msra.mxu0 0.0
        %1239 = vmatprep.subr.mxu0 0.0
        %1240 = vmatpush1.msra.mxu0 0.0
        %1241 = vmatprep.subr.mxu0 0.0
        %1242 = vmatpush1.msra.mxu0 0.0
        %1243 = vmatprep.subr.mxu0 0.0
        %1244 = vmatpush1.msra.mxu0 0.0
        %1245 = vmatprep.subr.mxu0 0.0
        %1246 = vmatpush1.msra.mxu0 0.0
        %1247 = vmatprep.subr.mxu0 0.0
        %1248 = vmatpush1.msra.mxu0 0.0
        %1249 = vmatprep.subr.mxu0 0.0
        %1250 = vmatpush1.msra.mxu0 0.0
        %1251 = vmatprep.subr.mxu0 0.0
        %1252 = vmatpush1.msra.mxu0 0.0
        %1253 = vmatprep.subr.mxu0 0.0
        %1254 = vmatpush1.msra.mxu0 0.0
        %1255 = vmatprep.subr.mxu0 0.0
        %1256 = vmatpush1.msra.mxu0 0.0
        %1257 = vmatprep.subr.mxu0 0.0
        %1258 = vmatpush1.msra.mxu0 0.0
        %1259 = vmatprep.subr.mxu0 0.0
        %1260 = vmatpush1.msra.mxu0 0.0
        %1261 = vmatprep.subr.mxu0 0.0
        %1262 = vmatpush1.msra.mxu0 0.0
        %1263 = vmatprep.subr.mxu0 0.0
        %1264 = vmatpush1.msra.mxu0 0.0
        %1265 = vmatprep.subr.mxu0 0.0
        %1266 = vmatpush1.msra.mxu0 0.0
        %1267 = vmatprep.subr.mxu0 0.0
        %1268 = vmatpush1.msra.mxu0 0.0
        %1269 = vmatprep.subr.mxu0 0.0
        %1270 = vmatpush1.msra.mxu0 0.0
        %1271 = vmatprep.subr.mxu0 0.0
        %1272 = vmatpush1.msra.mxu0 0.0
        %1273 = vmatprep.subr.mxu0 0.0
        %1274 = vmatpush1.msra.mxu0 0.0
        %1275 = vmatprep.subr.mxu0 0.0
        %1276 = vmatpush1.msra.mxu0 0.0
        %1277 = vmatprep.subr.mxu0 0.0
        %1278 = vmatpush1.msra.mxu0 0.0
        %1279 = vmatprep.subr.mxu0 0.0
        %1280 = vmatpush1.msra.mxu0 0.0
        %1281 = vmatprep.mubr.f32.mxu0 0.0
        %1282 = vmatmul.mubr.f32.gmra.mrb[0].mxu0 %v936
        %v1283 = vpop.f32.mrb[0].mxu0
        %v1284 = vadd.f32 %v755, %v1283
        %v1285 = vpop.f32.mrb[0].mxu0
        %v1286 = vadd.f32 %v757, %v1285
        %1287 = vmatprep.mubr.f32.mxu0 0.0
        %1288 = vmatmul.mubr.f32.gmra.mrb[0].mxu0 %v939
        %v1289 = vpop.f32.mrb[0].mxu0
        %v1290 = vadd.f32 %v761, %v1289
        %v1291 = vpop.f32.mrb[0].mxu0
        %v1292 = vadd.f32 %v763, %v1291
        %1293 = vmatprep.mubr.f32.mxu0 0.0
        %1294 = vmatmul.mubr.f32.gmra.mrb[0].mxu0 %v942
        %v1295 = vpop.f32.mrb[0].mxu0
        %v1296 = vadd.f32 %v767, %v1295
        %v1297 = vpop.f32.mrb[0].mxu0
        %v1298 = vadd.f32 %v769, %v1297
        %1299 = vmatprep.mubr.f32.mxu0 0.0
        %1300 = vmatmul.mubr.f32.gmra.mrb[0].mxu0 %v945
        %v1301 = vpop.f32.mrb[0].mxu0
        %v1302 = vadd.f32 %v773, %v1301
        %v1303 = vpop.f32.mrb[0].mxu0
        %v1304 = vadd.f32 %v775, %v1303
        %1305 = vmatprep.mubr.f32.mxu0 0.0
        %1306 = vmatmul.mubr.f32.gmra.mrb[0].mxu0 %v948
        %v1307 = vpop.f32.mrb[0].mxu0
        %v1308 = vadd.f32 %v779, %v1307
        %v1309 = vpop.f32.mrb[0].mxu0
        %v1310 = vadd.f32 %v781, %v1309
        %1311 = vmatprep.mubr.f32.mxu0 0.0
        %1312 = vmatmul.mubr.f32.gmra.mrb[0].mxu0 %v951
        %v1313 = vpop.f32.mrb[0].mxu0
        %v1314 = vadd.f32 %v785, %v1313
        %v1315 = vpop.f32.mrb[0].mxu0
        %v1316 = vadd.f32 %v787, %v1315
        %1317 = vmatprep.mubr.f32.mxu0 0.0
        %1318 = vmatmul.mubr.f32.gmra.mrb[0].mxu0 %v954
        %v1319 = vpop.f32.mrb[0].mxu0
        %v1320 = vadd.f32 %v791, %v1319
        %v1321 = vpop.f32.mrb[0].mxu0
        %v1322 = vadd.f32 %v793, %v1321
        %1323 = vmatprep.mubr.f32.mxu0 0.0
        %1324 = vmatmul.mubr.f32.gmra.mrb[0].mxu0 %v957
        %v1325 = vpop.f32.mrb[0].mxu0
        %v1326 = vadd.f32 %v797, %v1325
        %v1327 = vpop.f32.mrb[0].mxu0
        %v1328 = vadd.f32 %v799, %v1327
        %1329 = vmatprep.mubr.f32.mxu0 0.0
        %1330 = vmatmul.mubr.f32.gmra.mrb[0].mxu0 %v960
        %v1331 = vpop.f32.mrb[0].mxu0
        %v1332 = vadd.f32 %v803, %v1331
        %v1333 = vpop.f32.mrb[0].mxu0
        %v1334 = vadd.f32 %v805, %v1333
        %1335 = vdwg.mxu0
        %1336 = vmatprep.subr.mxu0 %v977
        %1337 = vmatpush1.msra.mxu0 %v975
        %1338 = vmatprep.subr.mxu0 0.0
        %1339 = vmatpush1.msra.mxu0 0.0
        %1340 = vmatprep.subr.mxu0 0.0
        %1341 = vmatpush1.msra.mxu0 0.0
        %1342 = vmatprep.subr.mxu0 0.0
        %1343 = vmatpush1.msra.mxu0 0.0
        %1344 = vmatprep.subr.mxu0 0.0
        %1345 = vmatpush1.msra.mxu0 0.0
        %1346 = vmatprep.subr.mxu0 0.0
        %1347 = vmatpush1.msra.mxu0 0.0
        %1348 = vmatprep.subr.mxu0 0.0
        %1349 = vmatpush1.msra.mxu0 0.0
        %1350 = vmatprep.subr.mxu0 0.0
        %1351 = vmatpush1.msra.mxu0 0.0
        %1352 = vmatprep.subr.mxu0 0.0
        %1353 = vmatpush1.msra.mxu0 0.0
        %1354 = vmatprep.subr.mxu0 0.0
        %1355 = vmatpush1.msra.mxu0 0.0
        %1356 = vmatprep.subr.mxu0 0.0
        %1357 = vmatpush1.msra.mxu0 0.0
        %1358 = vmatprep.subr.mxu0 0.0
        %1359 = vmatpush1.msra.mxu0 0.0
        %1360 = vmatprep.subr.mxu0 0.0
        %1361 = vmatpush1.msra.mxu0 0.0
        %1362 = vmatprep.subr.mxu0 0.0
        %1363 = vmatpush1.msra.mxu0 0.0
        %1364 = vmatprep.subr.mxu0 0.0
        %1365 = vmatpush1.msra.mxu0 0.0
        %1366 = vmatprep.subr.mxu0 0.0
        %1367 = vmatpush1.msra.mxu0 0.0
        %1368 = vmatprep.subr.mxu0 0.0
        %1369 = vmatpush1.msra.mxu0 0.0
        %1370 = vmatprep.subr.mxu0 0.0
        %1371 = vmatpush1.msra.mxu0 0.0
        %1372 = vmatprep.subr.mxu0 0.0
        %1373 = vmatpush1.msra.mxu0 0.0
        %1374 = vmatprep.subr.mxu0 0.0
        %1375 = vmatpush1.msra.mxu0 0.0
        %1376 = vmatprep.subr.mxu0 0.0
        %1377 = vmatpush1.msra.mxu0 0.0
        %1378 = vmatprep.subr.mxu0 0.0
        %1379 = vmatpush1.msra.mxu0 0.0
        %1380 = vmatprep.subr.mxu0 0.0
        %1381 = vmatpush1.msra.mxu0 0.0
        %1382 = vmatprep.subr.mxu0 0.0
        %1383 = vmatpush1.msra.mxu0 0.0
        %1384 = vmatprep.subr.mxu0 0.0
        %1385 = vmatpush1.msra.mxu0 0.0
        %1386 = vmatprep.subr.mxu0 0.0
        %1387 = vmatpush1.msra.mxu0 0.0
        %1388 = vmatprep.subr.mxu0 0.0
        %1389 = vmatpush1.msra.mxu0 0.0
        %1390 = vmatprep.subr.mxu0 0.0
        %1391 = vmatpush1.msra.mxu0 0.0
        %1392 = vmatprep.subr.mxu0 0.0
        %1393 = vmatpush1.msra.mxu0 0.0
        %1394 = vmatprep.subr.mxu0 0.0
        %1395 = vmatpush1.msra.mxu0 0.0
        %1396 = vmatprep.subr.mxu0 0.0
        %1397 = vmatpush1.msra.mxu0 0.0
        %1398 = vmatprep.subr.mxu0 0.0
        %1399 = vmatpush1.msra.mxu0 0.0
        %1400 = vmatprep.mubr.f32.mxu0 0.0
        %1401 = vmatmul.mubr.f32.gmra.mrb[0].mxu0 %v936
        %v1402 = vpop.f32.mrb[0].mxu0
        %v1403 = vadd.f32 %v874, %v1402
        %v1404 = vpop.f32.mrb[0].mxu0
        %v1405 = vadd.f32 %v876, %v1404
        %1406 = vmatprep.mubr.f32.mxu0 0.0
        %1407 = vmatmul.mubr.f32.gmra.mrb[0].mxu0 %v939
        %v1408 = vpop.f32.mrb[0].mxu0
        %v1409 = vadd.f32 %v880, %v1408
        %v1410 = vpop.f32.mrb[0].mxu0
        %v1411 = vadd.f32 %v882, %v1410
        %1412 = vmatprep.mubr.f32.mxu0 0.0
        %1413 = vmatmul.mubr.f32.gmra.mrb[0].mxu0 %v942
        %v1414 = vpop.f32.mrb[0].mxu0
        %v1415 = vadd.f32 %v886, %v1414
        %v1416 = vpop.f32.mrb[0].mxu0
        %v1417 = vadd.f32 %v888, %v1416
        %1418 = vmatprep.mubr.f32.mxu0 0.0
        %1419 = vmatmul.mubr.f32.gmra.mrb[0].mxu0 %v945
        %v1420 = vpop.f32.mrb[0].mxu0
        %v1421 = vadd.f32 %v892, %v1420
        %v1422 = vpop.f32.mrb[0].mxu0
        %v1423 = vadd.f32 %v894, %v1422
        %1424 = vmatprep.mubr.f32.mxu0 0.0
        %1425 = vmatmul.mubr.f32.gmra.mrb[0].mxu0 %v948
        %v1426 = vpop.f32.mrb[0].mxu0
        %v1427 = vadd.f32 %v898, %v1426
        %v1428 = vpop.f32.mrb[0].mxu0
        %v1429 = vadd.f32 %v900, %v1428
        %1430 = vmatprep.mubr.f32.mxu0 0.0
        %1431 = vmatmul.mubr.f32.gmra.mrb[0].mxu0 %v951
        %v1432 = vpop.f32.mrb[0].mxu0
        %v1433 = vadd.f32 %v904, %v1432
        %v1434 = vpop.f32.mrb[0].mxu0
        %v1435 = vadd.f32 %v906, %v1434
        %1436 = vmatprep.mubr.f32.mxu0 0.0
        %1437 = vmatmul.mubr.f32.gmra.mrb[0].mxu0 %v954
        %v1438 = vpop.f32.mrb[0].mxu0
        %v1439 = vadd.f32 %v910, %v1438
        %v1440 = vpop.f32.mrb[0].mxu0
        %v1441 = vadd.f32 %v912, %v1440
        %1442 = vmatprep.mubr.f32.mxu0 0.0
        %1443 = vmatmul.mubr.f32.gmra.mrb[0].mxu0 %v957
        %v1444 = vpop.f32.mrb[0].mxu0
        %v1445 = vadd.f32 %v916, %v1444
        %v1446 = vpop.f32.mrb[0].mxu0
        %v1447 = vadd.f32 %v918, %v1446
        %1448 = vmatprep.mubr.f32.mxu0 0.0
        %1449 = vmatmul.mubr.f32.gmra.mrb[0].mxu0 %v960
        %v1450 = vpop.f32.mrb[0].mxu0
        %v1451 = vadd.f32 %v922, %v1450
        %v1452 = vpop.f32.mrb[0].mxu0
        %v1453 = vadd.f32 %v924, %v1452
        %1454 = vdwg.mxu0
        %1455 = vrot.lane.b32.xlu0 %v1046, 33
        %v1456 = vpop.permute.xlu0 %1455
        %1457 = vrot.lane.b32.xlu0 %v1048, 33
        %v1458 = vpop.permute.xlu0 %1457
        %1459 = vrot.lane.b32.xlu0 %v1165, 33
        %v1460 = vpop.permute.xlu0 %1459
        %1461 = vrot.lane.b32.xlu0 %v1167, 33
        %v1462 = vpop.permute.xlu0 %1461
        %1463 = vrot.lane.b32.xlu0 %v1284, 33
        %v1464 = vpop.permute.xlu0 %1463
        %1465 = vrot.lane.b32.xlu0 %v1286, 33
        %v1466 = vpop.permute.xlu0 %1465
        %1467 = vrot.lane.b32.xlu0 %v1403, 33
        %v1468 = vpop.permute.xlu0 %1467
        %1469 = vrot.lane.b32.xlu0 %v1405, 33
        %v1470 = vpop.permute.xlu0 %1469
        %v1471 = vlaneseq
        %v1472 = vand.u32 %v1471, 127
        %vm1473 = vcmp.lt.s32.totalorder %v1472, 33
        %v1474 = vsel %vm1473, %v1468, %v1470
        %v1475 = vsel %vm1473, %v1466, %v1468
        %v1476 = vsel %vm1473, %v1464, %v1466
        %v1477 = vsel %vm1473, %v1462, %v1464
        %v1478 = vsel %vm1473, %v1460, %v1462
        %v1479 = vsel %vm1473, %v1458, %v1460
        %v1480 = vsel %vm1473, %v1456, %v1458
        %v1481 = vsel %vm1473, %v1470, %v1456
        %v1482 = vld [vmem:[#allocation5] sm:$0x11]
        %v1483 = vld [vmem:[#allocation5 + $0x8] sm:$0x11]
        %v1484 = vld [vmem:[#allocation5 + $0x10] sm:$0x11]
        %v1485 = vld [vmem:[#allocation5 + $0x18] sm:$0x11]
        %v1486 = vunpack.c.l.bf16 %v1482
        %v1487 = vunpack.c.h.bf16 %v1482
        %v1488 = vunpack.c.l.bf16 %v1483
        %v1489 = vunpack.c.h.bf16 %v1483
        %v1490 = vunpack.c.l.bf16 %v1484
        %v1491 = vunpack.c.h.bf16 %v1484
        %v1492 = vunpack.c.l.bf16 %v1485
        %v1493 = vunpack.c.h.bf16 %v1485
        %v1494 = vlaneseq
        %v1495 = vshrl.u32 %v1494, 7
        %v1496 = vsub.s32 0, %v1495
        %v1497 = vrot.slane %v1486, %v1496
        %v1498 = vlaneseq
        %v1499 = vshrl.u32 %v1498, 7
        %v1500 = vsub.s32 0, %v1499
        %v1501 = vrot.slane %v1487, %v1500
        %v1502 = vlaneseq
        %v1503 = vshrl.u32 %v1502, 7
        %v1504 = vsub.s32 0, %v1503
        %v1505 = vrot.slane %v1488, %v1504
        %v1506 = vlaneseq
        %v1507 = vshrl.u32 %v1506, 7
        %v1508 = vsub.s32 0, %v1507
        %v1509 = vrot.slane %v1489, %v1508
        %v1510 = vlaneseq
        %v1511 = vshrl.u32 %v1510, 7
        %v1512 = vsub.s32 0, %v1511
        %v1513 = vrot.slane %v1490, %v1512
        %v1514 = vlaneseq
        %v1515 = vshrl.u32 %v1514, 7
        %v1516 = vsub.s32 0, %v1515
        %v1517 = vrot.slane %v1491, %v1516
        %v1518 = vlaneseq
        %v1519 = vshrl.u32 %v1518, 7
        %v1520 = vsub.s32 0, %v1519
        %v1521 = vrot.slane %v1492, %v1520
        %v1522 = vlaneseq
        %v1523 = vshrl.u32 %v1522, 7
        %v1524 = vsub.s32 0, %v1523
        %v1525 = vrot.slane %v1493, %v1524
        %v1526 = vmul.f32 %v1481, %v1497
        %v1527 = vmul.f32 %v1480, %v1501
        %v1528 = vmul.f32 %v1479, %v1505
        %v1529 = vmul.f32 %v1478, %v1509
        %v1530 = vmul.f32 %v1477, %v1513
        %v1531 = vmul.f32 %v1476, %v1517
        %v1532 = vmul.f32 %v1475, %v1521
        %v1533 = vmul.f32 %v1474, %v1525
        %1534 = vrot.lane.b32.xlu0 %v1052, 32
        %v1535 = vpop.permute.xlu0 %1534
        %1536 = vrot.lane.b32.xlu0 %v1054, 32
        %v1537 = vpop.permute.xlu0 %1536
        %1538 = vrot.lane.b32.xlu0 %v1171, 32
        %v1539 = vpop.permute.xlu0 %1538
        %1540 = vrot.lane.b32.xlu0 %v1173, 32
        %v1541 = vpop.permute.xlu0 %1540
        %1542 = vrot.lane.b32.xlu0 %v1290, 32
        %v1543 = vpop.permute.xlu0 %1542
        %1544 = vrot.lane.b32.xlu0 %v1292, 32
        %v1545 = vpop.permute.xlu0 %1544
        %1546 = vrot.lane.b32.xlu0 %v1409, 32
        %v1547 = vpop.permute.xlu0 %1546
        %1548 = vrot.lane.b32.xlu0 %v1411, 32
        %v1549 = vpop.permute.xlu0 %1548
        %vm1550 = vcmp.lt.s32.totalorder %v1472, 32
        %v1551 = vsel %vm1550, %v1547, %v1549
        %v1552 = vsel %vm1550, %v1545, %v1547
        %v1553 = vsel %vm1550, %v1543, %v1545
        %v1554 = vsel %vm1550, %v1541, %v1543
        %v1555 = vsel %vm1550, %v1539, %v1541
        %v1556 = vsel %vm1550, %v1537, %v1539
        %v1557 = vsel %vm1550, %v1535, %v1537
        %v1558 = vsel %vm1550, %v1549, %v1535
        %v1559 = vlaneseq
        %v1560 = vshrl.u32 %v1559, 7
        %v1561 = vsub.s32 1, %v1560
        %v1562 = vrot.slane %v1486, %v1561
        %v1563 = vlaneseq
        %v1564 = vshrl.u32 %v1563, 7
        %v1565 = vsub.s32 1, %v1564
        %v1566 = vrot.slane %v1487, %v1565
        %v1567 = vlaneseq
        %v1568 = vshrl.u32 %v1567, 7
        %v1569 = vsub.s32 1, %v1568
        %v1570 = vrot.slane %v1488, %v1569
        %v1571 = vlaneseq
        %v1572 = vshrl.u32 %v1571, 7
        %v1573 = vsub.s32 1, %v1572
        %v1574 = vrot.slane %v1489, %v1573
        %v1575 = vlaneseq
        %v1576 = vshrl.u32 %v1575, 7
        %v1577 = vsub.s32 1, %v1576
        %v1578 = vrot.slane %v1490, %v1577
        %v1579 = vlaneseq
        %v1580 = vshrl.u32 %v1579, 7
        %v1581 = vsub.s32 1, %v1580
        %v1582 = vrot.slane %v1491, %v1581
        %v1583 = vlaneseq
        %v1584 = vshrl.u32 %v1583, 7
        %v1585 = vsub.s32 1, %v1584
        %v1586 = vrot.slane %v1492, %v1585
        %v1587 = vlaneseq
        %v1588 = vshrl.u32 %v1587, 7
        %v1589 = vsub.s32 1, %v1588
        %v1590 = vrot.slane %v1493, %v1589
        %v1591 = vmul.f32 %v1558, %v1562
        %v1592 = vmul.f32 %v1557, %v1566
        %v1593 = vmul.f32 %v1556, %v1570
        %v1594 = vmul.f32 %v1555, %v1574
        %v1595 = vmul.f32 %v1554, %v1578
        %v1596 = vmul.f32 %v1553, %v1582
        %v1597 = vmul.f32 %v1552, %v1586
        %v1598 = vmul.f32 %v1551, %v1590
        %v1599 = vadd.f32 %v1526, %v1591
        %v1600 = vadd.f32 %v1527, %v1592
        %v1601 = vadd.f32 %v1528, %v1593
        %v1602 = vadd.f32 %v1529, %v1594
        %v1603 = vadd.f32 %v1530, %v1595
        %v1604 = vadd.f32 %v1531, %v1596
        %v1605 = vadd.f32 %v1532, %v1597
        %v1606 = vadd.f32 %v1533, %v1598
        %1607 = vrot.lane.b32.xlu0 %v1058, 31
        %v1608 = vpop.permute.xlu0 %1607
        %1609 = vrot.lane.b32.xlu0 %v1060, 31
        %v1610 = vpop.permute.xlu0 %1609
        %1611 = vrot.lane.b32.xlu0 %v1177, 31
        %v1612 = vpop.permute.xlu0 %1611
        %1613 = vrot.lane.b32.xlu0 %v1179, 31
        %v1614 = vpop.permute.xlu0 %1613
        %1615 = vrot.lane.b32.xlu0 %v1296, 31
        %v1616 = vpop.permute.xlu0 %1615
        %1617 = vrot.lane.b32.xlu0 %v1298, 31
        %v1618 = vpop.permute.xlu0 %1617
        %1619 = vrot.lane.b32.xlu0 %v1415, 31
        %v1620 = vpop.permute.xlu0 %1619
        %1621 = vrot.lane.b32.xlu0 %v1417, 31
        %v1622 = vpop.permute.xlu0 %1621
        %vm1623 = vcmp.lt.s32.totalorder %v1472, 31
        %v1624 = vsel %vm1623, %v1620, %v1622
        %v1625 = vsel %vm1623, %v1618, %v1620
        %v1626 = vsel %vm1623, %v1616, %v1618
        %v1627 = vsel %vm1623, %v1614, %v1616
        %v1628 = vsel %vm1623, %v1612, %v1614
        %v1629 = vsel %vm1623, %v1610, %v1612
        %v1630 = vsel %vm1623, %v1608, %v1610
        %v1631 = vsel %vm1623, %v1622, %v1608
        %v1632 = vld [vmem:[#allocation5] sm:$0x22]
        %v1633 = vld [vmem:[#allocation5 + $0x8] sm:$0x22]
        %v1634 = vld [vmem:[#allocation5 + $0x10] sm:$0x22]
        %v1635 = vld [vmem:[#allocation5 + $0x18] sm:$0x22]
        %v1636 = vunpack.c.l.bf16 %v1632
        %v1637 = vunpack.c.h.bf16 %v1632
        %v1638 = vunpack.c.l.bf16 %v1633
        %v1639 = vunpack.c.h.bf16 %v1633
        %v1640 = vunpack.c.l.bf16 %v1634
        %v1641 = vunpack.c.h.bf16 %v1634
        %v1642 = vunpack.c.l.bf16 %v1635
        %v1643 = vunpack.c.h.bf16 %v1635
        %v1644 = vlaneseq
        %v1645 = vshrl.u32 %v1644, 7
        %v1646 = vsub.s32 2, %v1645
        %v1647 = vrot.slane %v1636, %v1646
        %v1648 = vlaneseq
        %v1649 = vshrl.u32 %v1648, 7
        %v1650 = vsub.s32 2, %v1649
        %v1651 = vrot.slane %v1637, %v1650
        %v1652 = vlaneseq
        %v1653 = vshrl.u32 %v1652, 7
        %v1654 = vsub.s32 2, %v1653
        %v1655 = vrot.slane %v1638, %v1654
        %v1656 = vlaneseq
        %v1657 = vshrl.u32 %v1656, 7
        %v1658 = vsub.s32 2, %v1657
        %v1659 = vrot.slane %v1639, %v1658
        %v1660 = vlaneseq
        %v1661 = vshrl.u32 %v1660, 7
        %v1662 = vsub.s32 2, %v1661
        %v1663 = vrot.slane %v1640, %v1662
        %v1664 = vlaneseq
        %v1665 = vshrl.u32 %v1664, 7
        %v1666 = vsub.s32 2, %v1665
        %v1667 = vrot.slane %v1641, %v1666
        %v1668 = vlaneseq
        %v1669 = vshrl.u32 %v1668, 7
        %v1670 = vsub.s32 2, %v1669
        %v1671 = vrot.slane %v1642, %v1670
        %v1672 = vlaneseq
        %v1673 = vshrl.u32 %v1672, 7
        %v1674 = vsub.s32 2, %v1673
        %v1675 = vrot.slane %v1643, %v1674
        %v1676 = vmul.f32 %v1631, %v1647
        %v1677 = vmul.f32 %v1630, %v1651
        %v1678 = vmul.f32 %v1629, %v1655
        %v1679 = vmul.f32 %v1628, %v1659
        %v1680 = vmul.f32 %v1627, %v1663
        %v1681 = vmul.f32 %v1626, %v1667
        %v1682 = vmul.f32 %v1625, %v1671
        %v1683 = vmul.f32 %v1624, %v1675
        %v1684 = vadd.f32 %v1599, %v1676
        %v1685 = vadd.f32 %v1600, %v1677
        %v1686 = vadd.f32 %v1601, %v1678
        %v1687 = vadd.f32 %v1602, %v1679
        %v1688 = vadd.f32 %v1603, %v1680
        %v1689 = vadd.f32 %v1604, %v1681
        %v1690 = vadd.f32 %v1605, %v1682
        %v1691 = vadd.f32 %v1606, %v1683
        %1692 = vrot.lane.b32.xlu0 %v1064, 1
        %v1693 = vpop.permute.xlu0 %1692
        %1694 = vrot.lane.b32.xlu0 %v1066, 1
        %v1695 = vpop.permute.xlu0 %1694
        %1696 = vrot.lane.b32.xlu0 %v1183, 1
        %v1697 = vpop.permute.xlu0 %1696
        %1698 = vrot.lane.b32.xlu0 %v1185, 1
        %v1699 = vpop.permute.xlu0 %1698
        %1700 = vrot.lane.b32.xlu0 %v1302, 1
        %v1701 = vpop.permute.xlu0 %1700
        %1702 = vrot.lane.b32.xlu0 %v1304, 1
        %v1703 = vpop.permute.xlu0 %1702
        %1704 = vrot.lane.b32.xlu0 %v1421, 1
        %v1705 = vpop.permute.xlu0 %1704
        %1706 = vrot.lane.b32.xlu0 %v1423, 1
        %v1707 = vpop.permute.xlu0 %1706
        %vm1708 = vcmp.lt.s32.totalorder %v1472, 1
        %v1709 = vsel %vm1708, %v1705, %v1707
        %v1710 = vsel %vm1708, %v1703, %v1705
        %v1711 = vsel %vm1708, %v1701, %v1703
        %v1712 = vsel %vm1708, %v1699, %v1701
        %v1713 = vsel %vm1708, %v1697, %v1699
        %v1714 = vsel %vm1708, %v1695, %v1697
        %v1715 = vsel %vm1708, %v1693, %v1695
        %v1716 = vsel %vm1708, %v1707, %v1693
        %v1717 = vlaneseq
        %v1718 = vshrl.u32 %v1717, 7
        %v1719 = vsub.s32 3, %v1718
        %v1720 = vrot.slane %v1636, %v1719
        %v1721 = vlaneseq
        %v1722 = vshrl.u32 %v1721, 7
        %v1723 = vsub.s32 3, %v1722
        %v1724 = vrot.slane %v1637, %v1723
        %v1725 = vlaneseq
        %v1726 = vshrl.u32 %v1725, 7
        %v1727 = vsub.s32 3, %v1726
        %v1728 = vrot.slane %v1638, %v1727
        %v1729 = vlaneseq
        %v1730 = vshrl.u32 %v1729, 7
        %v1731 = vsub.s32 3, %v1730
        %v1732 = vrot.slane %v1639, %v1731
        %v1733 = vlaneseq
        %v1734 = vshrl.u32 %v1733, 7
        %v1735 = vsub.s32 3, %v1734
        %v1736 = vrot.slane %v1640, %v1735
        %v1737 = vlaneseq
        %v1738 = vshrl.u32 %v1737, 7
        %v1739 = vsub.s32 3, %v1738
        %v1740 = vrot.slane %v1641, %v1739
        %v1741 = vlaneseq
        %v1742 = vshrl.u32 %v1741, 7
        %v1743 = vsub.s32 3, %v1742
        %v1744 = vrot.slane %v1642, %v1743
        %v1745 = vlaneseq
        %v1746 = vshrl.u32 %v1745, 7
        %v1747 = vsub.s32 3, %v1746
        %v1748 = vrot.slane %v1643, %v1747
        %v1749 = vmul.f32 %v1716, %v1720
        %v1750 = vmul.f32 %v1715, %v1724
        %v1751 = vmul.f32 %v1714, %v1728
        %v1752 = vmul.f32 %v1713, %v1732
        %v1753 = vmul.f32 %v1712, %v1736
        %v1754 = vmul.f32 %v1711, %v1740
        %v1755 = vmul.f32 %v1710, %v1744
        %v1756 = vmul.f32 %v1709, %v1748
        %v1757 = vadd.f32 %v1684, %v1749
        %v1758 = vadd.f32 %v1685, %v1750
        %v1759 = vadd.f32 %v1686, %v1751
        %v1760 = vadd.f32 %v1687, %v1752
        %v1761 = vadd.f32 %v1688, %v1753
        %v1762 = vadd.f32 %v1689, %v1754
        %v1763 = vadd.f32 %v1690, %v1755
        %v1764 = vadd.f32 %v1691, %v1756
        %v1765 = vadd.f32 %v1757, %v1070
        %v1766 = vadd.f32 %v1758, %v1072
        %v1767 = vadd.f32 %v1759, %v1189
        %v1768 = vadd.f32 %v1760, %v1191
        %v1769 = vadd.f32 %v1761, %v1308
        %v1770 = vadd.f32 %v1762, %v1310
        %v1771 = vadd.f32 %v1763, %v1427
        %v1772 = vadd.f32 %v1764, %v1429
        %1773 = vrot.lane.b32.xlu0 %v1076, 127
        %v1774 = vpop.permute.xlu0 %1773
        %1775 = vrot.lane.b32.xlu0 %v1078, 127
        %v1776 = vpop.permute.xlu0 %1775
        %1777 = vrot.lane.b32.xlu0 %v1195, 127
        %v1778 = vpop.permute.xlu0 %1777
        %1779 = vrot.lane.b32.xlu0 %v1197, 127
        %v1780 = vpop.permute.xlu0 %1779
        %1781 = vrot.lane.b32.xlu0 %v1314, 127
        %v1782 = vpop.permute.xlu0 %1781
        %1783 = vrot.lane.b32.xlu0 %v1316, 127
        %v1784 = vpop.permute.xlu0 %1783
        %1785 = vrot.lane.b32.xlu0 %v1433, 127
        %v1786 = vpop.permute.xlu0 %1785
        %1787 = vrot.lane.b32.xlu0 %v1435, 127
        %v1788 = vpop.permute.xlu0 %1787
        %vm1789 = vcmp.lt.s32.totalorder %v1472, 127
        %v1790 = vsel %vm1789, %v1786, %v1788
        %v1791 = vsel %vm1789, %v1784, %v1786
        %v1792 = vsel %vm1789, %v1782, %v1784
        %v1793 = vsel %vm1789, %v1780, %v1782
        %v1794 = vsel %vm1789, %v1778, %v1780
        %v1795 = vsel %vm1789, %v1776, %v1778
        %v1796 = vsel %vm1789, %v1774, %v1776
        %v1797 = vsel %vm1789, %v1788, %v1774
        %v1798 = vld [vmem:[#allocation5] sm:$0x44]
        %v1799 = vld [vmem:[#allocation5 + $0x8] sm:$0x44]
        %v1800 = vld [vmem:[#allocation5 + $0x10] sm:$0x44]
        %v1801 = vld [vmem:[#allocation5 + $0x18] sm:$0x44]
        %v1802 = vunpack.c.l.bf16 %v1798
        %v1803 = vunpack.c.h.bf16 %v1798
        %v1804 = vunpack.c.l.bf16 %v1799
        %v1805 = vunpack.c.h.bf16 %v1799
        %v1806 = vunpack.c.l.bf16 %v1800
        %v1807 = vunpack.c.h.bf16 %v1800
        %v1808 = vunpack.c.l.bf16 %v1801
        %v1809 = vunpack.c.h.bf16 %v1801
        %v1810 = vlaneseq
        %v1811 = vshrl.u32 %v1810, 7
        %v1812 = vsub.s32 5, %v1811
        %v1813 = vrot.slane %v1802, %v1812
        %v1814 = vlaneseq
        %v1815 = vshrl.u32 %v1814, 7
        %v1816 = vsub.s32 5, %v1815
        %v1817 = vrot.slane %v1803, %v1816
        %v1818 = vlaneseq
        %v1819 = vshrl.u32 %v1818, 7
        %v1820 = vsub.s32 5, %v1819
        %v1821 = vrot.slane %v1804, %v1820
        %v1822 = vlaneseq
        %v1823 = vshrl.u32 %v1822, 7
        %v1824 = vsub.s32 5, %v1823
        %v1825 = vrot.slane %v1805, %v1824
        %v1826 = vlaneseq
        %v1827 = vshrl.u32 %v1826, 7
        %v1828 = vsub.s32 5, %v1827
        %v1829 = vrot.slane %v1806, %v1828
        %v1830 = vlaneseq
        %v1831 = vshrl.u32 %v1830, 7
        %v1832 = vsub.s32 5, %v1831
        %v1833 = vrot.slane %v1807, %v1832
        %v1834 = vlaneseq
        %v1835 = vshrl.u32 %v1834, 7
        %v1836 = vsub.s32 5, %v1835
        %v1837 = vrot.slane %v1808, %v1836
        %v1838 = vlaneseq
        %v1839 = vshrl.u32 %v1838, 7
        %v1840 = vsub.s32 5, %v1839
        %v1841 = vrot.slane %v1809, %v1840
        %v1842 = vmul.f32 %v1796, %v1813
        %v1843 = vmul.f32 %v1795, %v1817
        %v1844 = vmul.f32 %v1794, %v1821
        %v1845 = vmul.f32 %v1793, %v1825
        %v1846 = vmul.f32 %v1792, %v1829
        %v1847 = vmul.f32 %v1791, %v1833
        %v1848 = vmul.f32 %v1790, %v1837
        %v1849 = vmul.f32 %v1797, %v1841
        %v1850 = vadd.f32 %v1765, %v1842
        %v1851 = vadd.f32 %v1766, %v1843
        %v1852 = vadd.f32 %v1767, %v1844
        %v1853 = vadd.f32 %v1768, %v1845
        %v1854 = vadd.f32 %v1769, %v1846
        %v1855 = vadd.f32 %v1770, %v1847
        %v1856 = vadd.f32 %v1771, %v1848
        %v1857 = vadd.f32 %v1772, %v1849
        %1858 = vrot.lane.b32.xlu0 %v1082, 97
        %v1859 = vpop.permute.xlu0 %1858
        %1860 = vrot.lane.b32.xlu0 %v1084, 97
        %v1861 = vpop.permute.xlu0 %1860
        %1862 = vrot.lane.b32.xlu0 %v1201, 97
        %v1863 = vpop.permute.xlu0 %1862
        %1864 = vrot.lane.b32.xlu0 %v1203, 97
        %v1865 = vpop.permute.xlu0 %1864
        %1866 = vrot.lane.b32.xlu0 %v1320, 97
        %v1867 = vpop.permute.xlu0 %1866
        %1868 = vrot.lane.b32.xlu0 %v1322, 97
        %v1869 = vpop.permute.xlu0 %1868
        %1870 = vrot.lane.b32.xlu0 %v1439, 97
        %v1871 = vpop.permute.xlu0 %1870
        %1872 = vrot.lane.b32.xlu0 %v1441, 97
        %v1873 = vpop.permute.xlu0 %1872
        %vm1874 = vcmp.lt.s32.totalorder %v1472, 97
        %v1875 = vsel %vm1874, %v1871, %v1873
        %v1876 = vsel %vm1874, %v1869, %v1871
        %v1877 = vsel %vm1874, %v1867, %v1869
        %v1878 = vsel %vm1874, %v1865, %v1867
        %v1879 = vsel %vm1874, %v1863, %v1865
        %v1880 = vsel %vm1874, %v1861, %v1863
        %v1881 = vsel %vm1874, %v1859, %v1861
        %v1882 = vsel %vm1874, %v1873, %v1859
        %v1883 = vld [vmem:[#allocation5] sm:$0x88]
        %v1884 = vld [vmem:[#allocation5 + $0x8] sm:$0x88]
        %v1885 = vld [vmem:[#allocation5 + $0x10] sm:$0x88]
        %v1886 = vld [vmem:[#allocation5 + $0x18] sm:$0x88]
        %v1887 = vunpack.c.l.bf16 %v1883
        %v1888 = vunpack.c.h.bf16 %v1883
        %v1889 = vunpack.c.l.bf16 %v1884
        %v1890 = vunpack.c.h.bf16 %v1884
        %v1891 = vunpack.c.l.bf16 %v1885
        %v1892 = vunpack.c.h.bf16 %v1885
        %v1893 = vunpack.c.l.bf16 %v1886
        %v1894 = vunpack.c.h.bf16 %v1886
        %v1895 = vlaneseq
        %v1896 = vshrl.u32 %v1895, 7
        %v1897 = vsub.s32 6, %v1896
        %v1898 = vrot.slane %v1887, %v1897
        %v1899 = vlaneseq
        %v1900 = vshrl.u32 %v1899, 7
        %v1901 = vsub.s32 6, %v1900
        %v1902 = vrot.slane %v1888, %v1901
        %v1903 = vlaneseq
        %v1904 = vshrl.u32 %v1903, 7
        %v1905 = vsub.s32 6, %v1904
        %v1906 = vrot.slane %v1889, %v1905
        %v1907 = vlaneseq
        %v1908 = vshrl.u32 %v1907, 7
        %v1909 = vsub.s32 6, %v1908
        %v1910 = vrot.slane %v1890, %v1909
        %v1911 = vlaneseq
        %v1912 = vshrl.u32 %v1911, 7
        %v1913 = vsub.s32 6, %v1912
        %v1914 = vrot.slane %v1891, %v1913
        %v1915 = vlaneseq
        %v1916 = vshrl.u32 %v1915, 7
        %v1917 = vsub.s32 6, %v1916
        %v1918 = vrot.slane %v1892, %v1917
        %v1919 = vlaneseq
        %v1920 = vshrl.u32 %v1919, 7
        %v1921 = vsub.s32 6, %v1920
        %v1922 = vrot.slane %v1893, %v1921
        %v1923 = vlaneseq
        %v1924 = vshrl.u32 %v1923, 7
        %v1925 = vsub.s32 6, %v1924
        %v1926 = vrot.slane %v1894, %v1925
        %v1927 = vmul.f32 %v1881, %v1898
        %v1928 = vmul.f32 %v1880, %v1902
        %v1929 = vmul.f32 %v1879, %v1906
        %v1930 = vmul.f32 %v1878, %v1910
        %v1931 = vmul.f32 %v1877, %v1914
        %v1932 = vmul.f32 %v1876, %v1918
        %v1933 = vmul.f32 %v1875, %v1922
        %v1934 = vmul.f32 %v1882, %v1926
        %v1935 = vadd.f32 %v1850, %v1927
        %v1936 = vadd.f32 %v1851, %v1928
        %v1937 = vadd.f32 %v1852, %v1929
        %v1938 = vadd.f32 %v1853, %v1930
        %v1939 = vadd.f32 %v1854, %v1931
        %v1940 = vadd.f32 %v1855, %v1932
        %v1941 = vadd.f32 %v1856, %v1933
        %v1942 = vadd.f32 %v1857, %v1934
        %1943 = vrot.lane.b32.xlu0 %v1088, 96
        %v1944 = vpop.permute.xlu0 %1943
        %1945 = vrot.lane.b32.xlu0 %v1090, 96
        %v1946 = vpop.permute.xlu0 %1945
        %1947 = vrot.lane.b32.xlu0 %v1207, 96
        %v1948 = vpop.permute.xlu0 %1947
        %1949 = vrot.lane.b32.xlu0 %v1209, 96
        %v1950 = vpop.permute.xlu0 %1949
        %1951 = vrot.lane.b32.xlu0 %v1326, 96
        %v1952 = vpop.permute.xlu0 %1951
        %1953 = vrot.lane.b32.xlu0 %v1328, 96
        %v1954 = vpop.permute.xlu0 %1953
        %1955 = vrot.lane.b32.xlu0 %v1445, 96
        %v1956 = vpop.permute.xlu0 %1955
        %1957 = vrot.lane.b32.xlu0 %v1447, 96
        %v1958 = vpop.permute.xlu0 %1957
        %vm1959 = vcmp.lt.s32.totalorder %v1472, 96
        %v1960 = vsel %vm1959, %v1956, %v1958
        %v1961 = vsel %vm1959, %v1954, %v1956
        %v1962 = vsel %vm1959, %v1952, %v1954
        %v1963 = vsel %vm1959, %v1950, %v1952
        %v1964 = vsel %vm1959, %v1948, %v1950
        %v1965 = vsel %vm1959, %v1946, %v1948
        %v1966 = vsel %vm1959, %v1944, %v1946
        %v1967 = vsel %vm1959, %v1958, %v1944
        %v1968 = vlaneseq
        %v1969 = vshrl.u32 %v1968, 7
        %v1970 = vsub.s32 7, %v1969
        %v1971 = vrot.slane %v1887, %v1970
        %v1972 = vlaneseq
        %v1973 = vshrl.u32 %v1972, 7
        %v1974 = vsub.s32 7, %v1973
        %v1975 = vrot.slane %v1888, %v1974
        %v1976 = vlaneseq
        %v1977 = vshrl.u32 %v1976, 7
        %v1978 = vsub.s32 7, %v1977
        %v1979 = vrot.slane %v1889, %v1978
        %v1980 = vlaneseq
        %v1981 = vshrl.u32 %v1980, 7
        %v1982 = vsub.s32 7, %v1981
        %v1983 = vrot.slane %v1890, %v1982
        %v1984 = vlaneseq
        %v1985 = vshrl.u32 %v1984, 7
        %v1986 = vsub.s32 7, %v1985
        %v1987 = vrot.slane %v1891, %v1986
        %v1988 = vlaneseq
        %v1989 = vshrl.u32 %v1988, 7
        %v1990 = vsub.s32 7, %v1989
        %v1991 = vrot.slane %v1892, %v1990
        %v1992 = vlaneseq
        %v1993 = vshrl.u32 %v1992, 7
        %v1994 = vsub.s32 7, %v1993
        %v1995 = vrot.slane %v1893, %v1994
        %v1996 = vlaneseq
        %v1997 = vshrl.u32 %v1996, 7
        %v1998 = vsub.s32 7, %v1997
        %v1999 = vrot.slane %v1894, %v1998
        %v2000 = vmul.f32 %v1966, %v1971
        %v2001 = vmul.f32 %v1965, %v1975
        %v2002 = vmul.f32 %v1964, %v1979
        %v2003 = vmul.f32 %v1963, %v1983
        %v2004 = vmul.f32 %v1962, %v1987
        %v2005 = vmul.f32 %v1961, %v1991
        %v2006 = vmul.f32 %v1960, %v1995
        %v2007 = vmul.f32 %v1967, %v1999
        %v2008 = vadd.f32 %v1935, %v2000
        %v2009 = vadd.f32 %v1936, %v2001
        %v2010 = vadd.f32 %v1937, %v2002
        %v2011 = vadd.f32 %v1938, %v2003
        %v2012 = vadd.f32 %v1939, %v2004
        %v2013 = vadd.f32 %v1940, %v2005
        %v2014 = vadd.f32 %v1941, %v2006
        %v2015 = vadd.f32 %v1942, %v2007
        %2016 = vrot.lane.b32.xlu0 %v1094, 95
        %v2017 = vpop.permute.xlu0 %2016
        %2018 = vrot.lane.b32.xlu0 %v1096, 95
        %v2019 = vpop.permute.xlu0 %2018
        %2020 = vrot.lane.b32.xlu0 %v1213, 95
        %v2021 = vpop.permute.xlu0 %2020
        %2022 = vrot.lane.b32.xlu0 %v1215, 95
        %v2023 = vpop.permute.xlu0 %2022
        %2024 = vrot.lane.b32.xlu0 %v1332, 95
        %v2025 = vpop.permute.xlu0 %2024
        %2026 = vrot.lane.b32.xlu0 %v1334, 95
        %v2027 = vpop.permute.xlu0 %2026
        %2028 = vrot.lane.b32.xlu0 %v1451, 95
        %v2029 = vpop.permute.xlu0 %2028
        %2030 = vrot.lane.b32.xlu0 %v1453, 95
        %v2031 = vpop.permute.xlu0 %2030
        %vm2032 = vcmp.lt.s32.totalorder %v1472, 95
        %v2033 = vsel %vm2032, %v2029, %v2031
        %v2034 = vsel %vm2032, %v2027, %v2029
        %v2035 = vsel %vm2032, %v2025, %v2027
        %v2036 = vsel %vm2032, %v2023, %v2025
        %v2037 = vsel %vm2032, %v2021, %v2023
        %v2038 = vsel %vm2032, %v2019, %v2021
        %v2039 = vsel %vm2032, %v2017, %v2019
        %v2040 = vsel %vm2032, %v2031, %v2017
        %v2041 = vld [vmem:[#allocation5 + $0x20] sm:$0x11]
        %v2042 = vld [vmem:[#allocation5 + $0x28] sm:$0x11]
        %v2043 = vld [vmem:[#allocation5 + $0x30] sm:$0x11]
        %v2044 = vld [vmem:[#allocation5 + $0x38] sm:$0x11]
        %v2045 = vunpack.c.l.bf16 %v2041
        %v2046 = vunpack.c.h.bf16 %v2041
        %v2047 = vunpack.c.l.bf16 %v2042
        %v2048 = vunpack.c.h.bf16 %v2042
        %v2049 = vunpack.c.l.bf16 %v2043
        %v2050 = vunpack.c.h.bf16 %v2043
        %v2051 = vunpack.c.l.bf16 %v2044
        %v2052 = vunpack.c.h.bf16 %v2044
        %v2053 = vlaneseq
        %v2054 = vshrl.u32 %v2053, 7
        %v2055 = vsub.s32 0, %v2054
        %v2056 = vrot.slane %v2045, %v2055
        %v2057 = vlaneseq
        %v2058 = vshrl.u32 %v2057, 7
        %v2059 = vsub.s32 0, %v2058
        %v2060 = vrot.slane %v2046, %v2059
        %v2061 = vlaneseq
        %v2062 = vshrl.u32 %v2061, 7
        %v2063 = vsub.s32 0, %v2062
        %v2064 = vrot.slane %v2047, %v2063
        %v2065 = vlaneseq
        %v2066 = vshrl.u32 %v2065, 7
        %v2067 = vsub.s32 0, %v2066
        %v2068 = vrot.slane %v2048, %v2067
        %v2069 = vlaneseq
        %v2070 = vshrl.u32 %v2069, 7
        %v2071 = vsub.s32 0, %v2070
        %v2072 = vrot.slane %v2049, %v2071
        %v2073 = vlaneseq
        %v2074 = vshrl.u32 %v2073, 7
        %v2075 = vsub.s32 0, %v2074
        %v2076 = vrot.slane %v2050, %v2075
        %v2077 = vlaneseq
        %v2078 = vshrl.u32 %v2077, 7
        %v2079 = vsub.s32 0, %v2078
        %v2080 = vrot.slane %v2051, %v2079
        %v2081 = vlaneseq
        %v2082 = vshrl.u32 %v2081, 7
        %v2083 = vsub.s32 0, %v2082
        %v2084 = vrot.slane %v2052, %v2083
        %v2085 = vmul.f32 %v2039, %v2056
        %v2086 = vmul.f32 %v2038, %v2060
        %v2087 = vmul.f32 %v2037, %v2064
        %v2088 = vmul.f32 %v2036, %v2068
        %v2089 = vmul.f32 %v2035, %v2072
        %v2090 = vmul.f32 %v2034, %v2076
        %v2091 = vmul.f32 %v2033, %v2080
        %v2092 = vmul.f32 %v2040, %v2084
        %v2093 = vadd.f32 %v2008, %v2085
        %v2094 = vadd.f32 %v2009, %v2086
        %v2095 = vadd.f32 %v2010, %v2087
        %v2096 = vadd.f32 %v2011, %v2088
        %v2097 = vadd.f32 %v2012, %v2089
        %v2098 = vadd.f32 %v2013, %v2090
        %v2099 = vadd.f32 %v2014, %v2091
        %v2100 = vadd.f32 %v2015, %v2092
        %v2101 = vld [vmem:[%s7] sm:$0xff]
        %2103 = vset.pattern.permute.xlu0 0
        %2104 = vperm.xlu0 %2103, %v2101
        %v2105 = vpop.permute.xlu0 %2104
        %v2107 = vadd.f32 %v2093, %v2105
        %v2108 = vadd.f32 %v2094, %v2105
        %v2109 = vadd.f32 %v2095, %v2105
        %v2110 = vadd.f32 %v2096, %v2105
        %v2111 = vadd.f32 %v2097, %v2105
        %v2112 = vadd.f32 %v2098, %v2105
        %v2113 = vadd.f32 %v2099, %v2105
        %v2114 = vadd.f32 %v2100, %v2105
        %vm2115 = vcmp.ge.f32.partialorder %v2107, 0.0
        %vm2116 = vcmp.ge.f32.partialorder %v2108, 0.0
        %vm2117 = vcmp.ge.f32.partialorder %v2109, 0.0
        %vm2118 = vcmp.ge.f32.partialorder %v2110, 0.0
        %vm2119 = vcmp.ge.f32.partialorder %v2111, 0.0
        %vm2120 = vcmp.ge.f32.partialorder %v2112, 0.0
        %vm2121 = vcmp.ge.f32.partialorder %v2113, 0.0
        %vm2122 = vcmp.ge.f32.partialorder %v2114, 0.0
        %v2123 = vmul.f32 %v2107, 0.01
        %v2124 = vmul.f32 %v2108, 0.01
        %v2125 = vmul.f32 %v2109, 0.01
        %v2126 = vmul.f32 %v2110, 0.01
        %v2127 = vmul.f32 %v2111, 0.01
        %v2128 = vmul.f32 %v2112, 0.01
        %v2129 = vmul.f32 %v2113, 0.01
        %v2130 = vmul.f32 %v2114, 0.01
        %v2131 = vsel %vm2115, %v2107, %v2123
        %v2132 = vsel %vm2116, %v2108, %v2124
        %v2133 = vsel %vm2117, %v2109, %v2125
        %v2134 = vsel %vm2118, %v2110, %v2126
        %v2135 = vsel %vm2119, %v2111, %v2127
        %v2136 = vsel %vm2120, %v2112, %v2128
        %v2137 = vsel %vm2121, %v2113, %v2129
        %v2138 = vsel %vm2122, %v2114, %v2130
        %2139 = vset.pattern.permute.xlu0 1
        %2140 = vperm.xlu0 %2139, %v2101
        %v2141 = vpop.permute.xlu0 %2140
        %v2143 = vmul.f32 %v2131, %v2141
        %v2144 = vmul.f32 %v2132, %v2141
        %v2145 = vmul.f32 %v2133, %v2141
        %v2146 = vmul.f32 %v2134, %v2141
        %v2147 = vmul.f32 %v2135, %v2141
        %v2148 = vmul.f32 %v2136, %v2141
        %v2149 = vmul.f32 %v2137, %v2141
        %v2150 = vmul.f32 %v2138, %v2141
        %2151 = vset.pattern.permute.xlu0 2
        %2152 = vperm.xlu0 %2151, %v2101
        %v2153 = vpop.permute.xlu0 %2152
        %v2155 = vadd.f32 %v2143, %v2153
        %v2156 = vadd.f32 %v2144, %v2153
        %v2157 = vadd.f32 %v2145, %v2153
        %v2158 = vadd.f32 %v2146, %v2153
        %v2159 = vadd.f32 %v2147, %v2153
        %v2160 = vadd.f32 %v2148, %v2153
        %v2161 = vadd.f32 %v2149, %v2153
        %v2162 = vadd.f32 %v2150, %v2153
        %v2163 = vld [vmem:[%s4] sm:$0xff]
        %v2164 = vld [vmem:[%s4 + $0x8] sm:$0xff]
        %v2165 = vld [vmem:[%s4 + $0x10] sm:$0xff]
        %v2166 = vld [vmem:[%s4 + $0x18] sm:$0xff]
        %v2167 = vld [vmem:[%s4 + $0x20] sm:$0xff]
        %v2168 = vld [vmem:[%s4 + $0x28] sm:$0xff]
        %v2169 = vld [vmem:[%s4 + $0x30] sm:$0xff]
        %v2170 = vld [vmem:[%s4 + $0x38] sm:$0xff]
        %v2171 = vld [vmem:[%s4 + $0x40] sm:$0xff]
        %vm2172 = vcmask 64512
        %v2174 = vsel %vm2172, %v2163, 0
        %v2177 = vsel %vm2172, %v2164, 0
        %v2180 = vsel %vm2172, %v2165, 0
        %v2183 = vsel %vm2172, %v2166, 0
        %v2186 = vsel %vm2172, %v2167, 0
        %v2189 = vsel %vm2172, %v2168, 0
        %v2192 = vsel %vm2172, %v2169, 0
        %v2195 = vsel %vm2172, %v2170, 0
        %v2198 = vsel %vm2172, %v2171, 0
        %2200 = vmatprep.subr.mxu0 %v2156
        %2201 = vmatpush1.msra.mxu0 %v2155
        %2202 = vmatprep.subr.mxu0 0.0
        %2203 = vmatpush1.msra.mxu0 0.0
        %2204 = vmatprep.subr.mxu0 0.0
        %2205 = vmatpush1.msra.mxu0 0.0
        %2206 = vmatprep.subr.mxu0 0.0
        %2207 = vmatpush1.msra.mxu0 0.0
        %2208 = vmatprep.subr.mxu0 0.0
        %2209 = vmatpush1.msra.mxu0 0.0
        %2210 = vmatprep.subr.mxu0 0.0
        %2211 = vmatpush1.msra.mxu0 0.0
        %2212 = vmatprep.subr.mxu0 0.0
        %2213 = vmatpush1.msra.mxu0 0.0
        %2214 = vmatprep.subr.mxu0 0.0
        %2215 = vmatpush1.msra.mxu0 0.0
        %2216 = vmatprep.subr.mxu0 0.0
        %2217 = vmatpush1.msra.mxu0 0.0
        %2218 = vmatprep.subr.mxu0 0.0
        %2219 = vmatpush1.msra.mxu0 0.0
        %2220 = vmatprep.subr.mxu0 0.0
        %2221 = vmatpush1.msra.mxu0 0.0
        %2222 = vmatprep.subr.mxu0 0.0
        %2223 = vmatpush1.msra.mxu0 0.0
        %2224 = vmatprep.subr.mxu0 0.0
        %2225 = vmatpush1.msra.mxu0 0.0
        %2226 = vmatprep.subr.mxu0 0.0
        %2227 = vmatpush1.msra.mxu0 0.0
        %2228 = vmatprep.subr.mxu0 0.0
        %2229 = vmatpush1.msra.mxu0 0.0
        %2230 = vmatprep.subr.mxu0 0.0
        %2231 = vmatpush1.msra.mxu0 0.0
        %2232 = vmatprep.subr.mxu0 0.0
        %2233 = vmatpush1.msra.mxu0 0.0
        %2234 = vmatprep.subr.mxu0 0.0
        %2235 = vmatpush1.msra.mxu0 0.0
        %2236 = vmatprep.subr.mxu0 0.0
        %2237 = vmatpush1.msra.mxu0 0.0
        %2238 = vmatprep.subr.mxu0 0.0
        %2239 = vmatpush1.msra.mxu0 0.0
        %2240 = vmatprep.subr.mxu0 0.0
        %2241 = vmatpush1.msra.mxu0 0.0
        %2242 = vmatprep.subr.mxu0 0.0
        %2243 = vmatpush1.msra.mxu0 0.0
        %2244 = vmatprep.subr.mxu0 0.0
        %2245 = vmatpush1.msra.mxu0 0.0
        %2246 = vmatprep.subr.mxu0 0.0
        %2247 = vmatpush1.msra.mxu0 0.0
        %2248 = vmatprep.subr.mxu0 0.0
        %2249 = vmatpush1.msra.mxu0 0.0
        %2250 = vmatprep.subr.mxu0 0.0
        %2251 = vmatpush1.msra.mxu0 0.0
        %2252 = vmatprep.subr.mxu0 0.0
        %2253 = vmatpush1.msra.mxu0 0.0
        %2254 = vmatprep.subr.mxu0 0.0
        %2255 = vmatpush1.msra.mxu0 0.0
        %2256 = vmatprep.subr.mxu0 0.0
        %2257 = vmatpush1.msra.mxu0 0.0
        %2258 = vmatprep.subr.mxu0 0.0
        %2259 = vmatpush1.msra.mxu0 0.0
        %2260 = vmatprep.subr.mxu0 0.0
        %2261 = vmatpush1.msra.mxu0 0.0
        %2262 = vmatprep.subr.mxu0 0.0
        %2263 = vmatpush1.msra.mxu0 0.0
        %2264 = vmatprep.mubr.f32.mxu0 0.0
        %2265 = vmatmul.mubr.f32.gmra.mrb[0].mxu0 %v2174
        %v2266 = vpop.f32.mrb[0].mxu0
        %v2267 = vadd.f32 0.0, %v2266
        %v2268 = vpop.f32.mrb[0].mxu0
        %v2269 = vadd.f32 0.0, %v2268
        %2270 = vmatprep.mubr.f32.mxu0 0.0
        %2271 = vmatmul.mubr.f32.gmra.mrb[0].mxu0 %v2177
        %v2272 = vpop.f32.mrb[0].mxu0
        %v2273 = vadd.f32 0.0, %v2272
        %v2274 = vpop.f32.mrb[0].mxu0
        %v2275 = vadd.f32 0.0, %v2274
        %2276 = vmatprep.mubr.f32.mxu0 0.0
        %2277 = vmatmul.mubr.f32.gmra.mrb[0].mxu0 %v2180
        %v2278 = vpop.f32.mrb[0].mxu0
        %v2279 = vadd.f32 0.0, %v2278
        %v2280 = vpop.f32.mrb[0].mxu0
        %v2281 = vadd.f32 0.0, %v2280
        %2282 = vmatprep.mubr.f32.mxu0 0.0
        %2283 = vmatmul.mubr.f32.gmra.mrb[0].mxu0 %v2183
        %v2284 = vpop.f32.mrb[0].mxu0
        %v2285 = vadd.f32 0.0, %v2284
        %v2286 = vpop.f32.mrb[0].mxu0
        %v2287 = vadd.f32 0.0, %v2286
        %2288 = vmatprep.mubr.f32.mxu0 0.0
        %2289 = vmatmul.mubr.f32.gmra.mrb[0].mxu0 %v2186
        %v2290 = vpop.f32.mrb[0].mxu0
        %v2291 = vadd.f32 0.0, %v2290
        %v2292 = vpop.f32.mrb[0].mxu0
        %v2293 = vadd.f32 0.0, %v2292
        %2294 = vmatprep.mubr.f32.mxu0 0.0
        %2295 = vmatmul.mubr.f32.gmra.mrb[0].mxu0 %v2189
        %v2296 = vpop.f32.mrb[0].mxu0
        %v2297 = vadd.f32 0.0, %v2296
        %v2298 = vpop.f32.mrb[0].mxu0
        %v2299 = vadd.f32 0.0, %v2298
        %2300 = vmatprep.mubr.f32.mxu0 0.0
        %2301 = vmatmul.mubr.f32.gmra.mrb[0].mxu0 %v2192
        %v2302 = vpop.f32.mrb[0].mxu0
        %v2303 = vadd.f32 0.0, %v2302
        %v2304 = vpop.f32.mrb[0].mxu0
        %v2305 = vadd.f32 0.0, %v2304
        %2306 = vmatprep.mubr.f32.mxu0 0.0
        %2307 = vmatmul.mubr.f32.gmra.mrb[0].mxu0 %v2195
        %v2308 = vpop.f32.mrb[0].mxu0
        %v2309 = vadd.f32 0.0, %v2308
        %v2310 = vpop.f32.mrb[0].mxu0
        %v2311 = vadd.f32 0.0, %v2310
        %2312 = vmatprep.mubr.f32.mxu0 0.0
        %2313 = vmatmul.mubr.f32.gmra.mrb[0].mxu0 %v2198
        %v2314 = vpop.f32.mrb[0].mxu0
        %v2315 = vadd.f32 0.0, %v2314
        %v2316 = vpop.f32.mrb[0].mxu0
        %v2317 = vadd.f32 0.0, %v2316
        %2318 = vdwg.mxu0
        %2319 = vmatprep.subr.mxu0 %v2158
        %2320 = vmatpush1.msra.mxu0 %v2157
        %2321 = vmatprep.subr.mxu0 0.0
        %2322 = vmatpush1.msra.mxu0 0.0
        %2323 = vmatprep.subr.mxu0 0.0
        %2324 = vmatpush1.msra.mxu0 0.0
        %2325 = vmatprep.subr.mxu0 0.0
        %2326 = vmatpush1.msra.mxu0 0.0
        %2327 = vmatprep.subr.mxu0 0.0
        %2328 = vmatpush1.msra.mxu0 0.0
        %2329 = vmatprep.subr.mxu0 0.0
        %2330 = vmatpush1.msra.mxu0 0.0
        %2331 = vmatprep.subr.mxu0 0.0
        %2332 = vmatpush1.msra.mxu0 0.0
        %2333 = vmatprep.subr.mxu0 0.0
        %2334 = vmatpush1.msra.mxu0 0.0
        %2335 = vmatprep.subr.mxu0 0.0
        %2336 = vmatpush1.msra.mxu0 0.0
        %2337 = vmatprep.subr.mxu0 0.0
        %2338 = vmatpush1.msra.mxu0 0.0
        %2339 = vmatprep.subr.mxu0 0.0
        %2340 = vmatpush1.msra.mxu0 0.0
        %2341 = vmatprep.subr.mxu0 0.0
        %2342 = vmatpush1.msra.mxu0 0.0
        %2343 = vmatprep.subr.mxu0 0.0
        %2344 = vmatpush1.msra.mxu0 0.0
        %2345 = vmatprep.subr.mxu0 0.0
        %2346 = vmatpush1.msra.mxu0 0.0
        %2347 = vmatprep.subr.mxu0 0.0
        %2348 = vmatpush1.msra.mxu0 0.0
        %2349 = vmatprep.subr.mxu0 0.0
        %2350 = vmatpush1.msra.mxu0 0.0
        %2351 = vmatprep.subr.mxu0 0.0
        %2352 = vmatpush1.msra.mxu0 0.0
        %2353 = vmatprep.subr.mxu0 0.0
        %2354 = vmatpush1.msra.mxu0 0.0
        %2355 = vmatprep.subr.mxu0 0.0
        %2356 = vmatpush1.msra.mxu0 0.0
        %2357 = vmatprep.subr.mxu0 0.0
        %2358 = vmatpush1.msra.mxu0 0.0
        %2359 = vmatprep.subr.mxu0 0.0
        %2360 = vmatpush1.msra.mxu0 0.0
        %2361 = vmatprep.subr.mxu0 0.0
        %2362 = vmatpush1.msra.mxu0 0.0
        %2363 = vmatprep.subr.mxu0 0.0
        %2364 = vmatpush1.msra.mxu0 0.0
        %2365 = vmatprep.subr.mxu0 0.0
        %2366 = vmatpush1.msra.mxu0 0.0
        %2367 = vmatprep.subr.mxu0 0.0
        %2368 = vmatpush1.msra.mxu0 0.0
        %2369 = vmatprep.subr.mxu0 0.0
        %2370 = vmatpush1.msra.mxu0 0.0
        %2371 = vmatprep.subr.mxu0 0.0
        %2372 = vmatpush1.msra.mxu0 0.0
        %2373 = vmatprep.subr.mxu0 0.0
        %2374 = vmatpush1.msra.mxu0 0.0
        %2375 = vmatprep.subr.mxu0 0.0
        %2376 = vmatpush1.msra.mxu0 0.0
        %2377 = vmatprep.subr.mxu0 0.0
        %2378 = vmatpush1.msra.mxu0 0.0
        %2379 = vmatprep.subr.mxu0 0.0
        %2380 = vmatpush1.msra.mxu0 0.0
        %2381 = vmatprep.subr.mxu0 0.0
        %2382 = vmatpush1.msra.mxu0 0.0
        %2383 = vmatprep.mubr.f32.mxu0 0.0
        %2384 = vmatmul.mubr.f32.gmra.mrb[0].mxu0 %v2174
        %v2385 = vpop.f32.mrb[0].mxu0
        %v2386 = vadd.f32 0.0, %v2385
        %v2387 = vpop.f32.mrb[0].mxu0
        %v2388 = vadd.f32 0.0, %v2387
        %2389 = vmatprep.mubr.f32.mxu0 0.0
        %2390 = vmatmul.mubr.f32.gmra.mrb[0].mxu0 %v2177
        %v2391 = vpop.f32.mrb[0].mxu0
        %v2392 = vadd.f32 0.0, %v2391
        %v2393 = vpop.f32.mrb[0].mxu0
        %v2394 = vadd.f32 0.0, %v2393
        %2395 = vmatprep.mubr.f32.mxu0 0.0
        %2396 = vmatmul.mubr.f32.gmra.mrb[0].mxu0 %v2180
        %v2397 = vpop.f32.mrb[0].mxu0
        %v2398 = vadd.f32 0.0, %v2397
        %v2399 = vpop.f32.mrb[0].mxu0
        %v2400 = vadd.f32 0.0, %v2399
        %2401 = vmatprep.mubr.f32.mxu0 0.0
        %2402 = vmatmul.mubr.f32.gmra.mrb[0].mxu0 %v2183
        %v2403 = vpop.f32.mrb[0].mxu0
        %v2404 = vadd.f32 0.0, %v2403
        %v2405 = vpop.f32.mrb[0].mxu0
        %v2406 = vadd.f32 0.0, %v2405
        %2407 = vmatprep.mubr.f32.mxu0 0.0
        %2408 = vmatmul.mubr.f32.gmra.mrb[0].mxu0 %v2186
        %v2409 = vpop.f32.mrb[0].mxu0
        %v2410 = vadd.f32 0.0, %v2409
        %v2411 = vpop.f32.mrb[0].mxu0
        %v2412 = vadd.f32 0.0, %v2411
        %2413 = vmatprep.mubr.f32.mxu0 0.0
        %2414 = vmatmul.mubr.f32.gmra.mrb[0].mxu0 %v2189
        %v2415 = vpop.f32.mrb[0].mxu0
        %v2416 = vadd.f32 0.0, %v2415
        %v2417 = vpop.f32.mrb[0].mxu0
        %v2418 = vadd.f32 0.0, %v2417
        %2419 = vmatprep.mubr.f32.mxu0 0.0
        %2420 = vmatmul.mubr.f32.gmra.mrb[0].mxu0 %v2192
        %v2421 = vpop.f32.mrb[0].mxu0
        %v2422 = vadd.f32 0.0, %v2421
        %v2423 = vpop.f32.mrb[0].mxu0
        %v2424 = vadd.f32 0.0, %v2423
        %2425 = vmatprep.mubr.f32.mxu0 0.0
        %2426 = vmatmul.mubr.f32.gmra.mrb[0].mxu0 %v2195
        %v2427 = vpop.f32.mrb[0].mxu0
        %v2428 = vadd.f32 0.0, %v2427
        %v2429 = vpop.f32.mrb[0].mxu0
        %v2430 = vadd.f32 0.0, %v2429
        %2431 = vmatprep.mubr.f32.mxu0 0.0
        %2432 = vmatmul.mubr.f32.gmra.mrb[0].mxu0 %v2198
        %v2433 = vpop.f32.mrb[0].mxu0
        %v2434 = vadd.f32 0.0, %v2433
        %v2435 = vpop.f32.mrb[0].mxu0
        %v2436 = vadd.f32 0.0, %v2435
        %2437 = vdwg.mxu0
        %2438 = vmatprep.subr.mxu0 %v2160
        %2439 = vmatpush1.msra.mxu0 %v2159
        %2440 = vmatprep.subr.mxu0 0.0
        %2441 = vmatpush1.msra.mxu0 0.0
        %2442 = vmatprep.subr.mxu0 0.0
        %2443 = vmatpush1.msra.mxu0 0.0
        %2444 = vmatprep.subr.mxu0 0.0
        %2445 = vmatpush1.msra.mxu0 0.0
        %2446 = vmatprep.subr.mxu0 0.0
        %2447 = vmatpush1.msra.mxu0 0.0
        %2448 = vmatprep.subr.mxu0 0.0
        %2449 = vmatpush1.msra.mxu0 0.0
        %2450 = vmatprep.subr.mxu0 0.0
        %2451 = vmatpush1.msra.mxu0 0.0
        %2452 = vmatprep.subr.mxu0 0.0
        %2453 = vmatpush1.msra.mxu0 0.0
        %2454 = vmatprep.subr.mxu0 0.0
        %2455 = vmatpush1.msra.mxu0 0.0
        %2456 = vmatprep.subr.mxu0 0.0
        %2457 = vmatpush1.msra.mxu0 0.0
        %2458 = vmatprep.subr.mxu0 0.0
        %2459 = vmatpush1.msra.mxu0 0.0
        %2460 = vmatprep.subr.mxu0 0.0
        %2461 = vmatpush1.msra.mxu0 0.0
        %2462 = vmatprep.subr.mxu0 0.0
        %2463 = vmatpush1.msra.mxu0 0.0
        %2464 = vmatprep.subr.mxu0 0.0
        %2465 = vmatpush1.msra.mxu0 0.0
        %2466 = vmatprep.subr.mxu0 0.0
        %2467 = vmatpush1.msra.mxu0 0.0
        %2468 = vmatprep.subr.mxu0 0.0
        %2469 = vmatpush1.msra.mxu0 0.0
        %2470 = vmatprep.subr.mxu0 0.0
        %2471 = vmatpush1.msra.mxu0 0.0
        %2472 = vmatprep.subr.mxu0 0.0
        %2473 = vmatpush1.msra.mxu0 0.0
        %2474 = vmatprep.subr.mxu0 0.0
        %2475 = vmatpush1.msra.mxu0 0.0
        %2476 = vmatprep.subr.mxu0 0.0
        %2477 = vmatpush1.msra.mxu0 0.0
        %2478 = vmatprep.subr.mxu0 0.0
        %2479 = vmatpush1.msra.mxu0 0.0
        %2480 = vmatprep.subr.mxu0 0.0
        %2481 = vmatpush1.msra.mxu0 0.0
        %2482 = vmatprep.subr.mxu0 0.0
        %2483 = vmatpush1.msra.mxu0 0.0
        %2484 = vmatprep.subr.mxu0 0.0
        %2485 = vmatpush1.msra.mxu0 0.0
        %2486 = vmatprep.subr.mxu0 0.0
        %2487 = vmatpush1.msra.mxu0 0.0
        %2488 = vmatprep.subr.mxu0 0.0
        %2489 = vmatpush1.msra.mxu0 0.0
        %2490 = vmatprep.subr.mxu0 0.0
        %2491 = vmatpush1.msra.mxu0 0.0
        %2492 = vmatprep.subr.mxu0 0.0
        %2493 = vmatpush1.msra.mxu0 0.0
        %2494 = vmatprep.subr.mxu0 0.0
        %2495 = vmatpush1.msra.mxu0 0.0
        %2496 = vmatprep.subr.mxu0 0.0
        %2497 = vmatpush1.msra.mxu0 0.0
        %2498 = vmatprep.subr.mxu0 0.0
        %2499 = vmatpush1.msra.mxu0 0.0
        %2500 = vmatprep.subr.mxu0 0.0
        %2501 = vmatpush1.msra.mxu0 0.0
        %2502 = vmatprep.mubr.f32.mxu0 0.0
        %2503 = vmatmul.mubr.f32.gmra.mrb[0].mxu0 %v2174
        %v2504 = vpop.f32.mrb[0].mxu0
        %v2505 = vadd.f32 0.0, %v2504
        %v2506 = vpop.f32.mrb[0].mxu0
        %v2507 = vadd.f32 0.0, %v2506
        %2508 = vmatprep.mubr.f32.mxu0 0.0
        %2509 = vmatmul.mubr.f32.gmra.mrb[0].mxu0 %v2177
        %v2510 = vpop.f32.mrb[0].mxu0
        %v2511 = vadd.f32 0.0, %v2510
        %v2512 = vpop.f32.mrb[0].mxu0
        %v2513 = vadd.f32 0.0, %v2512
        %2514 = vmatprep.mubr.f32.mxu0 0.0
        %2515 = vmatmul.mubr.f32.gmra.mrb[0].mxu0 %v2180
        %v2516 = vpop.f32.mrb[0].mxu0
        %v2517 = vadd.f32 0.0, %v2516
        %v2518 = vpop.f32.mrb[0].mxu0
        %v2519 = vadd.f32 0.0, %v2518
        %2520 = vmatprep.mubr.f32.mxu0 0.0
        %2521 = vmatmul.mubr.f32.gmra.mrb[0].mxu0 %v2183
        %v2522 = vpop.f32.mrb[0].mxu0
        %v2523 = vadd.f32 0.0, %v2522
        %v2524 = vpop.f32.mrb[0].mxu0
        %v2525 = vadd.f32 0.0, %v2524
        %2526 = vmatprep.mubr.f32.mxu0 0.0
        %2527 = vmatmul.mubr.f32.gmra.mrb[0].mxu0 %v2186
        %v2528 = vpop.f32.mrb[0].mxu0
        %v2529 = vadd.f32 0.0, %v2528
        %v2530 = vpop.f32.mrb[0].mxu0
        %v2531 = vadd.f32 0.0, %v2530
        %2532 = vmatprep.mubr.f32.mxu0 0.0
        %2533 = vmatmul.mubr.f32.gmra.mrb[0].mxu0 %v2189
        %v2534 = vpop.f32.mrb[0].mxu0
        %v2535 = vadd.f32 0.0, %v2534
        %v2536 = vpop.f32.mrb[0].mxu0
        %v2537 = vadd.f32 0.0, %v2536
        %2538 = vmatprep.mubr.f32.mxu0 0.0
        %2539 = vmatmul.mubr.f32.gmra.mrb[0].mxu0 %v2192
        %v2540 = vpop.f32.mrb[0].mxu0
        %v2541 = vadd.f32 0.0, %v2540
        %v2542 = vpop.f32.mrb[0].mxu0
        %v2543 = vadd.f32 0.0, %v2542
        %2544 = vmatprep.mubr.f32.mxu0 0.0
        %2545 = vmatmul.mubr.f32.gmra.mrb[0].mxu0 %v2195
        %v2546 = vpop.f32.mrb[0].mxu0
        %v2547 = vadd.f32 0.0, %v2546
        %v2548 = vpop.f32.mrb[0].mxu0
        %v2549 = vadd.f32 0.0, %v2548
        %2550 = vmatprep.mubr.f32.mxu0 0.0
        %2551 = vmatmul.mubr.f32.gmra.mrb[0].mxu0 %v2198
        %v2552 = vpop.f32.mrb[0].mxu0
        %v2553 = vadd.f32 0.0, %v2552
        %v2554 = vpop.f32.mrb[0].mxu0
        %v2555 = vadd.f32 0.0, %v2554
        %2556 = vdwg.mxu0
        %2557 = vmatprep.subr.mxu0 %v2162
        %2558 = vmatpush1.msra.mxu0 %v2161
        %2559 = vmatprep.subr.mxu0 0.0
        %2560 = vmatpush1.msra.mxu0 0.0
        %2561 = vmatprep.subr.mxu0 0.0
        %2562 = vmatpush1.msra.mxu0 0.0
        %2563 = vmatprep.subr.mxu0 0.0
        %2564 = vmatpush1.msra.mxu0 0.0
        %2565 = vmatprep.subr.mxu0 0.0
        %2566 = vmatpush1.msra.mxu0 0.0
        %2567 = vmatprep.subr.mxu0 0.0
        %2568 = vmatpush1.msra.mxu0 0.0
        %2569 = vmatprep.subr.mxu0 0.0
        %2570 = vmatpush1.msra.mxu0 0.0
        %2571 = vmatprep.subr.mxu0 0.0
        %2572 = vmatpush1.msra.mxu0 0.0
        %2573 = vmatprep.subr.mxu0 0.0
        %2574 = vmatpush1.msra.mxu0 0.0
        %2575 = vmatprep.subr.mxu0 0.0
        %2576 = vmatpush1.msra.mxu0 0.0
        %2577 = vmatprep.subr.mxu0 0.0
        %2578 = vmatpush1.msra.mxu0 0.0
        %2579 = vmatprep.subr.mxu0 0.0
        %2580 = vmatpush1.msra.mxu0 0.0
        %2581 = vmatprep.subr.mxu0 0.0
        %2582 = vmatpush1.msra.mxu0 0.0
        %2583 = vmatprep.subr.mxu0 0.0
        %2584 = vmatpush1.msra.mxu0 0.0
        %2585 = vmatprep.subr.mxu0 0.0
        %2586 = vmatpush1.msra.mxu0 0.0
        %2587 = vmatprep.subr.mxu0 0.0
        %2588 = vmatpush1.msra.mxu0 0.0
        %2589 = vmatprep.subr.mxu0 0.0
        %2590 = vmatpush1.msra.mxu0 0.0
        %2591 = vmatprep.subr.mxu0 0.0
        %2592 = vmatpush1.msra.mxu0 0.0
        %2593 = vmatprep.subr.mxu0 0.0
        %2594 = vmatpush1.msra.mxu0 0.0
        %2595 = vmatprep.subr.mxu0 0.0
        %2596 = vmatpush1.msra.mxu0 0.0
        %2597 = vmatprep.subr.mxu0 0.0
        %2598 = vmatpush1.msra.mxu0 0.0
        %2599 = vmatprep.subr.mxu0 0.0
        %2600 = vmatpush1.msra.mxu0 0.0
        %2601 = vmatprep.subr.mxu0 0.0
        %2602 = vmatpush1.msra.mxu0 0.0
        %2603 = vmatprep.subr.mxu0 0.0
        %2604 = vmatpush1.msra.mxu0 0.0
        %2605 = vmatprep.subr.mxu0 0.0
        %2606 = vmatpush1.msra.mxu0 0.0
        %2607 = vmatprep.subr.mxu0 0.0
        %2608 = vmatpush1.msra.mxu0 0.0
        %2609 = vmatprep.subr.mxu0 0.0
        %2610 = vmatpush1.msra.mxu0 0.0
        %2611 = vmatprep.subr.mxu0 0.0
        %2612 = vmatpush1.msra.mxu0 0.0
        %2613 = vmatprep.subr.mxu0 0.0
        %2614 = vmatpush1.msra.mxu0 0.0
        %2615 = vmatprep.subr.mxu0 0.0
        %2616 = vmatpush1.msra.mxu0 0.0
        %2617 = vmatprep.subr.mxu0 0.0
        %2618 = vmatpush1.msra.mxu0 0.0
        %2619 = vmatprep.subr.mxu0 0.0
        %2620 = vmatpush1.msra.mxu0 0.0
        %2621 = vmatprep.mubr.f32.mxu0 0.0
        %2622 = vmatmul.mubr.f32.gmra.mrb[0].mxu0 %v2174
        %v2623 = vpop.f32.mrb[0].mxu0
        %v2624 = vadd.f32 0.0, %v2623
        %v2625 = vpop.f32.mrb[0].mxu0
        %v2626 = vadd.f32 0.0, %v2625
        %2627 = vmatprep.mubr.f32.mxu0 0.0
        %2628 = vmatmul.mubr.f32.gmra.mrb[0].mxu0 %v2177
        %v2629 = vpop.f32.mrb[0].mxu0
        %v2630 = vadd.f32 0.0, %v2629
        %v2631 = vpop.f32.mrb[0].mxu0
        %v2632 = vadd.f32 0.0, %v2631
        %2633 = vmatprep.mubr.f32.mxu0 0.0
        %2634 = vmatmul.mubr.f32.gmra.mrb[0].mxu0 %v2180
        %v2635 = vpop.f32.mrb[0].mxu0
        %v2636 = vadd.f32 0.0, %v2635
        %v2637 = vpop.f32.mrb[0].mxu0
        %v2638 = vadd.f32 0.0, %v2637
        %2639 = vmatprep.mubr.f32.mxu0 0.0
        %2640 = vmatmul.mubr.f32.gmra.mrb[0].mxu0 %v2183
        %v2641 = vpop.f32.mrb[0].mxu0
        %v2642 = vadd.f32 0.0, %v2641
        %v2643 = vpop.f32.mrb[0].mxu0
        %v2644 = vadd.f32 0.0, %v2643
        %2645 = vmatprep.mubr.f32.mxu0 0.0
        %2646 = vmatmul.mubr.f32.gmra.mrb[0].mxu0 %v2186
        %v2647 = vpop.f32.mrb[0].mxu0
        %v2648 = vadd.f32 0.0, %v2647
        %v2649 = vpop.f32.mrb[0].mxu0
        %v2650 = vadd.f32 0.0, %v2649
        %2651 = vmatprep.mubr.f32.mxu0 0.0
        %2652 = vmatmul.mubr.f32.gmra.mrb[0].mxu0 %v2189
        %v2653 = vpop.f32.mrb[0].mxu0
        %v2654 = vadd.f32 0.0, %v2653
        %v2655 = vpop.f32.mrb[0].mxu0
        %v2656 = vadd.f32 0.0, %v2655
        %2657 = vmatprep.mubr.f32.mxu0 0.0
        %2658 = vmatmul.mubr.f32.gmra.mrb[0].mxu0 %v2192
        %v2659 = vpop.f32.mrb[0].mxu0
        %v2660 = vadd.f32 0.0, %v2659
        %v2661 = vpop.f32.mrb[0].mxu0
        %v2662 = vadd.f32 0.0, %v2661
        %2663 = vmatprep.mubr.f32.mxu0 0.0
        %2664 = vmatmul.mubr.f32.gmra.mrb[0].mxu0 %v2195
        %v2665 = vpop.f32.mrb[0].mxu0
        %v2666 = vadd.f32 0.0, %v2665
        %v2667 = vpop.f32.mrb[0].mxu0
        %v2668 = vadd.f32 0.0, %v2667
        %2669 = vmatprep.mubr.f32.mxu0 0.0
        %2670 = vmatmul.mubr.f32.gmra.mrb[0].mxu0 %v2198
        %v2671 = vpop.f32.mrb[0].mxu0
        %v2672 = vadd.f32 0.0, %v2671
        %v2673 = vpop.f32.mrb[0].mxu0
        %v2674 = vadd.f32 0.0, %v2673
        %2675 = vdwg.mxu0
        %2676 = vrot.lane.b32.xlu0 %v2267, 66
        %v2677 = vpop.permute.xlu0 %2676
        %2678 = vrot.lane.b32.xlu0 %v2269, 66
        %v2679 = vpop.permute.xlu0 %2678
        %2680 = vrot.lane.b32.xlu0 %v2386, 66
        %v2681 = vpop.permute.xlu0 %2680
        %2682 = vrot.lane.b32.xlu0 %v2388, 66
        %v2683 = vpop.permute.xlu0 %2682
        %2684 = vrot.lane.b32.xlu0 %v2505, 66
        %v2685 = vpop.permute.xlu0 %2684
        %2686 = vrot.lane.b32.xlu0 %v2507, 66
        %v2687 = vpop.permute.xlu0 %2686
        %2688 = vrot.lane.b32.xlu0 %v2624, 66
        %v2689 = vpop.permute.xlu0 %2688
        %2690 = vrot.lane.b32.xlu0 %v2626, 66
        %v2691 = vpop.permute.xlu0 %2690
        %vm2692 = vcmp.lt.s32.totalorder %v1472, 66
        %v2693 = vsel %vm2692, %v2689, %v2691
        %v2694 = vsel %vm2692, %v2687, %v2689
        %v2695 = vsel %vm2692, %v2685, %v2687
        %v2696 = vsel %vm2692, %v2683, %v2685
        %v2697 = vsel %vm2692, %v2681, %v2683
        %v2698 = vsel %vm2692, %v2679, %v2681
        %v2699 = vsel %vm2692, %v2677, %v2679
        %v2700 = vsel %vm2692, %v2691, %v2677
        %v2701 = vlaneseq
        %v2702 = vshrl.u32 %v2701, 7
        %v2703 = vsub.s32 1, %v2702
        %v2704 = vrot.slane %v2045, %v2703
        %v2705 = vlaneseq
        %v2706 = vshrl.u32 %v2705, 7
        %v2707 = vsub.s32 1, %v2706
        %v2708 = vrot.slane %v2046, %v2707
        %v2709 = vlaneseq
        %v2710 = vshrl.u32 %v2709, 7
        %v2711 = vsub.s32 1, %v2710
        %v2712 = vrot.slane %v2047, %v2711
        %v2713 = vlaneseq
        %v2714 = vshrl.u32 %v2713, 7
        %v2715 = vsub.s32 1, %v2714
        %v2716 = vrot.slane %v2048, %v2715
        %v2717 = vlaneseq
        %v2718 = vshrl.u32 %v2717, 7
        %v2719 = vsub.s32 1, %v2718
        %v2720 = vrot.slane %v2049, %v2719
        %v2721 = vlaneseq
        %v2722 = vshrl.u32 %v2721, 7
        %v2723 = vsub.s32 1, %v2722
        %v2724 = vrot.slane %v2050, %v2723
        %v2725 = vlaneseq
        %v2726 = vshrl.u32 %v2725, 7
        %v2727 = vsub.s32 1, %v2726
        %v2728 = vrot.slane %v2051, %v2727
        %v2729 = vlaneseq
        %v2730 = vshrl.u32 %v2729, 7
        %v2731 = vsub.s32 1, %v2730
        %v2732 = vrot.slane %v2052, %v2731
        %v2733 = vmul.f32 %v2700, %v2704
        %v2734 = vmul.f32 %v2699, %v2708
        %v2735 = vmul.f32 %v2698, %v2712
        %v2736 = vmul.f32 %v2697, %v2716
        %v2737 = vmul.f32 %v2696, %v2720
        %v2738 = vmul.f32 %v2695, %v2724
        %v2739 = vmul.f32 %v2694, %v2728
        %v2740 = vmul.f32 %v2693, %v2732
        %2741 = vrot.lane.b32.xlu0 %v2273, 64
        %v2742 = vpop.permute.xlu0 %2741
        %2743 = vrot.lane.b32.xlu0 %v2275, 64
        %v2744 = vpop.permute.xlu0 %2743
        %2745 = vrot.lane.b32.xlu0 %v2392, 64
        %v2746 = vpop.permute.xlu0 %2745
        %2747 = vrot.lane.b32.xlu0 %v2394, 64
        %v2748 = vpop.permute.xlu0 %2747
        %2749 = vrot.lane.b32.xlu0 %v2511, 64
        %v2750 = vpop.permute.xlu0 %2749
        %2751 = vrot.lane.b32.xlu0 %v2513, 64
        %v2752 = vpop.permute.xlu0 %2751
        %2753 = vrot.lane.b32.xlu0 %v2630, 64
        %v2754 = vpop.permute.xlu0 %2753
        %2755 = vrot.lane.b32.xlu0 %v2632, 64
        %v2756 = vpop.permute.xlu0 %2755
        %vm2757 = vcmp.lt.s32.totalorder %v1472, 64
        %v2758 = vsel %vm2757, %v2754, %v2756
        %v2759 = vsel %vm2757, %v2752, %v2754
        %v2760 = vsel %vm2757, %v2750, %v2752
        %v2761 = vsel %vm2757, %v2748, %v2750
        %v2762 = vsel %vm2757, %v2746, %v2748
        %v2763 = vsel %vm2757, %v2744, %v2746
        %v2764 = vsel %vm2757, %v2742, %v2744
        %v2765 = vsel %vm2757, %v2756, %v2742
        %v2766 = vld [vmem:[#allocation5 + $0x20] sm:$0x22]
        %v2767 = vld [vmem:[#allocation5 + $0x28] sm:$0x22]
        %v2768 = vld [vmem:[#allocation5 + $0x30] sm:$0x22]
        %v2769 = vld [vmem:[#allocation5 + $0x38] sm:$0x22]
        %v2770 = vunpack.c.l.bf16 %v2766
        %v2771 = vunpack.c.h.bf16 %v2766
        %v2772 = vunpack.c.l.bf16 %v2767
        %v2773 = vunpack.c.h.bf16 %v2767
        %v2774 = vunpack.c.l.bf16 %v2768
        %v2775 = vunpack.c.h.bf16 %v2768
        %v2776 = vunpack.c.l.bf16 %v2769
        %v2777 = vunpack.c.h.bf16 %v2769
        %v2778 = vlaneseq
        %v2779 = vshrl.u32 %v2778, 7
        %v2780 = vsub.s32 2, %v2779
        %v2781 = vrot.slane %v2770, %v2780
        %v2782 = vlaneseq
        %v2783 = vshrl.u32 %v2782, 7
        %v2784 = vsub.s32 2, %v2783
        %v2785 = vrot.slane %v2771, %v2784
        %v2786 = vlaneseq
        %v2787 = vshrl.u32 %v2786, 7
        %v2788 = vsub.s32 2, %v2787
        %v2789 = vrot.slane %v2772, %v2788
        %v2790 = vlaneseq
        %v2791 = vshrl.u32 %v2790, 7
        %v2792 = vsub.s32 2, %v2791
        %v2793 = vrot.slane %v2773, %v2792
        %v2794 = vlaneseq
        %v2795 = vshrl.u32 %v2794, 7
        %v2796 = vsub.s32 2, %v2795
        %v2797 = vrot.slane %v2774, %v2796
        %v2798 = vlaneseq
        %v2799 = vshrl.u32 %v2798, 7
        %v2800 = vsub.s32 2, %v2799
        %v2801 = vrot.slane %v2775, %v2800
        %v2802 = vlaneseq
        %v2803 = vshrl.u32 %v2802, 7
        %v2804 = vsub.s32 2, %v2803
        %v2805 = vrot.slane %v2776, %v2804
        %v2806 = vlaneseq
        %v2807 = vshrl.u32 %v2806, 7
        %v2808 = vsub.s32 2, %v2807
        %v2809 = vrot.slane %v2777, %v2808
        %v2810 = vmul.f32 %v2765, %v2781
        %v2811 = vmul.f32 %v2764, %v2785
        %v2812 = vmul.f32 %v2763, %v2789
        %v2813 = vmul.f32 %v2762, %v2793
        %v2814 = vmul.f32 %v2761, %v2797
        %v2815 = vmul.f32 %v2760, %v2801
        %v2816 = vmul.f32 %v2759, %v2805
        %v2817 = vmul.f32 %v2758, %v2809
        %v2818 = vadd.f32 %v2733, %v2810
        %v2819 = vadd.f32 %v2734, %v2811
        %v2820 = vadd.f32 %v2735, %v2812
        %v2821 = vadd.f32 %v2736, %v2813
        %v2822 = vadd.f32 %v2737, %v2814
        %v2823 = vadd.f32 %v2738, %v2815
        %v2824 = vadd.f32 %v2739, %v2816
        %v2825 = vadd.f32 %v2740, %v2817
        %2826 = vrot.lane.b32.xlu0 %v2279, 62
        %v2827 = vpop.permute.xlu0 %2826
        %2828 = vrot.lane.b32.xlu0 %v2281, 62
        %v2829 = vpop.permute.xlu0 %2828
        %2830 = vrot.lane.b32.xlu0 %v2398, 62
        %v2831 = vpop.permute.xlu0 %2830
        %2832 = vrot.lane.b32.xlu0 %v2400, 62
        %v2833 = vpop.permute.xlu0 %2832
        %2834 = vrot.lane.b32.xlu0 %v2517, 62
        %v2835 = vpop.permute.xlu0 %2834
        %2836 = vrot.lane.b32.xlu0 %v2519, 62
        %v2837 = vpop.permute.xlu0 %2836
        %2838 = vrot.lane.b32.xlu0 %v2636, 62
        %v2839 = vpop.permute.xlu0 %2838
        %2840 = vrot.lane.b32.xlu0 %v2638, 62
        %v2841 = vpop.permute.xlu0 %2840
        %vm2842 = vcmp.lt.s32.totalorder %v1472, 62
        %v2843 = vsel %vm2842, %v2839, %v2841
        %v2844 = vsel %vm2842, %v2837, %v2839
        %v2845 = vsel %vm2842, %v2835, %v2837
        %v2846 = vsel %vm2842, %v2833, %v2835
        %v2847 = vsel %vm2842, %v2831, %v2833
        %v2848 = vsel %vm2842, %v2829, %v2831
        %v2849 = vsel %vm2842, %v2827, %v2829
        %v2850 = vsel %vm2842, %v2841, %v2827
        %v2851 = vlaneseq
        %v2852 = vshrl.u32 %v2851, 7
        %v2853 = vsub.s32 3, %v2852
        %v2854 = vrot.slane %v2770, %v2853
        %v2855 = vlaneseq
        %v2856 = vshrl.u32 %v2855, 7
        %v2857 = vsub.s32 3, %v2856
        %v2858 = vrot.slane %v2771, %v2857
        %v2859 = vlaneseq
        %v2860 = vshrl.u32 %v2859, 7
        %v2861 = vsub.s32 3, %v2860
        %v2862 = vrot.slane %v2772, %v2861
        %v2863 = vlaneseq
        %v2864 = vshrl.u32 %v2863, 7
        %v2865 = vsub.s32 3, %v2864
        %v2866 = vrot.slane %v2773, %v2865
        %v2867 = vlaneseq
        %v2868 = vshrl.u32 %v2867, 7
        %v2869 = vsub.s32 3, %v2868
        %v2870 = vrot.slane %v2774, %v2869
        %v2871 = vlaneseq
        %v2872 = vshrl.u32 %v2871, 7
        %v2873 = vsub.s32 3, %v2872
        %v2874 = vrot.slane %v2775, %v2873
        %v2875 = vlaneseq
        %v2876 = vshrl.u32 %v2875, 7
        %v2877 = vsub.s32 3, %v2876
        %v2878 = vrot.slane %v2776, %v2877
        %v2879 = vlaneseq
        %v2880 = vshrl.u32 %v2879, 7
        %v2881 = vsub.s32 3, %v2880
        %v2882 = vrot.slane %v2777, %v2881
        %v2883 = vmul.f32 %v2850, %v2854
        %v2884 = vmul.f32 %v2849, %v2858
        %v2885 = vmul.f32 %v2848, %v2862
        %v2886 = vmul.f32 %v2847, %v2866
        %v2887 = vmul.f32 %v2846, %v2870
        %v2888 = vmul.f32 %v2845, %v2874
        %v2889 = vmul.f32 %v2844, %v2878
        %v2890 = vmul.f32 %v2843, %v2882
        %v2891 = vadd.f32 %v2818, %v2883
        %v2892 = vadd.f32 %v2819, %v2884
        %v2893 = vadd.f32 %v2820, %v2885
        %v2894 = vadd.f32 %v2821, %v2886
        %v2895 = vadd.f32 %v2822, %v2887
        %v2896 = vadd.f32 %v2823, %v2888
        %v2897 = vadd.f32 %v2824, %v2889
        %v2898 = vadd.f32 %v2825, %v2890
        %2899 = vrot.lane.b32.xlu0 %v2285, 2
        %v2900 = vpop.permute.xlu0 %2899
        %2901 = vrot.lane.b32.xlu0 %v2287, 2
        %v2902 = vpop.permute.xlu0 %2901
        %2903 = vrot.lane.b32.xlu0 %v2404, 2
        %v2904 = vpop.permute.xlu0 %2903
        %2905 = vrot.lane.b32.xlu0 %v2406, 2
        %v2906 = vpop.permute.xlu0 %2905
        %2907 = vrot.lane.b32.xlu0 %v2523, 2
        %v2908 = vpop.permute.xlu0 %2907
        %2909 = vrot.lane.b32.xlu0 %v2525, 2
        %v2910 = vpop.permute.xlu0 %2909
        %2911 = vrot.lane.b32.xlu0 %v2642, 2
        %v2912 = vpop.permute.xlu0 %2911
        %2913 = vrot.lane.b32.xlu0 %v2644, 2
        %v2914 = vpop.permute.xlu0 %2913
        %vm2915 = vcmp.lt.s32.totalorder %v1472, 2
        %v2916 = vsel %vm2915, %v2912, %v2914
        %v2917 = vsel %vm2915, %v2910, %v2912
        %v2918 = vsel %vm2915, %v2908, %v2910
        %v2919 = vsel %vm2915, %v2906, %v2908
        %v2920 = vsel %vm2915, %v2904, %v2906
        %v2921 = vsel %vm2915, %v2902, %v2904
        %v2922 = vsel %vm2915, %v2900, %v2902
        %v2923 = vsel %vm2915, %v2914, %v2900
        %v2924 = vld [vmem:[#allocation5 + $0x20] sm:$0x44]
        %v2925 = vld [vmem:[#allocation5 + $0x28] sm:$0x44]
        %v2926 = vld [vmem:[#allocation5 + $0x30] sm:$0x44]
        %v2927 = vld [vmem:[#allocation5 + $0x38] sm:$0x44]
        %v2928 = vunpack.c.l.bf16 %v2924
        %v2929 = vunpack.c.h.bf16 %v2924
        %v2930 = vunpack.c.l.bf16 %v2925
        %v2931 = vunpack.c.h.bf16 %v2925
        %v2932 = vunpack.c.l.bf16 %v2926
        %v2933 = vunpack.c.h.bf16 %v2926
        %v2934 = vunpack.c.l.bf16 %v2927
        %v2935 = vunpack.c.h.bf16 %v2927
        %v2936 = vlaneseq
        %v2937 = vshrl.u32 %v2936, 7
        %v2938 = vsub.s32 4, %v2937
        %v2939 = vrot.slane %v2928, %v2938
        %v2940 = vlaneseq
        %v2941 = vshrl.u32 %v2940, 7
        %v2942 = vsub.s32 4, %v2941
        %v2943 = vrot.slane %v2929, %v2942
        %v2944 = vlaneseq
        %v2945 = vshrl.u32 %v2944, 7
        %v2946 = vsub.s32 4, %v2945
        %v2947 = vrot.slane %v2930, %v2946
        %v2948 = vlaneseq
        %v2949 = vshrl.u32 %v2948, 7
        %v2950 = vsub.s32 4, %v2949
        %v2951 = vrot.slane %v2931, %v2950
        %v2952 = vlaneseq
        %v2953 = vshrl.u32 %v2952, 7
        %v2954 = vsub.s32 4, %v2953
        %v2955 = vrot.slane %v2932, %v2954
        %v2956 = vlaneseq
        %v2957 = vshrl.u32 %v2956, 7
        %v2958 = vsub.s32 4, %v2957
        %v2959 = vrot.slane %v2933, %v2958
        %v2960 = vlaneseq
        %v2961 = vshrl.u32 %v2960, 7
        %v2962 = vsub.s32 4, %v2961
        %v2963 = vrot.slane %v2934, %v2962
        %v2964 = vlaneseq
        %v2965 = vshrl.u32 %v2964, 7
        %v2966 = vsub.s32 4, %v2965
        %v2967 = vrot.slane %v2935, %v2966
        %v2968 = vmul.f32 %v2923, %v2939
        %v2969 = vmul.f32 %v2922, %v2943
        %v2970 = vmul.f32 %v2921, %v2947
        %v2971 = vmul.f32 %v2920, %v2951
        %v2972 = vmul.f32 %v2919, %v2955
        %v2973 = vmul.f32 %v2918, %v2959
        %v2974 = vmul.f32 %v2917, %v2963
        %v2975 = vmul.f32 %v2916, %v2967
        %v2976 = vadd.f32 %v2891, %v2968
        %v2977 = vadd.f32 %v2892, %v2969
        %v2978 = vadd.f32 %v2893, %v2970
        %v2979 = vadd.f32 %v2894, %v2971
        %v2980 = vadd.f32 %v2895, %v2972
        %v2981 = vadd.f32 %v2896, %v2973
        %v2982 = vadd.f32 %v2897, %v2974
        %v2983 = vadd.f32 %v2898, %v2975
        %v2984 = vadd.f32 %v2976, %v2291
        %v2985 = vadd.f32 %v2977, %v2293
        %v2986 = vadd.f32 %v2978, %v2410
        %v2987 = vadd.f32 %v2979, %v2412
        %v2988 = vadd.f32 %v2980, %v2529
        %v2989 = vadd.f32 %v2981, %v2531
        %v2990 = vadd.f32 %v2982, %v2648
        %v2991 = vadd.f32 %v2983, %v2650
        %2992 = vrot.lane.b32.xlu0 %v2297, 126
        %v2993 = vpop.permute.xlu0 %2992
        %2994 = vrot.lane.b32.xlu0 %v2299, 126
        %v2995 = vpop.permute.xlu0 %2994
        %2996 = vrot.lane.b32.xlu0 %v2416, 126
        %v2997 = vpop.permute.xlu0 %2996
        %2998 = vrot.lane.b32.xlu0 %v2418, 126
        %v2999 = vpop.permute.xlu0 %2998
        %3000 = vrot.lane.b32.xlu0 %v2535, 126
        %v3001 = vpop.permute.xlu0 %3000
        %3002 = vrot.lane.b32.xlu0 %v2537, 126
        %v3003 = vpop.permute.xlu0 %3002
        %3004 = vrot.lane.b32.xlu0 %v2654, 126
        %v3005 = vpop.permute.xlu0 %3004
        %3006 = vrot.lane.b32.xlu0 %v2656, 126
        %v3007 = vpop.permute.xlu0 %3006
        %vm3008 = vcmp.lt.s32.totalorder %v1472, 126
        %v3009 = vsel %vm3008, %v3005, %v3007
        %v3010 = vsel %vm3008, %v3003, %v3005
        %v3011 = vsel %vm3008, %v3001, %v3003
        %v3012 = vsel %vm3008, %v2999, %v3001
        %v3013 = vsel %vm3008, %v2997, %v2999
        %v3014 = vsel %vm3008, %v2995, %v2997
        %v3015 = vsel %vm3008, %v2993, %v2995
        %v3016 = vsel %vm3008, %v3007, %v2993
        %v3017 = vld [vmem:[#allocation5 + $0x20] sm:$0x88]
        %v3018 = vld [vmem:[#allocation5 + $0x28] sm:$0x88]
        %v3019 = vld [vmem:[#allocation5 + $0x30] sm:$0x88]
        %v3020 = vld [vmem:[#allocation5 + $0x38] sm:$0x88]
        %v3021 = vunpack.c.l.bf16 %v3017
        %v3022 = vunpack.c.h.bf16 %v3017
        %v3023 = vunpack.c.l.bf16 %v3018
        %v3024 = vunpack.c.h.bf16 %v3018
        %v3025 = vunpack.c.l.bf16 %v3019
        %v3026 = vunpack.c.h.bf16 %v3019
        %v3027 = vunpack.c.l.bf16 %v3020
        %v3028 = vunpack.c.h.bf16 %v3020
        %v3029 = vlaneseq
        %v3030 = vshrl.u32 %v3029, 7
        %v3031 = vsub.s32 6, %v3030
        %v3032 = vrot.slane %v3021, %v3031
        %v3033 = vlaneseq
        %v3034 = vshrl.u32 %v3033, 7
        %v3035 = vsub.s32 6, %v3034
        %v3036 = vrot.slane %v3022, %v3035
        %v3037 = vlaneseq
        %v3038 = vshrl.u32 %v3037, 7
        %v3039 = vsub.s32 6, %v3038
        %v3040 = vrot.slane %v3023, %v3039
        %v3041 = vlaneseq
        %v3042 = vshrl.u32 %v3041, 7
        %v3043 = vsub.s32 6, %v3042
        %v3044 = vrot.slane %v3024, %v3043
        %v3045 = vlaneseq
        %v3046 = vshrl.u32 %v3045, 7
        %v3047 = vsub.s32 6, %v3046
        %v3048 = vrot.slane %v3025, %v3047
        %v3049 = vlaneseq
        %v3050 = vshrl.u32 %v3049, 7
        %v3051 = vsub.s32 6, %v3050
        %v3052 = vrot.slane %v3026, %v3051
        %v3053 = vlaneseq
        %v3054 = vshrl.u32 %v3053, 7
        %v3055 = vsub.s32 6, %v3054
        %v3056 = vrot.slane %v3027, %v3055
        %v3057 = vlaneseq
        %v3058 = vshrl.u32 %v3057, 7
        %v3059 = vsub.s32 6, %v3058
        %v3060 = vrot.slane %v3028, %v3059
        %v3061 = vmul.f32 %v3015, %v3032
        %v3062 = vmul.f32 %v3014, %v3036
        %v3063 = vmul.f32 %v3013, %v3040
        %v3064 = vmul.f32 %v3012, %v3044
        %v3065 = vmul.f32 %v3011, %v3048
        %v3066 = vmul.f32 %v3010, %v3052
        %v3067 = vmul.f32 %v3009, %v3056
        %v3068 = vmul.f32 %v3016, %v3060
        %v3069 = vadd.f32 %v2984, %v3061
        %v3070 = vadd.f32 %v2985, %v3062
        %v3071 = vadd.f32 %v2986, %v3063
        %v3072 = vadd.f32 %v2987, %v3064
        %v3073 = vadd.f32 %v2988, %v3065
        %v3074 = vadd.f32 %v2989, %v3066
        %v3075 = vadd.f32 %v2990, %v3067
        %v3076 = vadd.f32 %v2991, %v3068
        %3077 = vrot.lane.b32.xlu0 %v2303, 66
        %v3078 = vpop.permute.xlu0 %3077
        %3079 = vrot.lane.b32.xlu0 %v2305, 66
        %v3080 = vpop.permute.xlu0 %3079
        %3081 = vrot.lane.b32.xlu0 %v2422, 66
        %v3082 = vpop.permute.xlu0 %3081
        %3083 = vrot.lane.b32.xlu0 %v2424, 66
        %v3084 = vpop.permute.xlu0 %3083
        %3085 = vrot.lane.b32.xlu0 %v2541, 66
        %v3086 = vpop.permute.xlu0 %3085
        %3087 = vrot.lane.b32.xlu0 %v2543, 66
        %v3088 = vpop.permute.xlu0 %3087
        %3089 = vrot.lane.b32.xlu0 %v2660, 66
        %v3090 = vpop.permute.xlu0 %3089
        %3091 = vrot.lane.b32.xlu0 %v2662, 66
        %v3092 = vpop.permute.xlu0 %3091
        %v3093 = vsel %vm2692, %v3090, %v3092
        %v3094 = vsel %vm2692, %v3088, %v3090
        %v3095 = vsel %vm2692, %v3086, %v3088
        %v3096 = vsel %vm2692, %v3084, %v3086
        %v3097 = vsel %vm2692, %v3082, %v3084
        %v3098 = vsel %vm2692, %v3080, %v3082
        %v3099 = vsel %vm2692, %v3078, %v3080
        %v3100 = vsel %vm2692, %v3092, %v3078
        %v3101 = vlaneseq
        %v3102 = vshrl.u32 %v3101, 7
        %v3103 = vsub.s32 7, %v3102
        %v3104 = vrot.slane %v3021, %v3103
        %v3105 = vlaneseq
        %v3106 = vshrl.u32 %v3105, 7
        %v3107 = vsub.s32 7, %v3106
        %v3108 = vrot.slane %v3022, %v3107
        %v3109 = vlaneseq
        %v3110 = vshrl.u32 %v3109, 7
        %v3111 = vsub.s32 7, %v3110
        %v3112 = vrot.slane %v3023, %v3111
        %v3113 = vlaneseq
        %v3114 = vshrl.u32 %v3113, 7
        %v3115 = vsub.s32 7, %v3114
        %v3116 = vrot.slane %v3024, %v3115
        %v3117 = vlaneseq
        %v3118 = vshrl.u32 %v3117, 7
        %v3119 = vsub.s32 7, %v3118
        %v3120 = vrot.slane %v3025, %v3119
        %v3121 = vlaneseq
        %v3122 = vshrl.u32 %v3121, 7
        %v3123 = vsub.s32 7, %v3122
        %v3124 = vrot.slane %v3026, %v3123
        %v3125 = vlaneseq
        %v3126 = vshrl.u32 %v3125, 7
        %v3127 = vsub.s32 7, %v3126
        %v3128 = vrot.slane %v3027, %v3127
        %v3129 = vlaneseq
        %v3130 = vshrl.u32 %v3129, 7
        %v3131 = vsub.s32 7, %v3130
        %v3132 = vrot.slane %v3028, %v3131
        %v3133 = vmul.f32 %v3099, %v3104
        %v3134 = vmul.f32 %v3098, %v3108
        %v3135 = vmul.f32 %v3097, %v3112
        %v3136 = vmul.f32 %v3096, %v3116
        %v3137 = vmul.f32 %v3095, %v3120
        %v3138 = vmul.f32 %v3094, %v3124
        %v3139 = vmul.f32 %v3093, %v3128
        %v3140 = vmul.f32 %v3100, %v3132
        %v3141 = vadd.f32 %v3069, %v3133
        %v3142 = vadd.f32 %v3070, %v3134
        %v3143 = vadd.f32 %v3071, %v3135
        %v3144 = vadd.f32 %v3072, %v3136
        %v3145 = vadd.f32 %v3073, %v3137
        %v3146 = vadd.f32 %v3074, %v3138
        %v3147 = vadd.f32 %v3075, %v3139
        %v3148 = vadd.f32 %v3076, %v3140
        %3149 = vrot.lane.b32.xlu0 %v2309, 64
        %v3150 = vpop.permute.xlu0 %3149
        %3151 = vrot.lane.b32.xlu0 %v2311, 64
        %v3152 = vpop.permute.xlu0 %3151
        %3153 = vrot.lane.b32.xlu0 %v2428, 64
        %v3154 = vpop.permute.xlu0 %3153
        %3155 = vrot.lane.b32.xlu0 %v2430, 64
        %v3156 = vpop.permute.xlu0 %3155
        %3157 = vrot.lane.b32.xlu0 %v2547, 64
        %v3158 = vpop.permute.xlu0 %3157
        %3159 = vrot.lane.b32.xlu0 %v2549, 64
        %v3160 = vpop.permute.xlu0 %3159
        %3161 = vrot.lane.b32.xlu0 %v2666, 64
        %v3162 = vpop.permute.xlu0 %3161
        %3163 = vrot.lane.b32.xlu0 %v2668, 64
        %v3164 = vpop.permute.xlu0 %3163
        %v3165 = vsel %vm2757, %v3162, %v3164
        %v3166 = vsel %vm2757, %v3160, %v3162
        %v3167 = vsel %vm2757, %v3158, %v3160
        %v3168 = vsel %vm2757, %v3156, %v3158
        %v3169 = vsel %vm2757, %v3154, %v3156
        %v3170 = vsel %vm2757, %v3152, %v3154
        %v3171 = vsel %vm2757, %v3150, %v3152
        %v3172 = vsel %vm2757, %v3164, %v3150
        %v3173 = vld [vmem:[#allocation5 + $0x40] sm:$0x11]
        %v3174 = vld [vmem:[#allocation5 + $0x48] sm:$0x11]
        %v3175 = vld [vmem:[#allocation5 + $0x50] sm:$0x11]
        %v3176 = vld [vmem:[#allocation5 + $0x58] sm:$0x11]
        %v3177 = vunpack.c.l.bf16 %v3173
        %v3178 = vunpack.c.h.bf16 %v3173
        %v3179 = vunpack.c.l.bf16 %v3174
        %v3180 = vunpack.c.h.bf16 %v3174
        %v3181 = vunpack.c.l.bf16 %v3175
        %v3182 = vunpack.c.h.bf16 %v3175
        %v3183 = vunpack.c.l.bf16 %v3176
        %v3184 = vunpack.c.h.bf16 %v3176
        %v3185 = vlaneseq
        %v3186 = vshrl.u32 %v3185, 7
        %v3187 = vsub.s32 0, %v3186
        %v3188 = vrot.slane %v3177, %v3187
        %v3189 = vlaneseq
        %v3190 = vshrl.u32 %v3189, 7
        %v3191 = vsub.s32 0, %v3190
        %v3192 = vrot.slane %v3178, %v3191
        %v3193 = vlaneseq
        %v3194 = vshrl.u32 %v3193, 7
        %v3195 = vsub.s32 0, %v3194
        %v3196 = vrot.slane %v3179, %v3195
        %v3197 = vlaneseq
        %v3198 = vshrl.u32 %v3197, 7
        %v3199 = vsub.s32 0, %v3198
        %v3200 = vrot.slane %v3180, %v3199
        %v3201 = vlaneseq
        %v3202 = vshrl.u32 %v3201, 7
        %v3203 = vsub.s32 0, %v3202
        %v3204 = vrot.slane %v3181, %v3203
        %v3205 = vlaneseq
        %v3206 = vshrl.u32 %v3205, 7
        %v3207 = vsub.s32 0, %v3206
        %v3208 = vrot.slane %v3182, %v3207
        %v3209 = vlaneseq
        %v3210 = vshrl.u32 %v3209, 7
        %v3211 = vsub.s32 0, %v3210
        %v3212 = vrot.slane %v3183, %v3211
        %v3213 = vlaneseq
        %v3214 = vshrl.u32 %v3213, 7
        %v3215 = vsub.s32 0, %v3214
        %v3216 = vrot.slane %v3184, %v3215
        %v3217 = vmul.f32 %v3171, %v3188
        %v3218 = vmul.f32 %v3170, %v3192
        %v3219 = vmul.f32 %v3169, %v3196
        %v3220 = vmul.f32 %v3168, %v3200
        %v3221 = vmul.f32 %v3167, %v3204
        %v3222 = vmul.f32 %v3166, %v3208
        %v3223 = vmul.f32 %v3165, %v3212
        %v3224 = vmul.f32 %v3172, %v3216
        %v3225 = vadd.f32 %v3141, %v3217
        %v3226 = vadd.f32 %v3142, %v3218
        %v3227 = vadd.f32 %v3143, %v3219
        %v3228 = vadd.f32 %v3144, %v3220
        %v3229 = vadd.f32 %v3145, %v3221
        %v3230 = vadd.f32 %v3146, %v3222
        %v3231 = vadd.f32 %v3147, %v3223
        %v3232 = vadd.f32 %v3148, %v3224
        %3233 = vrot.lane.b32.xlu0 %v2315, 62
        %v3234 = vpop.permute.xlu0 %3233
        %3235 = vrot.lane.b32.xlu0 %v2317, 62
        %v3236 = vpop.permute.xlu0 %3235
        %3237 = vrot.lane.b32.xlu0 %v2434, 62
        %v3238 = vpop.permute.xlu0 %3237
        %3239 = vrot.lane.b32.xlu0 %v2436, 62
        %v3240 = vpop.permute.xlu0 %3239
        %3241 = vrot.lane.b32.xlu0 %v2553, 62
        %v3242 = vpop.permute.xlu0 %3241
        %3243 = vrot.lane.b32.xlu0 %v2555, 62
        %v3244 = vpop.permute.xlu0 %3243
        %3245 = vrot.lane.b32.xlu0 %v2672, 62
        %v3246 = vpop.permute.xlu0 %3245
        %3247 = vrot.lane.b32.xlu0 %v2674, 62
        %v3248 = vpop.permute.xlu0 %3247
        %v3249 = vsel %vm2842, %v3246, %v3248
        %v3250 = vsel %vm2842, %v3244, %v3246
        %v3251 = vsel %vm2842, %v3242, %v3244
        %v3252 = vsel %vm2842, %v3240, %v3242
        %v3253 = vsel %vm2842, %v3238, %v3240
        %v3254 = vsel %vm2842, %v3236, %v3238
        %v3255 = vsel %vm2842, %v3234, %v3236
        %v3256 = vsel %vm2842, %v3248, %v3234
        %v3257 = vlaneseq
        %v3258 = vshrl.u32 %v3257, 7
        %v3259 = vsub.s32 1, %v3258
        %v3260 = vrot.slane %v3177, %v3259
        %v3261 = vlaneseq
        %v3262 = vshrl.u32 %v3261, 7
        %v3263 = vsub.s32 1, %v3262
        %v3264 = vrot.slane %v3178, %v3263
        %v3265 = vlaneseq
        %v3266 = vshrl.u32 %v3265, 7
        %v3267 = vsub.s32 1, %v3266
        %v3268 = vrot.slane %v3179, %v3267
        %v3269 = vlaneseq
        %v3270 = vshrl.u32 %v3269, 7
        %v3271 = vsub.s32 1, %v3270
        %v3272 = vrot.slane %v3180, %v3271
        %v3273 = vlaneseq
        %v3274 = vshrl.u32 %v3273, 7
        %v3275 = vsub.s32 1, %v3274
        %v3276 = vrot.slane %v3181, %v3275
        %v3277 = vlaneseq
        %v3278 = vshrl.u32 %v3277, 7
        %v3279 = vsub.s32 1, %v3278
        %v3280 = vrot.slane %v3182, %v3279
        %v3281 = vlaneseq
        %v3282 = vshrl.u32 %v3281, 7
        %v3283 = vsub.s32 1, %v3282
        %v3284 = vrot.slane %v3183, %v3283
        %v3285 = vlaneseq
        %v3286 = vshrl.u32 %v3285, 7
        %v3287 = vsub.s32 1, %v3286
        %v3288 = vrot.slane %v3184, %v3287
        %v3289 = vmul.f32 %v3255, %v3260
        %v3290 = vmul.f32 %v3254, %v3264
        %v3291 = vmul.f32 %v3253, %v3268
        %v3292 = vmul.f32 %v3252, %v3272
        %v3293 = vmul.f32 %v3251, %v3276
        %v3294 = vmul.f32 %v3250, %v3280
        %v3295 = vmul.f32 %v3249, %v3284
        %v3296 = vmul.f32 %v3256, %v3288
        %v3297 = vadd.f32 %v3225, %v3289
        %v3298 = vadd.f32 %v3226, %v3290
        %v3299 = vadd.f32 %v3227, %v3291
        %v3300 = vadd.f32 %v3228, %v3292
        %v3301 = vadd.f32 %v3229, %v3293
        %v3302 = vadd.f32 %v3230, %v3294
        %v3303 = vadd.f32 %v3231, %v3295
        %v3304 = vadd.f32 %v3232, %v3296
        %3305 = vset.pattern.permute.xlu0 3
        %3306 = vperm.xlu0 %3305, %v2101
        %v3307 = vpop.permute.xlu0 %3306
        %v3309 = vadd.f32 %v3297, %v3307
        %v3310 = vadd.f32 %v3298, %v3307
        %v3311 = vadd.f32 %v3299, %v3307
        %v3312 = vadd.f32 %v3300, %v3307
        %v3313 = vadd.f32 %v3301, %v3307
        %v3314 = vadd.f32 %v3302, %v3307
        %v3315 = vadd.f32 %v3303, %v3307
        %v3316 = vadd.f32 %v3304, %v3307
        %vm3317 = vcmp.ge.f32.partialorder %v3309, 0.0
        %vm3318 = vcmp.ge.f32.partialorder %v3310, 0.0
        %vm3319 = vcmp.ge.f32.partialorder %v3311, 0.0
        %vm3320 = vcmp.ge.f32.partialorder %v3312, 0.0
        %vm3321 = vcmp.ge.f32.partialorder %v3313, 0.0
        %vm3322 = vcmp.ge.f32.partialorder %v3314, 0.0
        %vm3323 = vcmp.ge.f32.partialorder %v3315, 0.0
        %vm3324 = vcmp.ge.f32.partialorder %v3316, 0.0
        %v3325 = vmul.f32 %v3309, 0.01
        %v3326 = vmul.f32 %v3310, 0.01
        %v3327 = vmul.f32 %v3311, 0.01
        %v3328 = vmul.f32 %v3312, 0.01
        %v3329 = vmul.f32 %v3313, 0.01
        %v3330 = vmul.f32 %v3314, 0.01
        %v3331 = vmul.f32 %v3315, 0.01
        %v3332 = vmul.f32 %v3316, 0.01
        %v3333 = vsel %vm3317, %v3309, %v3325
        %v3334 = vsel %vm3318, %v3310, %v3326
        %v3335 = vsel %vm3319, %v3311, %v3327
        %v3336 = vsel %vm3320, %v3312, %v3328
        %v3337 = vsel %vm3321, %v3313, %v3329
        %v3338 = vsel %vm3322, %v3314, %v3330
        %v3339 = vsel %vm3323, %v3315, %v3331
        %v3340 = vsel %vm3324, %v3316, %v3332
        %3341 = vset.pattern.permute.xlu0 4
        %3342 = vperm.xlu0 %3341, %v2101
        %v3343 = vpop.permute.xlu0 %3342
        %v3345 = vmul.f32 %v3333, %v3343
        %v3346 = vmul.f32 %v3334, %v3343
        %v3347 = vmul.f32 %v3335, %v3343
        %v3348 = vmul.f32 %v3336, %v3343
        %v3349 = vmul.f32 %v3337, %v3343
        %v3350 = vmul.f32 %v3338, %v3343
        %v3351 = vmul.f32 %v3339, %v3343
        %v3352 = vmul.f32 %v3340, %v3343
        %3353 = vset.pattern.permute.xlu0 5
        %3354 = vperm.xlu0 %3353, %v2101
        %v3355 = vpop.permute.xlu0 %3354
        %v3357 = vadd.f32 %v3345, %v3355
        %v3358 = vadd.f32 %v3346, %v3355
        %v3359 = vadd.f32 %v3347, %v3355
        %v3360 = vadd.f32 %v3348, %v3355
        %v3361 = vadd.f32 %v3349, %v3355
        %v3362 = vadd.f32 %v3350, %v3355
        %v3363 = vadd.f32 %v3351, %v3355
        %v3364 = vadd.f32 %v3352, %v3355
        %v3365 = vld [vmem:[%s5] sm:$0xff]
        %v3366 = vld [vmem:[%s5 + $0x8] sm:$0xff]
        %v3367 = vld [vmem:[%s5 + $0x10] sm:$0xff]
        %v3368 = vld [vmem:[%s5 + $0x18] sm:$0xff]
        %v3370 = vsel %vm2172, %v3365, 0
        %v3373 = vsel %vm2172, %v3366, 0
        %v3376 = vsel %vm2172, %v3367, 0
        %v3379 = vsel %vm2172, %v3368, 0
        %3381 = vmatprep.subr.mxu0 %v3358
        %3382 = vmatpush1.msra.mxu0 %v3357
        %3383 = vmatprep.subr.mxu0 0.0
        %3384 = vmatpush1.msra.mxu0 0.0
        %3385 = vmatprep.subr.mxu0 0.0
        %3386 = vmatpush1.msra.mxu0 0.0
        %3387 = vmatprep.subr.mxu0 0.0
        %3388 = vmatpush1.msra.mxu0 0.0
        %3389 = vmatprep.subr.mxu0 0.0
        %3390 = vmatpush1.msra.mxu0 0.0
        %3391 = vmatprep.subr.mxu0 0.0
        %3392 = vmatpush1.msra.mxu0 0.0
        %3393 = vmatprep.subr.mxu0 0.0
        %3394 = vmatpush1.msra.mxu0 0.0
        %3395 = vmatprep.subr.mxu0 0.0
        %3396 = vmatpush1.msra.mxu0 0.0
        %3397 = vmatprep.subr.mxu0 0.0
        %3398 = vmatpush1.msra.mxu0 0.0
        %3399 = vmatprep.subr.mxu0 0.0
        %3400 = vmatpush1.msra.mxu0 0.0
        %3401 = vmatprep.subr.mxu0 0.0
        %3402 = vmatpush1.msra.mxu0 0.0
        %3403 = vmatprep.subr.mxu0 0.0
        %3404 = vmatpush1.msra.mxu0 0.0
        %3405 = vmatprep.subr.mxu0 0.0
        %3406 = vmatpush1.msra.mxu0 0.0
        %3407 = vmatprep.subr.mxu0 0.0
        %3408 = vmatpush1.msra.mxu0 0.0
        %3409 = vmatprep.subr.mxu0 0.0
        %3410 = vmatpush1.msra.mxu0 0.0
        %3411 = vmatprep.subr.mxu0 0.0
        %3412 = vmatpush1.msra.mxu0 0.0
        %3413 = vmatprep.subr.mxu0 0.0
        %3414 = vmatpush1.msra.mxu0 0.0
        %3415 = vmatprep.subr.mxu0 0.0
        %3416 = vmatpush1.msra.mxu0 0.0
        %3417 = vmatprep.subr.mxu0 0.0
        %3418 = vmatpush1.msra.mxu0 0.0
        %3419 = vmatprep.subr.mxu0 0.0
        %3420 = vmatpush1.msra.mxu0 0.0
        %3421 = vmatprep.subr.mxu0 0.0
        %3422 = vmatpush1.msra.mxu0 0.0
        %3423 = vmatprep.subr.mxu0 0.0
        %3424 = vmatpush1.msra.mxu0 0.0
        %3425 = vmatprep.subr.mxu0 0.0
        %3426 = vmatpush1.msra.mxu0 0.0
        %3427 = vmatprep.subr.mxu0 0.0
        %3428 = vmatpush1.msra.mxu0 0.0
        %3429 = vmatprep.subr.mxu0 0.0
        %3430 = vmatpush1.msra.mxu0 0.0
        %3431 = vmatprep.subr.mxu0 0.0
        %3432 = vmatpush1.msra.mxu0 0.0
        %3433 = vmatprep.subr.mxu0 0.0
        %3434 = vmatpush1.msra.mxu0 0.0
        %3435 = vmatprep.subr.mxu0 0.0
        %3436 = vmatpush1.msra.mxu0 0.0
        %3437 = vmatprep.subr.mxu0 0.0
        %3438 = vmatpush1.msra.mxu0 0.0
        %3439 = vmatprep.subr.mxu0 0.0
        %3440 = vmatpush1.msra.mxu0 0.0
        %3441 = vmatprep.subr.mxu0 0.0
        %3442 = vmatpush1.msra.mxu0 0.0
        %3443 = vmatprep.subr.mxu0 0.0
        %3444 = vmatpush1.msra.mxu0 0.0
        %3445 = vmatprep.mubr.f32.mxu0 0.0
        %3446 = vmatmul.mubr.f32.gmra.mrb[0].mxu0 %v3370
        %v3447 = vpop.f32.mrb[0].mxu0
        %v3448 = vadd.f32 0.0, %v3447
        %v3449 = vpop.f32.mrb[0].mxu0
        %v3450 = vadd.f32 0.0, %v3449
        %3451 = vmatprep.mubr.f32.mxu0 0.0
        %3452 = vmatmul.mubr.f32.gmra.mrb[0].mxu0 %v3373
        %v3453 = vpop.f32.mrb[0].mxu0
        %v3454 = vadd.f32 0.0, %v3453
        %v3455 = vpop.f32.mrb[0].mxu0
        %v3456 = vadd.f32 0.0, %v3455
        %3457 = vmatprep.mubr.f32.mxu0 0.0
        %3458 = vmatmul.mubr.f32.gmra.mrb[0].mxu0 %v3376
        %v3459 = vpop.f32.mrb[0].mxu0
        %v3460 = vadd.f32 0.0, %v3459
        %v3461 = vpop.f32.mrb[0].mxu0
        %v3462 = vadd.f32 0.0, %v3461
        %3463 = vmatprep.mubr.f32.mxu0 0.0
        %3464 = vmatmul.mubr.f32.gmra.mrb[0].mxu0 %v3379
        %v3465 = vpop.f32.mrb[0].mxu0
        %v3466 = vadd.f32 0.0, %v3465
        %v3467 = vpop.f32.mrb[0].mxu0
        %v3468 = vadd.f32 0.0, %v3467
        %3469 = vdwg.mxu0
        %3470 = vmatprep.subr.mxu0 %v3360
        %3471 = vmatpush1.msra.mxu0 %v3359
        %3472 = vmatprep.subr.mxu0 0.0
        %3473 = vmatpush1.msra.mxu0 0.0
        %3474 = vmatprep.subr.mxu0 0.0
        %3475 = vmatpush1.msra.mxu0 0.0
        %3476 = vmatprep.subr.mxu0 0.0
        %3477 = vmatpush1.msra.mxu0 0.0
        %3478 = vmatprep.subr.mxu0 0.0
        %3479 = vmatpush1.msra.mxu0 0.0
        %3480 = vmatprep.subr.mxu0 0.0
        %3481 = vmatpush1.msra.mxu0 0.0
        %3482 = vmatprep.subr.mxu0 0.0
        %3483 = vmatpush1.msra.mxu0 0.0
        %3484 = vmatprep.subr.mxu0 0.0
        %3485 = vmatpush1.msra.mxu0 0.0
        %3486 = vmatprep.subr.mxu0 0.0
        %3487 = vmatpush1.msra.mxu0 0.0
        %3488 = vmatprep.subr.mxu0 0.0
        %3489 = vmatpush1.msra.mxu0 0.0
        %3490 = vmatprep.subr.mxu0 0.0
        %3491 = vmatpush1.msra.mxu0 0.0
        %3492 = vmatprep.subr.mxu0 0.0
        %3493 = vmatpush1.msra.mxu0 0.0
        %3494 = vmatprep.subr.mxu0 0.0
        %3495 = vmatpush1.msra.mxu0 0.0
        %3496 = vmatprep.subr.mxu0 0.0
        %3497 = vmatpush1.msra.mxu0 0.0
        %3498 = vmatprep.subr.mxu0 0.0
        %3499 = vmatpush1.msra.mxu0 0.0
        %3500 = vmatprep.subr.mxu0 0.0
        %3501 = vmatpush1.msra.mxu0 0.0
        %3502 = vmatprep.subr.mxu0 0.0
        %3503 = vmatpush1.msra.mxu0 0.0
        %3504 = vmatprep.subr.mxu0 0.0
        %3505 = vmatpush1.msra.mxu0 0.0
        %3506 = vmatprep.subr.mxu0 0.0
        %3507 = vmatpush1.msra.mxu0 0.0
        %3508 = vmatprep.subr.mxu0 0.0
        %3509 = vmatpush1.msra.mxu0 0.0
        %3510 = vmatprep.subr.mxu0 0.0
        %3511 = vmatpush1.msra.mxu0 0.0
        %3512 = vmatprep.subr.mxu0 0.0
        %3513 = vmatpush1.msra.mxu0 0.0
        %3514 = vmatprep.subr.mxu0 0.0
        %3515 = vmatpush1.msra.mxu0 0.0
        %3516 = vmatprep.subr.mxu0 0.0
        %3517 = vmatpush1.msra.mxu0 0.0
        %3518 = vmatprep.subr.mxu0 0.0
        %3519 = vmatpush1.msra.mxu0 0.0
        %3520 = vmatprep.subr.mxu0 0.0
        %3521 = vmatpush1.msra.mxu0 0.0
        %3522 = vmatprep.subr.mxu0 0.0
        %3523 = vmatpush1.msra.mxu0 0.0
        %3524 = vmatprep.subr.mxu0 0.0
        %3525 = vmatpush1.msra.mxu0 0.0
        %3526 = vmatprep.subr.mxu0 0.0
        %3527 = vmatpush1.msra.mxu0 0.0
        %3528 = vmatprep.subr.mxu0 0.0
        %3529 = vmatpush1.msra.mxu0 0.0
        %3530 = vmatprep.subr.mxu0 0.0
        %3531 = vmatpush1.msra.mxu0 0.0
        %3532 = vmatprep.subr.mxu0 0.0
        %3533 = vmatpush1.msra.mxu0 0.0
        %3534 = vmatprep.mubr.f32.mxu0 0.0
        %3535 = vmatmul.mubr.f32.gmra.mrb[0].mxu0 %v3370
        %v3536 = vpop.f32.mrb[0].mxu0
        %v3537 = vadd.f32 0.0, %v3536
        %v3538 = vpop.f32.mrb[0].mxu0
        %v3539 = vadd.f32 0.0, %v3538
        %3540 = vmatprep.mubr.f32.mxu0 0.0
        %3541 = vmatmul.mubr.f32.gmra.mrb[0].mxu0 %v3373
        %v3542 = vpop.f32.mrb[0].mxu0
        %v3543 = vadd.f32 0.0, %v3542
        %v3544 = vpop.f32.mrb[0].mxu0
        %v3545 = vadd.f32 0.0, %v3544
        %3546 = vmatprep.mubr.f32.mxu0 0.0
        %3547 = vmatmul.mubr.f32.gmra.mrb[0].mxu0 %v3376
        %v3548 = vpop.f32.mrb[0].mxu0
        %v3549 = vadd.f32 0.0, %v3548
        %v3550 = vpop.f32.mrb[0].mxu0
        %v3551 = vadd.f32 0.0, %v3550
        %3552 = vmatprep.mubr.f32.mxu0 0.0
        %3553 = vmatmul.mubr.f32.gmra.mrb[0].mxu0 %v3379
        %v3554 = vpop.f32.mrb[0].mxu0
        %v3555 = vadd.f32 0.0, %v3554
        %v3556 = vpop.f32.mrb[0].mxu0
        %v3557 = vadd.f32 0.0, %v3556
        %3558 = vdwg.mxu0
        %3559 = vmatprep.subr.mxu0 %v3362
        %3560 = vmatpush1.msra.mxu0 %v3361
        %3561 = vmatprep.subr.mxu0 0.0
        %3562 = vmatpush1.msra.mxu0 0.0
        %3563 = vmatprep.subr.mxu0 0.0
        %3564 = vmatpush1.msra.mxu0 0.0
        %3565 = vmatprep.subr.mxu0 0.0
        %3566 = vmatpush1.msra.mxu0 0.0
        %3567 = vmatprep.subr.mxu0 0.0
        %3568 = vmatpush1.msra.mxu0 0.0
        %3569 = vmatprep.subr.mxu0 0.0
        %3570 = vmatpush1.msra.mxu0 0.0
        %3571 = vmatprep.subr.mxu0 0.0
        %3572 = vmatpush1.msra.mxu0 0.0
        %3573 = vmatprep.subr.mxu0 0.0
        %3574 = vmatpush1.msra.mxu0 0.0
        %3575 = vmatprep.subr.mxu0 0.0
        %3576 = vmatpush1.msra.mxu0 0.0
        %3577 = vmatprep.subr.mxu0 0.0
        %3578 = vmatpush1.msra.mxu0 0.0
        %3579 = vmatprep.subr.mxu0 0.0
        %3580 = vmatpush1.msra.mxu0 0.0
        %3581 = vmatprep.subr.mxu0 0.0
        %3582 = vmatpush1.msra.mxu0 0.0
        %3583 = vmatprep.subr.mxu0 0.0
        %3584 = vmatpush1.msra.mxu0 0.0
        %3585 = vmatprep.subr.mxu0 0.0
        %3586 = vmatpush1.msra.mxu0 0.0
        %3587 = vmatprep.subr.mxu0 0.0
        %3588 = vmatpush1.msra.mxu0 0.0
        %3589 = vmatprep.subr.mxu0 0.0
        %3590 = vmatpush1.msra.mxu0 0.0
        %3591 = vmatprep.subr.mxu0 0.0
        %3592 = vmatpush1.msra.mxu0 0.0
        %3593 = vmatprep.subr.mxu0 0.0
        %3594 = vmatpush1.msra.mxu0 0.0
        %3595 = vmatprep.subr.mxu0 0.0
        %3596 = vmatpush1.msra.mxu0 0.0
        %3597 = vmatprep.subr.mxu0 0.0
        %3598 = vmatpush1.msra.mxu0 0.0
        %3599 = vmatprep.subr.mxu0 0.0
        %3600 = vmatpush1.msra.mxu0 0.0
        %3601 = vmatprep.subr.mxu0 0.0
        %3602 = vmatpush1.msra.mxu0 0.0
        %3603 = vmatprep.subr.mxu0 0.0
        %3604 = vmatpush1.msra.mxu0 0.0
        %3605 = vmatprep.subr.mxu0 0.0
        %3606 = vmatpush1.msra.mxu0 0.0
        %3607 = vmatprep.subr.mxu0 0.0
        %3608 = vmatpush1.msra.mxu0 0.0
        %3609 = vmatprep.subr.mxu0 0.0
        %3610 = vmatpush1.msra.mxu0 0.0
        %3611 = vmatprep.subr.mxu0 0.0
        %3612 = vmatpush1.msra.mxu0 0.0
        %3613 = vmatprep.subr.mxu0 0.0
        %3614 = vmatpush1.msra.mxu0 0.0
        %3615 = vmatprep.subr.mxu0 0.0
        %3616 = vmatpush1.msra.mxu0 0.0
        %3617 = vmatprep.subr.mxu0 0.0
        %3618 = vmatpush1.msra.mxu0 0.0
        %3619 = vmatprep.subr.mxu0 0.0
        %3620 = vmatpush1.msra.mxu0 0.0
        %3621 = vmatprep.subr.mxu0 0.0
        %3622 = vmatpush1.msra.mxu0 0.0
        %3623 = vmatprep.mubr.f32.mxu0 0.0
        %3624 = vmatmul.mubr.f32.gmra.mrb[0].mxu0 %v3370
        %v3625 = vpop.f32.mrb[0].mxu0
        %v3626 = vadd.f32 0.0, %v3625
        %v3627 = vpop.f32.mrb[0].mxu0
        %v3628 = vadd.f32 0.0, %v3627
        %3629 = vmatprep.mubr.f32.mxu0 0.0
        %3630 = vmatmul.mubr.f32.gmra.mrb[0].mxu0 %v3373
        %v3631 = vpop.f32.mrb[0].mxu0
        %v3632 = vadd.f32 0.0, %v3631
        %v3633 = vpop.f32.mrb[0].mxu0
        %v3634 = vadd.f32 0.0, %v3633
        %3635 = vmatprep.mubr.f32.mxu0 0.0
        %3636 = vmatmul.mubr.f32.gmra.mrb[0].mxu0 %v3376
        %v3637 = vpop.f32.mrb[0].mxu0
        %v3638 = vadd.f32 0.0, %v3637
        %v3639 = vpop.f32.mrb[0].mxu0
        %v3640 = vadd.f32 0.0, %v3639
        %3641 = vmatprep.mubr.f32.mxu0 0.0
        %3642 = vmatmul.mubr.f32.gmra.mrb[0].mxu0 %v3379
        %v3643 = vpop.f32.mrb[0].mxu0
        %v3644 = vadd.f32 0.0, %v3643
        %v3645 = vpop.f32.mrb[0].mxu0
        %v3646 = vadd.f32 0.0, %v3645
        %3647 = vdwg.mxu0
        %3648 = vmatprep.subr.mxu0 %v3364
        %3649 = vmatpush1.msra.mxu0 %v3363
        %3650 = vmatprep.subr.mxu0 0.0
        %3651 = vmatpush1.msra.mxu0 0.0
        %3652 = vmatprep.subr.mxu0 0.0
        %3653 = vmatpush1.msra.mxu0 0.0
        %3654 = vmatprep.subr.mxu0 0.0
        %3655 = vmatpush1.msra.mxu0 0.0
        %3656 = vmatprep.subr.mxu0 0.0
        %3657 = vmatpush1.msra.mxu0 0.0
        %3658 = vmatprep.subr.mxu0 0.0
        %3659 = vmatpush1.msra.mxu0 0.0
        %3660 = vmatprep.subr.mxu0 0.0
        %3661 = vmatpush1.msra.mxu0 0.0
        %3662 = vmatprep.subr.mxu0 0.0
        %3663 = vmatpush1.msra.mxu0 0.0
        %3664 = vmatprep.subr.mxu0 0.0
        %3665 = vmatpush1.msra.mxu0 0.0
        %3666 = vmatprep.subr.mxu0 0.0
        %3667 = vmatpush1.msra.mxu0 0.0
        %3668 = vmatprep.subr.mxu0 0.0
        %3669 = vmatpush1.msra.mxu0 0.0
        %3670 = vmatprep.subr.mxu0 0.0
        %3671 = vmatpush1.msra.mxu0 0.0
        %3672 = vmatprep.subr.mxu0 0.0
        %3673 = vmatpush1.msra.mxu0 0.0
        %3674 = vmatprep.subr.mxu0 0.0
        %3675 = vmatpush1.msra.mxu0 0.0
        %3676 = vmatprep.subr.mxu0 0.0
        %3677 = vmatpush1.msra.mxu0 0.0
        %3678 = vmatprep.subr.mxu0 0.0
        %3679 = vmatpush1.msra.mxu0 0.0
        %3680 = vmatprep.subr.mxu0 0.0
        %3681 = vmatpush1.msra.mxu0 0.0
        %3682 = vmatprep.subr.mxu0 0.0
        %3683 = vmatpush1.msra.mxu0 0.0
        %3684 = vmatprep.subr.mxu0 0.0
        %3685 = vmatpush1.msra.mxu0 0.0
        %3686 = vmatprep.subr.mxu0 0.0
        %3687 = vmatpush1.msra.mxu0 0.0
        %3688 = vmatprep.subr.mxu0 0.0
        %3689 = vmatpush1.msra.mxu0 0.0
        %3690 = vmatprep.subr.mxu0 0.0
        %3691 = vmatpush1.msra.mxu0 0.0
        %3692 = vmatprep.subr.mxu0 0.0
        %3693 = vmatpush1.msra.mxu0 0.0
        %3694 = vmatprep.subr.mxu0 0.0
        %3695 = vmatpush1.msra.mxu0 0.0
        %3696 = vmatprep.subr.mxu0 0.0
        %3697 = vmatpush1.msra.mxu0 0.0
        %3698 = vmatprep.subr.mxu0 0.0
        %3699 = vmatpush1.msra.mxu0 0.0
        %3700 = vmatprep.subr.mxu0 0.0
        %3701 = vmatpush1.msra.mxu0 0.0
        %3702 = vmatprep.subr.mxu0 0.0
        %3703 = vmatpush1.msra.mxu0 0.0
        %3704 = vmatprep.subr.mxu0 0.0
        %3705 = vmatpush1.msra.mxu0 0.0
        %3706 = vmatprep.subr.mxu0 0.0
        %3707 = vmatpush1.msra.mxu0 0.0
        %3708 = vmatprep.subr.mxu0 0.0
        %3709 = vmatpush1.msra.mxu0 0.0
        %3710 = vmatprep.subr.mxu0 0.0
        %3711 = vmatpush1.msra.mxu0 0.0
        %3712 = vmatprep.mubr.f32.mxu0 0.0
        %3713 = vmatmul.mubr.f32.gmra.mrb[0].mxu0 %v3370
        %v3714 = vpop.f32.mrb[0].mxu0
        %v3715 = vadd.f32 0.0, %v3714
        %v3716 = vpop.f32.mrb[0].mxu0
        %v3717 = vadd.f32 0.0, %v3716
        %3718 = vmatprep.mubr.f32.mxu0 0.0
        %3719 = vmatmul.mubr.f32.gmra.mrb[0].mxu0 %v3373
        %v3720 = vpop.f32.mrb[0].mxu0
        %v3721 = vadd.f32 0.0, %v3720
        %v3722 = vpop.f32.mrb[0].mxu0
        %v3723 = vadd.f32 0.0, %v3722
        %3724 = vmatprep.mubr.f32.mxu0 0.0
        %3725 = vmatmul.mubr.f32.gmra.mrb[0].mxu0 %v3376
        %v3726 = vpop.f32.mrb[0].mxu0
        %v3727 = vadd.f32 0.0, %v3726
        %v3728 = vpop.f32.mrb[0].mxu0
        %v3729 = vadd.f32 0.0, %v3728
        %3730 = vmatprep.mubr.f32.mxu0 0.0
        %3731 = vmatmul.mubr.f32.gmra.mrb[0].mxu0 %v3379
        %v3732 = vpop.f32.mrb[0].mxu0
        %v3733 = vadd.f32 0.0, %v3732
        %v3734 = vpop.f32.mrb[0].mxu0
        %v3735 = vadd.f32 0.0, %v3734
        %3736 = vdwg.mxu0
        %3737 = vrot.lane.b32.xlu0 %v3448, 33
        %v3738 = vpop.permute.xlu0 %3737
        %3739 = vrot.lane.b32.xlu0 %v3450, 33
        %v3740 = vpop.permute.xlu0 %3739
        %3741 = vrot.lane.b32.xlu0 %v3537, 33
        %v3742 = vpop.permute.xlu0 %3741
        %3743 = vrot.lane.b32.xlu0 %v3539, 33
        %v3744 = vpop.permute.xlu0 %3743
        %3745 = vrot.lane.b32.xlu0 %v3626, 33
        %v3746 = vpop.permute.xlu0 %3745
        %3747 = vrot.lane.b32.xlu0 %v3628, 33
        %v3748 = vpop.permute.xlu0 %3747
        %3749 = vrot.lane.b32.xlu0 %v3715, 33
        %v3750 = vpop.permute.xlu0 %3749
        %3751 = vrot.lane.b32.xlu0 %v3717, 33
        %v3752 = vpop.permute.xlu0 %3751
        %v3753 = vsel %vm1473, %v3750, %v3752
        %v3754 = vsel %vm1473, %v3748, %v3750
        %v3755 = vsel %vm1473, %v3746, %v3748
        %v3756 = vsel %vm1473, %v3744, %v3746
        %v3757 = vsel %vm1473, %v3742, %v3744
        %v3758 = vsel %vm1473, %v3740, %v3742
        %v3759 = vsel %vm1473, %v3738, %v3740
        %v3760 = vsel %vm1473, %v3752, %v3738
        %v3761 = vld [vmem:[#allocation5 + $0x40] sm:$0x22]
        %v3762 = vld [vmem:[#allocation5 + $0x48] sm:$0x22]
        %v3763 = vld [vmem:[#allocation5 + $0x50] sm:$0x22]
        %v3764 = vld [vmem:[#allocation5 + $0x58] sm:$0x22]
        %v3765 = vunpack.c.l.bf16 %v3761
        %v3766 = vunpack.c.h.bf16 %v3761
        %v3767 = vunpack.c.l.bf16 %v3762
        %v3768 = vunpack.c.h.bf16 %v3762
        %v3769 = vunpack.c.l.bf16 %v3763
        %v3770 = vunpack.c.h.bf16 %v3763
        %v3771 = vunpack.c.l.bf16 %v3764
        %v3772 = vunpack.c.h.bf16 %v3764
        %v3773 = vlaneseq
        %v3774 = vshrl.u32 %v3773, 7
        %v3775 = vsub.s32 2, %v3774
        %v3776 = vrot.slane %v3765, %v3775
        %v3777 = vlaneseq
        %v3778 = vshrl.u32 %v3777, 7
        %v3779 = vsub.s32 2, %v3778
        %v3780 = vrot.slane %v3766, %v3779
        %v3781 = vlaneseq
        %v3782 = vshrl.u32 %v3781, 7
        %v3783 = vsub.s32 2, %v3782
        %v3784 = vrot.slane %v3767, %v3783
        %v3785 = vlaneseq
        %v3786 = vshrl.u32 %v3785, 7
        %v3787 = vsub.s32 2, %v3786
        %v3788 = vrot.slane %v3768, %v3787
        %v3789 = vlaneseq
        %v3790 = vshrl.u32 %v3789, 7
        %v3791 = vsub.s32 2, %v3790
        %v3792 = vrot.slane %v3769, %v3791
        %v3793 = vlaneseq
        %v3794 = vshrl.u32 %v3793, 7
        %v3795 = vsub.s32 2, %v3794
        %v3796 = vrot.slane %v3770, %v3795
        %v3797 = vlaneseq
        %v3798 = vshrl.u32 %v3797, 7
        %v3799 = vsub.s32 2, %v3798
        %v3800 = vrot.slane %v3771, %v3799
        %v3801 = vlaneseq
        %v3802 = vshrl.u32 %v3801, 7
        %v3803 = vsub.s32 2, %v3802
        %v3804 = vrot.slane %v3772, %v3803
        %v3805 = vmul.f32 %v3760, %v3776
        %v3806 = vmul.f32 %v3759, %v3780
        %v3807 = vmul.f32 %v3758, %v3784
        %v3808 = vmul.f32 %v3757, %v3788
        %v3809 = vmul.f32 %v3756, %v3792
        %v3810 = vmul.f32 %v3755, %v3796
        %v3811 = vmul.f32 %v3754, %v3800
        %v3812 = vmul.f32 %v3753, %v3804
        %3813 = vrot.lane.b32.xlu0 %v3454, 31
        %v3814 = vpop.permute.xlu0 %3813
        %3815 = vrot.lane.b32.xlu0 %v3456, 31
        %v3816 = vpop.permute.xlu0 %3815
        %3817 = vrot.lane.b32.xlu0 %v3543, 31
        %v3818 = vpop.permute.xlu0 %3817
        %3819 = vrot.lane.b32.xlu0 %v3545, 31
        %v3820 = vpop.permute.xlu0 %3819
        %3821 = vrot.lane.b32.xlu0 %v3632, 31
        %v3822 = vpop.permute.xlu0 %3821
        %3823 = vrot.lane.b32.xlu0 %v3634, 31
        %v3824 = vpop.permute.xlu0 %3823
        %3825 = vrot.lane.b32.xlu0 %v3721, 31
        %v3826 = vpop.permute.xlu0 %3825
        %3827 = vrot.lane.b32.xlu0 %v3723, 31
        %v3828 = vpop.permute.xlu0 %3827
        %v3829 = vsel %vm1623, %v3826, %v3828
        %v3830 = vsel %vm1623, %v3824, %v3826
        %v3831 = vsel %vm1623, %v3822, %v3824
        %v3832 = vsel %vm1623, %v3820, %v3822
        %v3833 = vsel %vm1623, %v3818, %v3820
        %v3834 = vsel %vm1623, %v3816, %v3818
        %v3835 = vsel %vm1623, %v3814, %v3816
        %v3836 = vsel %vm1623, %v3828, %v3814
        %v3837 = vlaneseq
        %v3838 = vshrl.u32 %v3837, 7
        %v3839 = vsub.s32 3, %v3838
        %v3840 = vrot.slane %v3765, %v3839
        %v3841 = vlaneseq
        %v3842 = vshrl.u32 %v3841, 7
        %v3843 = vsub.s32 3, %v3842
        %v3844 = vrot.slane %v3766, %v3843
        %v3845 = vlaneseq
        %v3846 = vshrl.u32 %v3845, 7
        %v3847 = vsub.s32 3, %v3846
        %v3848 = vrot.slane %v3767, %v3847
        %v3849 = vlaneseq
        %v3850 = vshrl.u32 %v3849, 7
        %v3851 = vsub.s32 3, %v3850
        %v3852 = vrot.slane %v3768, %v3851
        %v3853 = vlaneseq
        %v3854 = vshrl.u32 %v3853, 7
        %v3855 = vsub.s32 3, %v3854
        %v3856 = vrot.slane %v3769, %v3855
        %v3857 = vlaneseq
        %v3858 = vshrl.u32 %v3857, 7
        %v3859 = vsub.s32 3, %v3858
        %v3860 = vrot.slane %v3770, %v3859
        %v3861 = vlaneseq
        %v3862 = vshrl.u32 %v3861, 7
        %v3863 = vsub.s32 3, %v3862
        %v3864 = vrot.slane %v3771, %v3863
        %v3865 = vlaneseq
        %v3866 = vshrl.u32 %v3865, 7
        %v3867 = vsub.s32 3, %v3866
        %v3868 = vrot.slane %v3772, %v3867
        %v3869 = vmul.f32 %v3836, %v3840
        %v3870 = vmul.f32 %v3835, %v3844
        %v3871 = vmul.f32 %v3834, %v3848
        %v3872 = vmul.f32 %v3833, %v3852
        %v3873 = vmul.f32 %v3832, %v3856
        %v3874 = vmul.f32 %v3831, %v3860
        %v3875 = vmul.f32 %v3830, %v3864
        %v3876 = vmul.f32 %v3829, %v3868
        %v3877 = vadd.f32 %v3805, %v3869
        %v3878 = vadd.f32 %v3806, %v3870
        %v3879 = vadd.f32 %v3807, %v3871
        %v3880 = vadd.f32 %v3808, %v3872
        %v3881 = vadd.f32 %v3809, %v3873
        %v3882 = vadd.f32 %v3810, %v3874
        %v3883 = vadd.f32 %v3811, %v3875
        %v3884 = vadd.f32 %v3812, %v3876
        %3885 = vrot.lane.b32.xlu0 %v3460, 97
        %v3886 = vpop.permute.xlu0 %3885
        %3887 = vrot.lane.b32.xlu0 %v3462, 97
        %v3888 = vpop.permute.xlu0 %3887
        %3889 = vrot.lane.b32.xlu0 %v3549, 97
        %v3890 = vpop.permute.xlu0 %3889
        %3891 = vrot.lane.b32.xlu0 %v3551, 97
        %v3892 = vpop.permute.xlu0 %3891
        %3893 = vrot.lane.b32.xlu0 %v3638, 97
        %v3894 = vpop.permute.xlu0 %3893
        %3895 = vrot.lane.b32.xlu0 %v3640, 97
        %v3896 = vpop.permute.xlu0 %3895
        %3897 = vrot.lane.b32.xlu0 %v3727, 97
        %v3898 = vpop.permute.xlu0 %3897
        %3899 = vrot.lane.b32.xlu0 %v3729, 97
        %v3900 = vpop.permute.xlu0 %3899
        %v3901 = vsel %vm1874, %v3898, %v3900
        %v3902 = vsel %vm1874, %v3896, %v3898
        %v3903 = vsel %vm1874, %v3894, %v3896
        %v3904 = vsel %vm1874, %v3892, %v3894
        %v3905 = vsel %vm1874, %v3890, %v3892
        %v3906 = vsel %vm1874, %v3888, %v3890
        %v3907 = vsel %vm1874, %v3886, %v3888
        %v3908 = vsel %vm1874, %v3900, %v3886
        %v3909 = vld [vmem:[#allocation5 + $0x40] sm:$0x44]
        %v3910 = vld [vmem:[#allocation5 + $0x48] sm:$0x44]
        %v3911 = vld [vmem:[#allocation5 + $0x50] sm:$0x44]
        %v3912 = vld [vmem:[#allocation5 + $0x58] sm:$0x44]
        %v3913 = vunpack.c.l.bf16 %v3909
        %v3914 = vunpack.c.h.bf16 %v3909
        %v3915 = vunpack.c.l.bf16 %v3910
        %v3916 = vunpack.c.h.bf16 %v3910
        %v3917 = vunpack.c.l.bf16 %v3911
        %v3918 = vunpack.c.h.bf16 %v3911
        %v3919 = vunpack.c.l.bf16 %v3912
        %v3920 = vunpack.c.h.bf16 %v3912
        %v3921 = vlaneseq
        %v3922 = vshrl.u32 %v3921, 7
        %v3923 = vsub.s32 4, %v3922
        %v3924 = vrot.slane %v3913, %v3923
        %v3925 = vlaneseq
        %v3926 = vshrl.u32 %v3925, 7
        %v3927 = vsub.s32 4, %v3926
        %v3928 = vrot.slane %v3914, %v3927
        %v3929 = vlaneseq
        %v3930 = vshrl.u32 %v3929, 7
        %v3931 = vsub.s32 4, %v3930
        %v3932 = vrot.slane %v3915, %v3931
        %v3933 = vlaneseq
        %v3934 = vshrl.u32 %v3933, 7
        %v3935 = vsub.s32 4, %v3934
        %v3936 = vrot.slane %v3916, %v3935
        %v3937 = vlaneseq
        %v3938 = vshrl.u32 %v3937, 7
        %v3939 = vsub.s32 4, %v3938
        %v3940 = vrot.slane %v3917, %v3939
        %v3941 = vlaneseq
        %v3942 = vshrl.u32 %v3941, 7
        %v3943 = vsub.s32 4, %v3942
        %v3944 = vrot.slane %v3918, %v3943
        %v3945 = vlaneseq
        %v3946 = vshrl.u32 %v3945, 7
        %v3947 = vsub.s32 4, %v3946
        %v3948 = vrot.slane %v3919, %v3947
        %v3949 = vlaneseq
        %v3950 = vshrl.u32 %v3949, 7
        %v3951 = vsub.s32 4, %v3950
        %v3952 = vrot.slane %v3920, %v3951
        %v3953 = vmul.f32 %v3907, %v3924
        %v3954 = vmul.f32 %v3906, %v3928
        %v3955 = vmul.f32 %v3905, %v3932
        %v3956 = vmul.f32 %v3904, %v3936
        %v3957 = vmul.f32 %v3903, %v3940
        %v3958 = vmul.f32 %v3902, %v3944
        %v3959 = vmul.f32 %v3901, %v3948
        %v3960 = vmul.f32 %v3908, %v3952
        %v3961 = vadd.f32 %v3877, %v3953
        %v3962 = vadd.f32 %v3878, %v3954
        %v3963 = vadd.f32 %v3879, %v3955
        %v3964 = vadd.f32 %v3880, %v3956
        %v3965 = vadd.f32 %v3881, %v3957
        %v3966 = vadd.f32 %v3882, %v3958
        %v3967 = vadd.f32 %v3883, %v3959
        %v3968 = vadd.f32 %v3884, %v3960
        %3969 = vrot.lane.b32.xlu0 %v3466, 95
        %v3970 = vpop.permute.xlu0 %3969
        %3971 = vrot.lane.b32.xlu0 %v3468, 95
        %v3972 = vpop.permute.xlu0 %3971
        %3973 = vrot.lane.b32.xlu0 %v3555, 95
        %v3974 = vpop.permute.xlu0 %3973
        %3975 = vrot.lane.b32.xlu0 %v3557, 95
        %v3976 = vpop.permute.xlu0 %3975
        %3977 = vrot.lane.b32.xlu0 %v3644, 95
        %v3978 = vpop.permute.xlu0 %3977
        %3979 = vrot.lane.b32.xlu0 %v3646, 95
        %v3980 = vpop.permute.xlu0 %3979
        %3981 = vrot.lane.b32.xlu0 %v3733, 95
        %v3982 = vpop.permute.xlu0 %3981
        %3983 = vrot.lane.b32.xlu0 %v3735, 95
        %v3984 = vpop.permute.xlu0 %3983
        %v3985 = vsel %vm2032, %v3982, %v3984
        %v3986 = vsel %vm2032, %v3980, %v3982
        %v3987 = vsel %vm2032, %v3978, %v3980
        %v3988 = vsel %vm2032, %v3976, %v3978
        %v3989 = vsel %vm2032, %v3974, %v3976
        %v3990 = vsel %vm2032, %v3972, %v3974
        %v3991 = vsel %vm2032, %v3970, %v3972
        %v3992 = vsel %vm2032, %v3984, %v3970
        %v3993 = vlaneseq
        %v3994 = vshrl.u32 %v3993, 7
        %v3995 = vsub.s32 5, %v3994
        %v3996 = vrot.slane %v3913, %v3995
        %v3997 = vlaneseq
        %v3998 = vshrl.u32 %v3997, 7
        %v3999 = vsub.s32 5, %v3998
        %v4000 = vrot.slane %v3914, %v3999
        %v4001 = vlaneseq
        %v4002 = vshrl.u32 %v4001, 7
        %v4003 = vsub.s32 5, %v4002
        %v4004 = vrot.slane %v3915, %v4003
        %v4005 = vlaneseq
        %v4006 = vshrl.u32 %v4005, 7
        %v4007 = vsub.s32 5, %v4006
        %v4008 = vrot.slane %v3916, %v4007
        %v4009 = vlaneseq
        %v4010 = vshrl.u32 %v4009, 7
        %v4011 = vsub.s32 5, %v4010
        %v4012 = vrot.slane %v3917, %v4011
        %v4013 = vlaneseq
        %v4014 = vshrl.u32 %v4013, 7
        %v4015 = vsub.s32 5, %v4014
        %v4016 = vrot.slane %v3918, %v4015
        %v4017 = vlaneseq
        %v4018 = vshrl.u32 %v4017, 7
        %v4019 = vsub.s32 5, %v4018
        %v4020 = vrot.slane %v3919, %v4019
        %v4021 = vlaneseq
        %v4022 = vshrl.u32 %v4021, 7
        %v4023 = vsub.s32 5, %v4022
        %v4024 = vrot.slane %v3920, %v4023
        %v4025 = vmul.f32 %v3991, %v3996
        %v4026 = vmul.f32 %v3990, %v4000
        %v4027 = vmul.f32 %v3989, %v4004
        %v4028 = vmul.f32 %v3988, %v4008
        %v4029 = vmul.f32 %v3987, %v4012
        %v4030 = vmul.f32 %v3986, %v4016
        %v4031 = vmul.f32 %v3985, %v4020
        %v4032 = vmul.f32 %v3992, %v4024
        %v4033 = vadd.f32 %v3961, %v4025
        %v4034 = vadd.f32 %v3962, %v4026
        %v4035 = vadd.f32 %v3963, %v4027
        %v4036 = vadd.f32 %v3964, %v4028
        %v4037 = vadd.f32 %v3965, %v4029
        %v4038 = vadd.f32 %v3966, %v4030
        %v4039 = vadd.f32 %v3967, %v4031
        %v4040 = vadd.f32 %v3968, %v4032
        %4041 = vset.pattern.permute.xlu0 6
        %4042 = vperm.xlu0 %4041, %v2101
        %v4043 = vpop.permute.xlu0 %4042
        %v4045 = vadd.f32 %v4033, %v4043
        %v4046 = vadd.f32 %v4034, %v4043
        %v4047 = vadd.f32 %v4035, %v4043
        %v4048 = vadd.f32 %v4036, %v4043
        %v4049 = vadd.f32 %v4037, %v4043
        %v4050 = vadd.f32 %v4038, %v4043
        %v4051 = vadd.f32 %v4039, %v4043
        %v4052 = vadd.f32 %v4040, %v4043
        %vm4053 = vcmp.ge.f32.partialorder %v4045, 0.0
        %vm4054 = vcmp.ge.f32.partialorder %v4046, 0.0
        %vm4055 = vcmp.ge.f32.partialorder %v4047, 0.0
        %vm4056 = vcmp.ge.f32.partialorder %v4048, 0.0
        %vm4057 = vcmp.ge.f32.partialorder %v4049, 0.0
        %vm4058 = vcmp.ge.f32.partialorder %v4050, 0.0
        %vm4059 = vcmp.ge.f32.partialorder %v4051, 0.0
        %vm4060 = vcmp.ge.f32.partialorder %v4052, 0.0
        %v4061 = vmul.f32 %v4045, 0.01
        %v4062 = vmul.f32 %v4046, 0.01
        %v4063 = vmul.f32 %v4047, 0.01
        %v4064 = vmul.f32 %v4048, 0.01
        %v4065 = vmul.f32 %v4049, 0.01
        %v4066 = vmul.f32 %v4050, 0.01
        %v4067 = vmul.f32 %v4051, 0.01
        %v4068 = vmul.f32 %v4052, 0.01
        %v4069 = vsel %vm4053, %v4045, %v4061
        %v4070 = vsel %vm4054, %v4046, %v4062
        %v4071 = vsel %vm4055, %v4047, %v4063
        %v4072 = vsel %vm4056, %v4048, %v4064
        %v4073 = vsel %vm4057, %v4049, %v4065
        %v4074 = vsel %vm4058, %v4050, %v4066
        %v4075 = vsel %vm4059, %v4051, %v4067
        %v4076 = vsel %vm4060, %v4052, %v4068
        %4077 = vset.pattern.permute.xlu0 7
        %4078 = vperm.xlu0 %4077, %v2101
        %v4079 = vpop.permute.xlu0 %4078
        %v4081 = vmul.f32 %v4069, %v4079
        %v4082 = vmul.f32 %v4070, %v4079
        %v4083 = vmul.f32 %v4071, %v4079
        %v4084 = vmul.f32 %v4072, %v4079
        %v4085 = vmul.f32 %v4073, %v4079
        %v4086 = vmul.f32 %v4074, %v4079
        %v4087 = vmul.f32 %v4075, %v4079
        %v4088 = vmul.f32 %v4076, %v4079
        %4089 = vset.pattern.permute.xlu0 8
        %4090 = vperm.xlu0 %4089, %v2101
        %v4091 = vpop.permute.xlu0 %4090
        %v4093 = vadd.f32 %v4081, %v4091
        %v4094 = vadd.f32 %v4082, %v4091
        %v4095 = vadd.f32 %v4083, %v4091
        %v4096 = vadd.f32 %v4084, %v4091
        %v4097 = vadd.f32 %v4085, %v4091
        %v4098 = vadd.f32 %v4086, %v4091
        %v4099 = vadd.f32 %v4087, %v4091
        %v4100 = vadd.f32 %v4088, %v4091
        %v4101 = vld [vmem:[%s6] sm:$0xff]
        %4102 = vset.pattern.permute.xlu0 9
        %4103 = vperm.xlu0 %4102, %v2101
        %v4104 = vpop.permute.xlu0 %4103
        %vm4106 = vcmask 195584
        %v4108 = vsel %vm4106, %v4101, 0
        %4110 = vmatprep.subr.mxu0 %v2156
        %4111 = vmatpush1.msra.mxu0 %v2155
        %4112 = vmatprep.subr.mxu0 %v3358
        %4113 = vmatpush1.msra.mxu0 %v3357
        %4114 = vmatprep.subr.mxu0 %v4094
        %4115 = vmatpush1.msra.mxu0 %v4093
        %4116 = vmatprep.subr.mxu0 0.0
        %4117 = vmatpush1.msra.mxu0 0.0
        %4118 = vmatprep.subr.mxu0 0.0
        %4119 = vmatpush1.msra.mxu0 0.0
        %4120 = vmatprep.subr.mxu0 0.0
        %4121 = vmatpush1.msra.mxu0 0.0
        %4122 = vmatprep.subr.mxu0 0.0
        %4123 = vmatpush1.msra.mxu0 0.0
        %4124 = vmatprep.subr.mxu0 0.0
        %4125 = vmatpush1.msra.mxu0 0.0
        %4126 = vmatprep.subr.mxu0 0.0
        %4127 = vmatpush1.msra.mxu0 0.0
        %4128 = vmatprep.subr.mxu0 0.0
        %4129 = vmatpush1.msra.mxu0 0.0
        %4130 = vmatprep.subr.mxu0 0.0
        %4131 = vmatpush1.msra.mxu0 0.0
        %4132 = vmatprep.subr.mxu0 0.0
        %4133 = vmatpush1.msra.mxu0 0.0
        %4134 = vmatprep.subr.mxu0 0.0
        %4135 = vmatpush1.msra.mxu0 0.0
        %4136 = vmatprep.subr.mxu0 0.0
        %4137 = vmatpush1.msra.mxu0 0.0
        %4138 = vmatprep.subr.mxu0 0.0
        %4139 = vmatpush1.msra.mxu0 0.0
        %4140 = vmatprep.subr.mxu0 0.0
        %4141 = vmatpush1.msra.mxu0 0.0
        %4142 = vmatprep.subr.mxu0 0.0
        %4143 = vmatpush1.msra.mxu0 0.0
        %4144 = vmatprep.subr.mxu0 0.0
        %4145 = vmatpush1.msra.mxu0 0.0
        %4146 = vmatprep.subr.mxu0 0.0
        %4147 = vmatpush1.msra.mxu0 0.0
        %4148 = vmatprep.subr.mxu0 0.0
        %4149 = vmatpush1.msra.mxu0 0.0
        %4150 = vmatprep.subr.mxu0 0.0
        %4151 = vmatpush1.msra.mxu0 0.0
        %4152 = vmatprep.subr.mxu0 0.0
        %4153 = vmatpush1.msra.mxu0 0.0
        %4154 = vmatprep.subr.mxu0 0.0
        %4155 = vmatpush1.msra.mxu0 0.0
        %4156 = vmatprep.subr.mxu0 0.0
        %4157 = vmatpush1.msra.mxu0 0.0
        %4158 = vmatprep.subr.mxu0 0.0
        %4159 = vmatpush1.msra.mxu0 0.0
        %4160 = vmatprep.subr.mxu0 0.0
        %4161 = vmatpush1.msra.mxu0 0.0
        %4162 = vmatprep.subr.mxu0 0.0
        %4163 = vmatpush1.msra.mxu0 0.0
        %4164 = vmatprep.subr.mxu0 0.0
        %4165 = vmatpush1.msra.mxu0 0.0
        %4166 = vmatprep.subr.mxu0 0.0
        %4167 = vmatpush1.msra.mxu0 0.0
        %4168 = vmatprep.subr.mxu0 0.0
        %4169 = vmatpush1.msra.mxu0 0.0
        %4170 = vmatprep.subr.mxu0 0.0
        %4171 = vmatpush1.msra.mxu0 0.0
        %4172 = vmatprep.subr.mxu0 0.0
        %4173 = vmatpush1.msra.mxu0 0.0
        %4174 = vmatprep.mubr.f32.mxu0 0.0
        %4175 = vmatmul.mubr.f32.gmra.mrb[0].mxu0 %v4108
        %v4176 = vpop.f32.mrb[0].mxu0
        %v4177 = vadd.f32 %v4104, %v4176
        %v4178 = vpop.f32.mrb[0].mxu0
        %v4179 = vadd.f32 %v4104, %v4178
        %4180 = vdwg.mxu0
        %4181 = vmatprep.subr.mxu0 %v2158
        %4182 = vmatpush1.msra.mxu0 %v2157
        %4183 = vmatprep.subr.mxu0 %v3360
        %4184 = vmatpush1.msra.mxu0 %v3359
        %4185 = vmatprep.subr.mxu0 %v4096
        %4186 = vmatpush1.msra.mxu0 %v4095
        %4187 = vmatprep.subr.mxu0 0.0
        %4188 = vmatpush1.msra.mxu0 0.0
        %4189 = vmatprep.subr.mxu0 0.0
        %4190 = vmatpush1.msra.mxu0 0.0
        %4191 = vmatprep.subr.mxu0 0.0
        %4192 = vmatpush1.msra.mxu0 0.0
        %4193 = vmatprep.subr.mxu0 0.0
        %4194 = vmatpush1.msra.mxu0 0.0
        %4195 = vmatprep.subr.mxu0 0.0
        %4196 = vmatpush1.msra.mxu0 0.0
        %4197 = vmatprep.subr.mxu0 0.0
        %4198 = vmatpush1.msra.mxu0 0.0
        %4199 = vmatprep.subr.mxu0 0.0
        %4200 = vmatpush1.msra.mxu0 0.0
        %4201 = vmatprep.subr.mxu0 0.0
        %4202 = vmatpush1.msra.mxu0 0.0
        %4203 = vmatprep.subr.mxu0 0.0
        %4204 = vmatpush1.msra.mxu0 0.0
        %4205 = vmatprep.subr.mxu0 0.0
        %4206 = vmatpush1.msra.mxu0 0.0
        %4207 = vmatprep.subr.mxu0 0.0
        %4208 = vmatpush1.msra.mxu0 0.0
        %4209 = vmatprep.subr.mxu0 0.0
        %4210 = vmatpush1.msra.mxu0 0.0
        %4211 = vmatprep.subr.mxu0 0.0
        %4212 = vmatpush1.msra.mxu0 0.0
        %4213 = vmatprep.subr.mxu0 0.0
        %4214 = vmatpush1.msra.mxu0 0.0
        %4215 = vmatprep.subr.mxu0 0.0
        %4216 = vmatpush1.msra.mxu0 0.0
        %4217 = vmatprep.subr.mxu0 0.0
        %4218 = vmatpush1.msra.mxu0 0.0
        %4219 = vmatprep.subr.mxu0 0.0
        %4220 = vmatpush1.msra.mxu0 0.0
        %4221 = vmatprep.subr.mxu0 0.0
        %4222 = vmatpush1.msra.mxu0 0.0
        %4223 = vmatprep.subr.mxu0 0.0
        %4224 = vmatpush1.msra.mxu0 0.0
        %4225 = vmatprep.subr.mxu0 0.0
        %4226 = vmatpush1.msra.mxu0 0.0
        %4227 = vmatprep.subr.mxu0 0.0
        %4228 = vmatpush1.msra.mxu0 0.0
        %4229 = vmatprep.subr.mxu0 0.0
        %4230 = vmatpush1.msra.mxu0 0.0
        %4231 = vmatprep.subr.mxu0 0.0
        %4232 = vmatpush1.msra.mxu0 0.0
        %4233 = vmatprep.subr.mxu0 0.0
        %4234 = vmatpush1.msra.mxu0 0.0
        %4235 = vmatprep.subr.mxu0 0.0
        %4236 = vmatpush1.msra.mxu0 0.0
        %4237 = vmatprep.subr.mxu0 0.0
        %4238 = vmatpush1.msra.mxu0 0.0
        %4239 = vmatprep.subr.mxu0 0.0
        %4240 = vmatpush1.msra.mxu0 0.0
        %4241 = vmatprep.subr.mxu0 0.0
        %4242 = vmatpush1.msra.mxu0 0.0
        %4243 = vmatprep.subr.mxu0 0.0
        %4244 = vmatpush1.msra.mxu0 0.0
        %4245 = vmatprep.mubr.f32.mxu0 0.0
        %4246 = vmatmul.mubr.f32.gmra.mrb[0].mxu0 %v4108
        %v4247 = vpop.f32.mrb[0].mxu0
        %v4248 = vadd.f32 %v4104, %v4247
        %v4249 = vpop.f32.mrb[0].mxu0
        %v4250 = vadd.f32 %v4104, %v4249
        %4251 = vdwg.mxu0
        %4252 = vmatprep.subr.mxu0 %v2160
        %4253 = vmatpush1.msra.mxu0 %v2159
        %4254 = vmatprep.subr.mxu0 %v3362
        %4255 = vmatpush1.msra.mxu0 %v3361
        %4256 = vmatprep.subr.mxu0 %v4098
        %4257 = vmatpush1.msra.mxu0 %v4097
        %4258 = vmatprep.subr.mxu0 0.0
        %4259 = vmatpush1.msra.mxu0 0.0
        %4260 = vmatprep.subr.mxu0 0.0
        %4261 = vmatpush1.msra.mxu0 0.0
        %4262 = vmatprep.subr.mxu0 0.0
        %4263 = vmatpush1.msra.mxu0 0.0
        %4264 = vmatprep.subr.mxu0 0.0
        %4265 = vmatpush1.msra.mxu0 0.0
        %4266 = vmatprep.subr.mxu0 0.0
        %4267 = vmatpush1.msra.mxu0 0.0
        %4268 = vmatprep.subr.mxu0 0.0
        %4269 = vmatpush1.msra.mxu0 0.0
        %4270 = vmatprep.subr.mxu0 0.0
        %4271 = vmatpush1.msra.mxu0 0.0
        %4272 = vmatprep.subr.mxu0 0.0
        %4273 = vmatpush1.msra.mxu0 0.0
        %4274 = vmatprep.subr.mxu0 0.0
        %4275 = vmatpush1.msra.mxu0 0.0
        %4276 = vmatprep.subr.mxu0 0.0
        %4277 = vmatpush1.msra.mxu0 0.0
        %4278 = vmatprep.subr.mxu0 0.0
        %4279 = vmatpush1.msra.mxu0 0.0
        %4280 = vmatprep.subr.mxu0 0.0
        %4281 = vmatpush1.msra.mxu0 0.0
        %4282 = vmatprep.subr.mxu0 0.0
        %4283 = vmatpush1.msra.mxu0 0.0
        %4284 = vmatprep.subr.mxu0 0.0
        %4285 = vmatpush1.msra.mxu0 0.0
        %4286 = vmatprep.subr.mxu0 0.0
        %4287 = vmatpush1.msra.mxu0 0.0
        %4288 = vmatprep.subr.mxu0 0.0
        %4289 = vmatpush1.msra.mxu0 0.0
        %4290 = vmatprep.subr.mxu0 0.0
        %4291 = vmatpush1.msra.mxu0 0.0
        %4292 = vmatprep.subr.mxu0 0.0
        %4293 = vmatpush1.msra.mxu0 0.0
        %4294 = vmatprep.subr.mxu0 0.0
        %4295 = vmatpush1.msra.mxu0 0.0
        %4296 = vmatprep.subr.mxu0 0.0
        %4297 = vmatpush1.msra.mxu0 0.0
        %4298 = vmatprep.subr.mxu0 0.0
        %4299 = vmatpush1.msra.mxu0 0.0
        %4300 = vmatprep.subr.mxu0 0.0
        %4301 = vmatpush1.msra.mxu0 0.0
        %4302 = vmatprep.subr.mxu0 0.0
        %4303 = vmatpush1.msra.mxu0 0.0
        %4304 = vmatprep.subr.mxu0 0.0
        %4305 = vmatpush1.msra.mxu0 0.0
        %4306 = vmatprep.subr.mxu0 0.0
        %4307 = vmatpush1.msra.mxu0 0.0
        %4308 = vmatprep.subr.mxu0 0.0
        %4309 = vmatpush1.msra.mxu0 0.0
        %4310 = vmatprep.subr.mxu0 0.0
        %4311 = vmatpush1.msra.mxu0 0.0
        %4312 = vmatprep.subr.mxu0 0.0
        %4313 = vmatpush1.msra.mxu0 0.0
        %4314 = vmatprep.subr.mxu0 0.0
        %4315 = vmatpush1.msra.mxu0 0.0
        %4316 = vmatprep.mubr.f32.mxu0 0.0
        %4317 = vmatmul.mubr.f32.gmra.mrb[0].mxu0 %v4108
        %v4318 = vpop.f32.mrb[0].mxu0
        %v4319 = vadd.f32 %v4104, %v4318
        %v4320 = vpop.f32.mrb[0].mxu0
        %v4321 = vadd.f32 %v4104, %v4320
        %4322 = vdwg.mxu0
        %4323 = vmatprep.subr.mxu0 %v2162
        %4324 = vmatpush1.msra.mxu0 %v2161
        %4325 = vmatprep.subr.mxu0 %v3364
        %4326 = vmatpush1.msra.mxu0 %v3363
        %4327 = vmatprep.subr.mxu0 %v4100
        %4328 = vmatpush1.msra.mxu0 %v4099
        %4329 = vmatprep.subr.mxu0 0.0
        %4330 = vmatpush1.msra.mxu0 0.0
        %4331 = vmatprep.subr.mxu0 0.0
        %4332 = vmatpush1.msra.mxu0 0.0
        %4333 = vmatprep.subr.mxu0 0.0
        %4334 = vmatpush1.msra.mxu0 0.0
        %4335 = vmatprep.subr.mxu0 0.0
        %4336 = vmatpush1.msra.mxu0 0.0
        %4337 = vmatprep.subr.mxu0 0.0
        %4338 = vmatpush1.msra.mxu0 0.0
        %4339 = vmatprep.subr.mxu0 0.0
        %4340 = vmatpush1.msra.mxu0 0.0
        %4341 = vmatprep.subr.mxu0 0.0
        %4342 = vmatpush1.msra.mxu0 0.0
        %4343 = vmatprep.subr.mxu0 0.0
        %4344 = vmatpush1.msra.mxu0 0.0
        %4345 = vmatprep.subr.mxu0 0.0
        %4346 = vmatpush1.msra.mxu0 0.0
        %4347 = vmatprep.subr.mxu0 0.0
        %4348 = vmatpush1.msra.mxu0 0.0
        %4349 = vmatprep.subr.mxu0 0.0
        %4350 = vmatpush1.msra.mxu0 0.0
        %4351 = vmatprep.subr.mxu0 0.0
        %4352 = vmatpush1.msra.mxu0 0.0
        %4353 = vmatprep.subr.mxu0 0.0
        %4354 = vmatpush1.msra.mxu0 0.0
        %4355 = vmatprep.subr.mxu0 0.0
        %4356 = vmatpush1.msra.mxu0 0.0
        %4357 = vmatprep.subr.mxu0 0.0
        %4358 = vmatpush1.msra.mxu0 0.0
        %4359 = vmatprep.subr.mxu0 0.0
        %4360 = vmatpush1.msra.mxu0 0.0
        %4361 = vmatprep.subr.mxu0 0.0
        %4362 = vmatpush1.msra.mxu0 0.0
        %4363 = vmatprep.subr.mxu0 0.0
        %4364 = vmatpush1.msra.mxu0 0.0
        %4365 = vmatprep.subr.mxu0 0.0
        %4366 = vmatpush1.msra.mxu0 0.0
        %4367 = vmatprep.subr.mxu0 0.0
        %4368 = vmatpush1.msra.mxu0 0.0
        %4369 = vmatprep.subr.mxu0 0.0
        %4370 = vmatpush1.msra.mxu0 0.0
        %4371 = vmatprep.subr.mxu0 0.0
        %4372 = vmatpush1.msra.mxu0 0.0
        %4373 = vmatprep.subr.mxu0 0.0
        %4374 = vmatpush1.msra.mxu0 0.0
        %4375 = vmatprep.subr.mxu0 0.0
        %4376 = vmatpush1.msra.mxu0 0.0
        %4377 = vmatprep.subr.mxu0 0.0
        %4378 = vmatpush1.msra.mxu0 0.0
        %4379 = vmatprep.subr.mxu0 0.0
        %4380 = vmatpush1.msra.mxu0 0.0
        %4381 = vmatprep.subr.mxu0 0.0
        %4382 = vmatpush1.msra.mxu0 0.0
        %4383 = vmatprep.subr.mxu0 0.0
        %4384 = vmatpush1.msra.mxu0 0.0
        %4385 = vmatprep.subr.mxu0 0.0
        %4386 = vmatpush1.msra.mxu0 0.0
        %4387 = vmatprep.mubr.f32.mxu0 0.0
        %4388 = vmatmul.mubr.f32.gmra.mrb[0].mxu0 %v4108
        %v4389 = vpop.f32.mrb[0].mxu0
        %v4390 = vadd.f32 %v4104, %v4389
        %v4391 = vpop.f32.mrb[0].mxu0
        %v4392 = vadd.f32 %v4104, %v4391
        %4393 = vdwg.mxu0
        %vm4394 = vcmp.ge.f32.partialorder %v4177, 0.0
        %vm4395 = vcmp.ge.f32.partialorder %v4179, 0.0
        %vm4396 = vcmp.ge.f32.partialorder %v4248, 0.0
        %vm4397 = vcmp.ge.f32.partialorder %v4250, 0.0
        %vm4398 = vcmp.ge.f32.partialorder %v4319, 0.0
        %vm4399 = vcmp.ge.f32.partialorder %v4321, 0.0
        %vm4400 = vcmp.ge.f32.partialorder %v4390, 0.0
        %vm4401 = vcmp.ge.f32.partialorder %v4392, 0.0
        %v4402 = vmul.f32 %v4177, 0.01
        %v4403 = vmul.f32 %v4179, 0.01
        %v4404 = vmul.f32 %v4248, 0.01
        %v4405 = vmul.f32 %v4250, 0.01
        %v4406 = vmul.f32 %v4319, 0.01
        %v4407 = vmul.f32 %v4321, 0.01
        %v4408 = vmul.f32 %v4390, 0.01
        %v4409 = vmul.f32 %v4392, 0.01
        %v4410 = vsel %vm4394, %v4177, %v4402
        %v4411 = vsel %vm4395, %v4179, %v4403
        %v4412 = vsel %vm4396, %v4248, %v4404
        %v4413 = vsel %vm4397, %v4250, %v4405
        %v4414 = vsel %vm4398, %v4319, %v4406
        %v4415 = vsel %vm4399, %v4321, %v4407
        %v4416 = vsel %vm4400, %v4390, %v4408
        %v4417 = vsel %vm4401, %v4392, %v4409
        %4418 = vset.pattern.permute.xlu0 10
        %4419 = vperm.xlu0 %4418, %v2101
        %v4420 = vpop.permute.xlu0 %4419
        %v4422 = vmul.f32 %v4410, %v4420
        %v4423 = vmul.f32 %v4411, %v4420
        %v4424 = vmul.f32 %v4412, %v4420
        %v4425 = vmul.f32 %v4413, %v4420
        %v4426 = vmul.f32 %v4414, %v4420
        %v4427 = vmul.f32 %v4415, %v4420
        %v4428 = vmul.f32 %v4416, %v4420
        %v4429 = vmul.f32 %v4417, %v4420
        %4430 = vset.pattern.permute.xlu0 11
        %4431 = vperm.xlu0 %4430, %v2101
        %v4432 = vpop.permute.xlu0 %4431
        %v4434 = vadd.f32 %v4422, %v4432
        %v4435 = vadd.f32 %v4423, %v4432
        %v4436 = vadd.f32 %v4424, %v4432
        %v4437 = vadd.f32 %v4425, %v4432
        %v4438 = vadd.f32 %v4426, %v4432
        %v4439 = vadd.f32 %v4427, %v4432
        %v4440 = vadd.f32 %v4428, %v4432
        %v4441 = vadd.f32 %v4429, %v4432
        %4442 = vst [vmem:[%s378] sm:$0xff] %v4434
        %4443 = vst [vmem:[%s378 + $0x8] sm:$0xff] %v4435
        %4444 = vst [vmem:[%s378 + $0x10] sm:$0xff] %v4436
        %4445 = vst [vmem:[%s378 + $0x18] sm:$0xff] %v4437
        %4446 = vst [vmem:[%s378 + $0x20] sm:$0xff] %v4438
        %4447 = vst [vmem:[%s378 + $0x28] sm:$0xff] %v4439
        %4448 = vst [vmem:[%s378 + $0x30] sm:$0xff] %v4440
        %4449 = vst [vmem:[%s378 + $0x38] sm:$0xff] %v4441
        %s4450 = sand.u32 %s234, 1
        %s4451 = scalar_lea.sflag [#allocation4], %s4450
        %s4452 = sand.u32 %s234, 1
        %s4453 = smul.addr %s4452, 64
        %s4454 = scalar_lea.vmem [#allocation7], %s4453
        // Predicated region
        $region65: #{tpu_custom_call.1} parent=55 // pred_check
          %p4455 = pneg %p244
        $region66: #{tpu_custom_call.1} parent=55 // pred_check_branch
          %4457 = sbr.rel (%p4455) target = $region68
        $region67: #{tpu_custom_call.1} parent=55 // pred_region
          %s4459 = ssub.s32 1024, 1024
          %4460 = vsyncadd %s4451, %s4459
          %s4461 = smul.addr %s27, 8
          %s4462 = smul.addr %s4461, 128
          %s4463 = scalar_lea.hbm %s9, %s4462
          %s4465 = sshll.u32 %s4454, 4
          %s4466 = int_to_ptr.vmem [resolvable:$true] %s4465
          %4468 = dma.vmem_to_hbm [thread:$0]  %s4466, 1024, %s4463, %s4451
        $region68: #{tpu_custom_call.1} parent=55 // pred_fallthru
          _
      $region56: #{tpu_custom_call.1} parent=5 // pred_fallthru
        _
      %p4469 = scmp.le.s32.totalorder 2, %s22
      // Predicated region
      $region69: #{tpu_custom_call.1} parent=5 // pred_check
        %p4470 = pneg %p4469
      $region70: #{tpu_custom_call.1} parent=5 // pred_check_branch
        %4472 = sbr.rel (%p4470) target = $region72
      $region71: #{tpu_custom_call.1} parent=5 // pred_region
        %s4473 = ssub.s32 %s22, 2
        // Predicated region
        $region73: #{tpu_custom_call.1} parent=71 // pred_check
          %p4474 = pneg %p250
        $region74: #{tpu_custom_call.1} parent=71 // pred_check_branch
          %4476 = sbr.rel (%p4474) target = $region76
        $region75: #{tpu_custom_call.1} parent=71 // pred_region
          %s4477 = sand.u32 %s235, 1
          %s4478 = scalar_lea.sflag [#allocation4], %s4477
          %s4479 = sand.u32 %s235, 1
          %s4480 = smul.addr %s4479, 64
          %s4481 = scalar_lea.vmem [#allocation7], %s4480
          %4482 = dma.done %s4478, 1024
        $region76: #{tpu_custom_call.1} parent=71 // pred_fallthru
          _
      $region72: #{tpu_custom_call.1} parent=5 // pred_fallthru
        _
    $region6: #{tpu_custom_call.1} parent=1 // loop_footer
      %s26 = sadd.s32 1, %s22
    $region7: #{tpu_custom_call.1} parent=1 // loop_footer_branch
      %21 = sbr.rel target = $region3
    $region8: #{tpu_custom_call.1} parent=1 // loop_exit
      _
    %4483 = vsyncpa [#allocation3], 1
    %s4484 = scalar_lea.sflag [#allocation3], 1
    %4485 = vsyncpa %s4484, 1
    %4486 = vsyncpa [#allocation6], 1
    %4487 = vsyncpa [#allocation4], 1
    %s4488 = scalar_lea.sflag [#allocation4], 1
    %4489 = vsyncpa %s4488, 1

</llo_original>
